<compile_context>
chip_gen: v7x
topology: tpu7x:2x2x1
jax: 0.10.0
libtpu: 0.0.40
codegen_flags: <defaults>
</compile_context>

<pallas_src>
import functools

import numpy as np
import jax
import jax.numpy as jnp
from jax.experimental import pallas as pl
from jax.experimental.pallas import tpu as pltpu

CP = 16                    # channel padding (bf16 sublane packing -> aligned im2col)
LANES = 128                # FC feature padding
K_TAPS = 25 * CP           # 400 : im2col contraction size for both convs
CONV1_LANES = 27 * 32 + 28   # 892 : shifted conv1 output positions (oh*32+ow)
POOL1_LANES = 14 * 16        # 224 : pooled1 positions (ph*16+pw, last 2 cols zero)
CONV2_LANES = 9 * 16 + 10    # 154 : shifted conv2 output positions (oh*16+ow)
FEAT_LANES = 32              # 25 pooled2 positions padded to 32 lanes
_VMEM_LIMIT = 32 * 1024 * 1024


# ----------------------------------------------------------------------------
# Kernel 1: fused conv1+ReLU+pool1+conv2+ReLU+pool2 for a block of `nb` images
# ----------------------------------------------------------------------------
def _conv_stage_kernel(x_ref, w1_ref, b1_ref, w2_ref, b2_ref, p1_ref, p2_ref,
                       out_ref, y1_ref, a1_ref, y2_ref, *, nb):
    """x_ref  : (nb, 16, 1024) bf16  channel-planar images, lane = h*32+w
       w1_ref : (16, 400)      bf16  conv1 weights, col = (i*5+j)*16 + c
       b1_ref : (16, 1)        f32
       w2_ref : (16, 400)      bf16  conv2 weights (input = conv1 channels)
       b2_ref : (16, 1)        f32
       p1_ref : (892, 224)     bf16  0/0.25 avg-pool (invalid cols zeroed)
       p2_ref : (154, 32)      bf16  0/0.25 avg-pool + compact flatten layout
       out_ref: (nb*16, 32)    f32   row = b*16 + channel, lane = ph*5+pw
       y1/a1/y2_ref : VMEM scratch for the inter-layer activations."""
    w1 = w1_ref[...]
    bias1 = b1_ref[...]
    for b in range(nb):
        img = x_ref[b]                                        # (16, 1024) bf16
        # im2col in VMEM: 25 lane-shifted slices stacked along sublanes.
        taps = [img[:, i * 32 + j: i * 32 + j + CONV1_LANES]
                for i in range(5) for j in range(5)]
        patch = jnp.concatenate(taps, axis=0)                 # (400, 892) bf16
        y = jnp.dot(w1, patch, preferred_element_type=jnp.float32)  # ONE matmul
        y = jnp.maximum(y + bias1, 0.0)                       # bias + ReLU (f32)
        y1_ref[pl.ds(b * CP, CP), :] = y.astype(jnp.bfloat16)

    # 2x2/2 average pool for the whole block in one matmul (P pushed once).
    pooled1 = jnp.dot(y1_ref[...], p1_ref[...],
                      preferred_element_type=jnp.float32)     # (nb*16, 224)
    a1_ref[...] = pooled1.astype(jnp.bfloat16)

    w2 = w2_ref[...]
    bias2 = b2_ref[...]
    for b in range(nb):
        act = a1_ref[pl.ds(b * CP, CP), :]                    # (16, 224) bf16
        taps = [act[:, i * 16 + j: i * 16 + j + CONV2_LANES]
                for i in range(5) for j in range(5)]
        patch = jnp.concatenate(taps, axis=0)                 # (400, 154) bf16
        y = jnp.dot(w2, patch, preferred_element_type=jnp.float32)
        y = jnp.maximum(y + bias2, 0.0)
        y2_ref[pl.ds(b * CP, CP), :] = y.astype(jnp.bfloat16)

    # pool2 + compact (channel, ph*5+pw) flatten layout, one matmul per block.
    out_ref[...] = jnp.dot(y2_ref[...], p2_ref[...],
                           preferred_element_type=jnp.float32)


def conv_stage(x_t, w1, b1, w2, b2, p1, p2, *, nb):
    """(N, 16, 1024) bf16 -> (N*16, 32) f32 compact conv features."""
    N = x_t.shape[0]
    assert N % nb == 0
    kernel = functools.partial(_conv_stage_kernel, nb=nb)

    flops = N * 2 * CP * (K_TAPS * (CONV1_LANES + CONV2_LANES)
                          + CONV1_LANES * POOL1_LANES + CONV2_LANES * FEAT_LANES)
    bytes_accessed = (x_t.size * 2 + N * CP * FEAT_LANES * 4
                      + (w1.size + w2.size + p1.size + p2.size) * 2
                      + (b1.size + b2.size) * 4)

    return pl.pallas_call(
        kernel,
        out_shape=jax.ShapeDtypeStruct((N * CP, FEAT_LANES), jnp.float32),
        grid=(N // nb,),
        in_specs=[
            pl.BlockSpec((nb, CP, 1024), lambda i: (i, 0, 0)),   # image block
            pl.BlockSpec(w1.shape, lambda i: (0, 0)),            # resident weights
            pl.BlockSpec(b1.shape, lambda i: (0, 0)),
            pl.BlockSpec(w2.shape, lambda i: (0, 0)),
            pl.BlockSpec(b2.shape, lambda i: (0, 0)),
            pl.BlockSpec(p1.shape, lambda i: (0, 0)),            # pool matrices
            pl.BlockSpec(p2.shape, lambda i: (0, 0)),
        ],
        out_specs=pl.BlockSpec((nb * CP, FEAT_LANES), lambda i: (i, 0)),
        scratch_shapes=[
            pltpu.VMEM((nb * CP, CONV1_LANES), jnp.bfloat16),    # conv1 relu out
            pltpu.VMEM((nb * CP, POOL1_LANES), jnp.bfloat16),    # pooled1
            pltpu.VMEM((nb * CP, CONV2_LANES), jnp.bfloat16),    # conv2 relu out
        ],
        compiler_params=pltpu.CompilerParams(
            dimension_semantics=("parallel",),
            vmem_limit_bytes=_VMEM_LIMIT),
        cost_estimate=pl.CostEstimate(flops=flops, transcendentals=0,
                                      bytes_accessed=bytes_accessed),
    )(x_t, w1, b1, w2, b2, p1, p2)


# ----------------------------------------------------------------------------
# Kernel 2: fused FC stack  Linear(512->128) -> ReLU -> Linear -> ReLU -> Linear
# ----------------------------------------------------------------------------
def _fc_stack_kernel(x_ref, w1_ref, b1_ref, w2_ref, b2_ref, w3_ref, b3_ref, o_ref):
    h = jnp.dot(x_ref[...].astype(jnp.bfloat16), w1_ref[...],
                preferred_element_type=jnp.float32)
    h = jnp.maximum(h + b1_ref[...], 0.0)
    h = jnp.dot(h.astype(jnp.bfloat16), w2_ref[...],
                preferred_element_type=jnp.float32)
    h = jnp.maximum(h + b2_ref[...], 0.0)
    o_ref[...] = (jnp.dot(h.astype(jnp.bfloat16), w3_ref[...],
                          preferred_element_type=jnp.float32) + b3_ref[...])


def fc_stack(x, w1, b1, w2, b2, w3, b3):
    """x: (M, 512) f32 -> (M, 128) padded logits (sliced to 10 by the caller)."""
    M, K = x.shape
    Np = w3.shape[1]
    tm = next((t for t in (512, 256, 128, 64, 32, 16, 8) if M % t == 0), M)
    flops = 2 * M * (K * w1.shape[1] + w1.shape[1] * w2.shape[1] + w2.shape[1] * Np)
    bytes_accessed = (4 * (M * K + M * Np + b1.size + b2.size + b3.size)
                      + 2 * (w1.size + w2.size + w3.size))

    return pl.pallas_call(
        _fc_stack_kernel,
        out_shape=jax.ShapeDtypeStruct((M, Np), jnp.float32),
        grid=(M // tm,),
        in_specs=[
            pl.BlockSpec((tm, K), lambda i: (i, 0)),
            pl.BlockSpec(w1.shape, lambda i: (0, 0)),
            pl.BlockSpec(b1.shape, lambda i: (0, 0)),
            pl.BlockSpec(w2.shape, lambda i: (0, 0)),
            pl.BlockSpec(b2.shape, lambda i: (0, 0)),
            pl.BlockSpec(w3.shape, lambda i: (0, 0)),
            pl.BlockSpec(b3.shape, lambda i: (0, 0)),
        ],
        out_specs=pl.BlockSpec((tm, Np), lambda i: (i, 0)),
        compiler_params=pltpu.CompilerParams(
            dimension_semantics=("parallel",),
            vmem_limit_bytes=_VMEM_LIMIT),
        cost_estimate=pl.CostEstimate(flops=flops, transcendentals=0,
                                      bytes_accessed=bytes_accessed),
    )(x, w1, b1, w2, b2, w3, b3)


# ----------------------------------------------------------------------------
# One-time parameter preparation (padding / permutation / pool matrices)
# ----------------------------------------------------------------------------
def _prep_conv_w(w):
    oc, c, kh, kw = w.shape
    wt = jnp.transpose(w, (0, 2, 3, 1))                       # (oc, kh, kw, c)
    wt = jnp.pad(wt, ((0, CP - oc), (0, 0), (0, 0), (0, CP - c)))
    return wt.reshape(CP, kh * kw * CP).astype(jnp.bfloat16)  # col=(i*5+j)*16+c


def _prep_conv_b(b):
    return jnp.pad(b, (0, CP - b.shape[0])).reshape(CP, 1).astype(jnp.float32)


def _pool1_matrix():
    # conv1 lanes r = oh*32+ow (28x28 valid) -> pooled lanes p = ph*16+pw.
    P = np.zeros((CONV1_LANES, POOL1_LANES), np.float32)
    for ph in range(14):
        for pw in range(14):
            for dh in range(2):
                for dw in range(2):
                    P[(2 * ph + dh) * 32 + (2 * pw + dw), ph * 16 + pw] = 0.25
    return jnp.asarray(P, jnp.bfloat16)


def _pool2_matrix():
    # conv2 lanes r = oh*16+ow (10x10 valid) -> pooled lanes p = ph*5+pw (<25).
    P = np.zeros((CONV2_LANES, FEAT_LANES), np.float32)
    for ph in range(5):
        for pw in range(5):
            for dh in range(2):
                for dw in range(2):
                    P[(2 * ph + dh) * 16 + (2 * pw + dw), ph * 5 + pw] = 0.25
    return jnp.asarray(P, jnp.bfloat16)


def prepare_params(params):
    # fc1: PyTorch flatten index f = c*25 + (h*5+w); our feature index is
    # c*32 + (h*5+w).  Fold the permutation + padding into fc1's weight once.
    fw1 = params["fc1_w"].reshape(16, 25, 120)
    fw1 = jnp.pad(fw1, ((0, 0), (0, FEAT_LANES - 25), (0, LANES - 120)))
    fw1 = fw1.reshape(16 * FEAT_LANES, LANES).astype(jnp.bfloat16)

    def fc_pad(w):
        return jnp.pad(w, ((0, LANES - w.shape[0]), (0, LANES - w.shape[1]))
                       ).astype(jnp.bfloat16)

    def bias_pad(b):
        return jnp.pad(b, (0, LANES - b.shape[0])).reshape(1, LANES).astype(jnp.float32)

    return {
        "conv1_w": _prep_conv_w(params["conv1_w"]),
        "conv1_b": _prep_conv_b(params["conv1_b"]),
        "conv2_w": _prep_conv_w(params["conv2_w"]),
        "conv2_b": _prep_conv_b(params["conv2_b"]),
        "pool1": _pool1_matrix(),
        "pool2": _pool2_matrix(),
        "fc1_w": fw1, "fc1_b": bias_pad(params["fc1_b"]),
        "fc2_w": fc_pad(params["fc2_w"]), "fc2_b": bias_pad(params["fc2_b"]),
        "fc3_w": fc_pad(params["fc3_w"]), "fc3_b": bias_pad(params["fc3_b"]),
    }


# ----------------------------------------------------------------------------
# LeNet forward
# ----------------------------------------------------------------------------
def _pick_block(n):
    for b in (8, 4, 2, 1):
        if n % b == 0 and n // b >= 2:      # keep >=2 grid steps for megacore
            return b
    return n


@jax.jit
def lenet_forward(x, p):
    """x: (N, 3, 32, 32) NCHW float32 -> (N, 10) logits (PyTorch-equivalent)."""
    N = x.shape[0]
    # one-time layout change: NCHW -> channel-planar (16-padded), bf16
    xt = jnp.pad(x.reshape(N, 3, 32 * 32).astype(jnp.bfloat16),
                 ((0, 0), (0, CP - 3), (0, 0)))
    nb = _pick_block(N)
    feats = conv_stage(xt, p["conv1_w"], p["conv1_b"], p["conv2_w"], p["conv2_b"],
                       p["pool1"], p["pool2"], nb=nb)          # (N*16, 32) f32
    feats = feats.reshape(N, 16 * FEAT_LANES)                  # free row-major view
    logits = fc_stack(feats, p["fc1_w"], p["fc1_b"], p["fc2_w"], p["fc2_b"],
                      p["fc3_w"], p["fc3_b"])                  # (N, 128)
    return logits[:, :10]


# ----------------------------------------------------------------------------
# Plain-JAX reference (mirrors the PyTorch module: AvgPool2d, f32) + init
# ----------------------------------------------------------------------------
def init_params(key):
    ks = jax.random.split(key, 10)
    s = 0.1
    return {
        "conv1_w": jax.random.normal(ks[0], (6, 3, 5, 5), jnp.float32) * s,
        "conv1_b": jax.random.normal(ks[1], (6,), jnp.float32) * s,
        "conv2_w": jax.random.normal(ks[2], (16, 6, 5, 5), jnp.float32) * s,
        "conv2_b": jax.random.normal(ks[3], (16,), jnp.float32) * s,
        "fc1_w": jax.random.normal(ks[4], (400, 120), jnp.float32) * s,
        "fc1_b": jax.random.normal(ks[5], (120,), jnp.float32) * s,
        "fc2_w": jax.random.normal(ks[6], (120, 84), jnp.float32) * s,
        "fc2_b": jax.random.normal(ks[7], (84,), jnp.float32) * s,
        "fc3_w": jax.random.normal(ks[8], (84, 10), jnp.float32) * s,
        "fc3_b": jax.random.normal(ks[9], (10,), jnp.float32) * s,
    }


@jax.jit
def lenet_reference(x, params):
    def conv_relu(x, w, b):
        y = jax.lax.conv_general_dilated(
            x, w, window_strides=(1, 1), padding="VALID",
            dimension_numbers=("NCHW", "OIHW", "NCHW"))
        return jax.nn.relu(y + b[None, :, None, None])

    def avgpool2(x):
        n, c, h, w = x.shape
        return x.reshape(n, c, h // 2, 2, w // 2, 2).mean(axis=(3, 5))

    x = avgpool2(conv_relu(x, params["conv1_w"], params["conv1_b"]))
    x = avgpool2(conv_relu(x, params["conv2_w"], params["conv2_b"]))
    x = x.reshape(x.shape[0], -1)
    x = jax.nn.relu(x @ params["fc1_w"] + params["fc1_b"])
    x = jax.nn.relu(x @ params["fc2_w"] + params["fc2_b"])
    return x @ params["fc3_w"] + params["fc3_b"]


if __name__ == "__main__":
    key = jax.random.PRNGKey(0)
    pkey, xkey = jax.random.split(key)
    params = init_params(pkey)
    kparams = prepare_params(params)

    # CIFAR-10 sized input is required by Linear(400, ...): (N, 3, 32, 32).
    x = jax.random.normal(xkey, (2, 3, 32, 32), jnp.float32)

    out = jax.block_until_ready(lenet_forward(x, kparams))
    assert out.shape == (2, 10) and out.dtype == jnp.float32

    ref = jax.block_until_ready(lenet_reference(x, params))
    # Tolerance sized for the bf16 MXU path (f32 accumulation); an f32-only
    # path matches to ~1e-5, a layout/permutation bug would be O(1) off.
    np.testing.assert_allclose(np.asarray(out), np.asarray(ref),
                               rtol=3e-2, atol=3e-2)

    print("KERNEL_OK")
</pallas_src>

<mosaic_0001>
module attributes {stable_mosaic.version = 11 : i64} {
  func.func @_conv_stage_kernel(%arg0: i32, %arg1: memref<1x16x1024xbf16, #tpu.memory_space<vmem>>, %arg2: memref<16x400xbf16, #tpu.memory_space<vmem>>, %arg3: memref<16x1xf32, #tpu.memory_space<vmem>>, %arg4: memref<16x400xbf16, #tpu.memory_space<vmem>>, %arg5: memref<16x1xf32, #tpu.memory_space<vmem>>, %arg6: memref<892x224xbf16, #tpu.memory_space<vmem>>, %arg7: memref<154x32xbf16, #tpu.memory_space<vmem>>, %arg8: memref<16x32xf32, #tpu.memory_space<vmem>>, %arg9: memref<16x892xbf16, #tpu.memory_space<vmem>>, %arg10: memref<16x224xbf16, #tpu.memory_space<vmem>>, %arg11: memref<16x154xbf16, #tpu.memory_space<vmem>>) attributes {dimension_semantics = [#tpu.dimension_semantics<parallel>], iteration_bounds = array<i64: 2>, scalar_prefetch = 0 : i64, scratch_operands = 3 : i64, tpu.core_type = #tpu.core_type<tc>, window_params = [{transform_indices = @transform_0, window_bounds = array<i64: 1, 16, 1024>}, {pipeline_mode = #tpu.pipeline_mode<synchronous>, transform_indices = @transform_1, window_bounds = array<i64: 16, 400>}, {pipeline_mode = #tpu.pipeline_mode<synchronous>, transform_indices = @transform_2, window_bounds = array<i64: 16, 1>}, {pipeline_mode = #tpu.pipeline_mode<synchronous>, transform_indices = @transform_3, window_bounds = array<i64: 16, 400>}, {pipeline_mode = #tpu.pipeline_mode<synchronous>, transform_indices = @transform_4, window_bounds = array<i64: 16, 1>}, {pipeline_mode = #tpu.pipeline_mode<synchronous>, transform_indices = @transform_5, window_bounds = array<i64: 892, 224>}, {pipeline_mode = #tpu.pipeline_mode<synchronous>, transform_indices = @transform_6, window_bounds = array<i64: 154, 32>}, {transform_indices = @transform_7, window_bounds = array<i64: 16, 32>}]} {
    %c0 = arith.constant 0 : index
    %c0_0 = arith.constant 0 : index
    %0 = vector.load %arg2[%c0, %c0_0] : memref<16x400xbf16, #tpu.memory_space<vmem>>, vector<16x400xbf16>
    %c0_1 = arith.constant 0 : index
    %c0_2 = arith.constant 0 : index
    %1 = vector.load %arg3[%c0_1, %c0_2] : memref<16x1xf32, #tpu.memory_space<vmem>>, vector<16x1xf32>
    %c0_3 = arith.constant 0 : index
    %c0_4 = arith.constant 0 : index
    %c0_5 = arith.constant 0 : index
    %2 = vector.load %arg1[%c0_3, %c0_4, %c0_5] : memref<1x16x1024xbf16, #tpu.memory_space<vmem>>, vector<1x16x1024xbf16>
    %3 = vector.shape_cast %2 : vector<1x16x1024xbf16> to vector<16x1024xbf16>
    %4 = vector.extract_strided_slice %3 {offsets = [0, 0], sizes = [16, 892], strides = [1, 1]} : vector<16x1024xbf16> to vector<16x892xbf16>
    %5 = vector.extract_strided_slice %3 {offsets = [0, 1], sizes = [16, 892], strides = [1, 1]} : vector<16x1024xbf16> to vector<16x892xbf16>
    %6 = vector.extract_strided_slice %3 {offsets = [0, 2], sizes = [16, 892], strides = [1, 1]} : vector<16x1024xbf16> to vector<16x892xbf16>
    %7 = vector.extract_strided_slice %3 {offsets = [0, 3], sizes = [16, 892], strides = [1, 1]} : vector<16x1024xbf16> to vector<16x892xbf16>
    %8 = vector.extract_strided_slice %3 {offsets = [0, 4], sizes = [16, 892], strides = [1, 1]} : vector<16x1024xbf16> to vector<16x892xbf16>
    %9 = vector.extract_strided_slice %3 {offsets = [0, 32], sizes = [16, 892], strides = [1, 1]} : vector<16x1024xbf16> to vector<16x892xbf16>
    %10 = vector.extract_strided_slice %3 {offsets = [0, 33], sizes = [16, 892], strides = [1, 1]} : vector<16x1024xbf16> to vector<16x892xbf16>
    %11 = vector.extract_strided_slice %3 {offsets = [0, 34], sizes = [16, 892], strides = [1, 1]} : vector<16x1024xbf16> to vector<16x892xbf16>
    %12 = vector.extract_strided_slice %3 {offsets = [0, 35], sizes = [16, 892], strides = [1, 1]} : vector<16x1024xbf16> to vector<16x892xbf16>
    %13 = vector.extract_strided_slice %3 {offsets = [0, 36], sizes = [16, 892], strides = [1, 1]} : vector<16x1024xbf16> to vector<16x892xbf16>
    %14 = vector.extract_strided_slice %3 {offsets = [0, 64], sizes = [16, 892], strides = [1, 1]} : vector<16x1024xbf16> to vector<16x892xbf16>
    %15 = vector.extract_strided_slice %3 {offsets = [0, 65], sizes = [16, 892], strides = [1, 1]} : vector<16x1024xbf16> to vector<16x892xbf16>
    %16 = vector.extract_strided_slice %3 {offsets = [0, 66], sizes = [16, 892], strides = [1, 1]} : vector<16x1024xbf16> to vector<16x892xbf16>
    %17 = vector.extract_strided_slice %3 {offsets = [0, 67], sizes = [16, 892], strides = [1, 1]} : vector<16x1024xbf16> to vector<16x892xbf16>
    %18 = vector.extract_strided_slice %3 {offsets = [0, 68], sizes = [16, 892], strides = [1, 1]} : vector<16x1024xbf16> to vector<16x892xbf16>
    %19 = vector.extract_strided_slice %3 {offsets = [0, 96], sizes = [16, 892], strides = [1, 1]} : vector<16x1024xbf16> to vector<16x892xbf16>
    %20 = vector.extract_strided_slice %3 {offsets = [0, 97], sizes = [16, 892], strides = [1, 1]} : vector<16x1024xbf16> to vector<16x892xbf16>
    %21 = vector.extract_strided_slice %3 {offsets = [0, 98], sizes = [16, 892], strides = [1, 1]} : vector<16x1024xbf16> to vector<16x892xbf16>
    %22 = vector.extract_strided_slice %3 {offsets = [0, 99], sizes = [16, 892], strides = [1, 1]} : vector<16x1024xbf16> to vector<16x892xbf16>
    %23 = vector.extract_strided_slice %3 {offsets = [0, 100], sizes = [16, 892], strides = [1, 1]} : vector<16x1024xbf16> to vector<16x892xbf16>
    %24 = vector.extract_strided_slice %3 {offsets = [0, 128], sizes = [16, 892], strides = [1, 1]} : vector<16x1024xbf16> to vector<16x892xbf16>
    %25 = vector.extract_strided_slice %3 {offsets = [0, 129], sizes = [16, 892], strides = [1, 1]} : vector<16x1024xbf16> to vector<16x892xbf16>
    %26 = vector.extract_strided_slice %3 {offsets = [0, 130], sizes = [16, 892], strides = [1, 1]} : vector<16x1024xbf16> to vector<16x892xbf16>
    %27 = vector.extract_strided_slice %3 {offsets = [0, 131], sizes = [16, 892], strides = [1, 1]} : vector<16x1024xbf16> to vector<16x892xbf16>
    %28 = vector.extract_strided_slice %3 {offsets = [0, 132], sizes = [16, 892], strides = [1, 1]} : vector<16x1024xbf16> to vector<16x892xbf16>
    %29 = tpu.concatenate %4, %5, %6, %7, %8, %9, %10, %11, %12, %13, %14, %15, %16, %17, %18, %19 in 0 : vector<16x892xbf16>, vector<16x892xbf16>, vector<16x892xbf16>, vector<16x892xbf16>, vector<16x892xbf16>, vector<16x892xbf16>, vector<16x892xbf16>, vector<16x892xbf16>, vector<16x892xbf16>, vector<16x892xbf16>, vector<16x892xbf16>, vector<16x892xbf16>, vector<16x892xbf16>, vector<16x892xbf16>, vector<16x892xbf16>, vector<16x892xbf16> -> vector<256x892xbf16>
    %30 = tpu.concatenate %20, %21, %22, %23, %24, %25, %26, %27, %28 in 0 : vector<16x892xbf16>, vector<16x892xbf16>, vector<16x892xbf16>, vector<16x892xbf16>, vector<16x892xbf16>, vector<16x892xbf16>, vector<16x892xbf16>, vector<16x892xbf16>, vector<16x892xbf16> -> vector<144x892xbf16>
    %31 = tpu.concatenate %29, %30 in 0 : vector<256x892xbf16>, vector<144x892xbf16> -> vector<400x892xbf16>
    %cst = arith.constant dense<0.000000e+00> : vector<16x892xf32>
    %32 = tpu.matmul %0, %31, %cst {dimension_numbers = #tpu.dot_dimension_numbers<[1], [0], [0], [1], [0, 0, 1, 1], [], []>} : vector<16x400xbf16>, vector<400x892xbf16>, vector<16x892xf32> -> vector<16x892xf32>
    %33 = vector.broadcast %1 : vector<16x1xf32> to vector<16x892xf32>
    %34 = arith.addf %32, %33 : vector<16x892xf32>
    %cst_6 = arith.constant 0.000000e+00 : f32
    %35 = vector.broadcast %cst_6 : f32 to vector<16x892xf32>
    %36 = arith.maximumf %34, %35 : vector<16x892xf32>
    %37 = arith.truncf %36 : vector<16x892xf32> to vector<16x892xbf16>
    %c0_7 = arith.constant 0 : index
    %c0_8 = arith.constant 0 : index
    %38 = vector.load %arg9[%c0_7, %c0_8] : memref<16x892xbf16, #tpu.memory_space<vmem>>, vector<16x892xbf16>
    tpu.vector_store %arg9[%c0_7, %c0_8], %37 {strides = array<i32>} : memref<16x892xbf16, #tpu.memory_space<vmem>>, vector<16x892xbf16>,
    %c0_9 = arith.constant 0 : index
    %c0_10 = arith.constant 0 : index
    %39 = vector.load %arg9[%c0_9, %c0_10] : memref<16x892xbf16, #tpu.memory_space<vmem>>, vector<16x892xbf16>
    %c0_11 = arith.constant 0 : index
    %c0_12 = arith.constant 0 : index
    %40 = vector.load %arg6[%c0_11, %c0_12] : memref<892x224xbf16, #tpu.memory_space<vmem>>, vector<892x224xbf16>
    %cst_13 = arith.constant dense<0.000000e+00> : vector<16x224xf32>
    %41 = tpu.matmul %39, %40, %cst_13 {dimension_numbers = #tpu.dot_dimension_numbers<[1], [0], [0], [1], [0, 0, 1, 1], [], []>} : vector<16x892xbf16>, vector<892x224xbf16>, vector<16x224xf32> -> vector<16x224xf32>
    %42 = arith.truncf %41 : vector<16x224xf32> to vector<16x224xbf16>
    %c0_14 = arith.constant 0 : index
    %c0_15 = arith.constant 0 : index
    %43 = vector.load %arg10[%c0_14, %c0_15] : memref<16x224xbf16, #tpu.memory_space<vmem>>, vector<16x224xbf16>
    tpu.vector_store %arg10[%c0_14, %c0_15], %42 {strides = array<i32>} : memref<16x224xbf16, #tpu.memory_space<vmem>>, vector<16x224xbf16>,
    %c0_16 = arith.constant 0 : index
    %c0_17 = arith.constant 0 : index
    %44 = vector.load %arg4[%c0_16, %c0_17] : memref<16x400xbf16, #tpu.memory_space<vmem>>, vector<16x400xbf16>
    %c0_18 = arith.constant 0 : index
    %c0_19 = arith.constant 0 : index
    %45 = vector.load %arg5[%c0_18, %c0_19] : memref<16x1xf32, #tpu.memory_space<vmem>>, vector<16x1xf32>
    %c0_20 = arith.constant 0 : index
    %c0_21 = arith.constant 0 : index
    %46 = vector.load %arg10[%c0_20, %c0_21] : memref<16x224xbf16, #tpu.memory_space<vmem>>, vector<16x224xbf16>
    %47 = vector.extract_strided_slice %46 {offsets = [0, 0], sizes = [16, 154], strides = [1, 1]} : vector<16x224xbf16> to vector<16x154xbf16>
    %48 = vector.extract_strided_slice %46 {offsets = [0, 1], sizes = [16, 154], strides = [1, 1]} : vector<16x224xbf16> to vector<16x154xbf16>
    %49 = vector.extract_strided_slice %46 {offsets = [0, 2], sizes = [16, 154], strides = [1, 1]} : vector<16x224xbf16> to vector<16x154xbf16>
    %50 = vector.extract_strided_slice %46 {offsets = [0, 3], sizes = [16, 154], strides = [1, 1]} : vector<16x224xbf16> to vector<16x154xbf16>
    %51 = vector.extract_strided_slice %46 {offsets = [0, 4], sizes = [16, 154], strides = [1, 1]} : vector<16x224xbf16> to vector<16x154xbf16>
    %52 = vector.extract_strided_slice %46 {offsets = [0, 16], sizes = [16, 154], strides = [1, 1]} : vector<16x224xbf16> to vector<16x154xbf16>
    %53 = vector.extract_strided_slice %46 {offsets = [0, 17], sizes = [16, 154], strides = [1, 1]} : vector<16x224xbf16> to vector<16x154xbf16>
    %54 = vector.extract_strided_slice %46 {offsets = [0, 18], sizes = [16, 154], strides = [1, 1]} : vector<16x224xbf16> to vector<16x154xbf16>
    %55 = vector.extract_strided_slice %46 {offsets = [0, 19], sizes = [16, 154], strides = [1, 1]} : vector<16x224xbf16> to vector<16x154xbf16>
    %56 = vector.extract_strided_slice %46 {offsets = [0, 20], sizes = [16, 154], strides = [1, 1]} : vector<16x224xbf16> to vector<16x154xbf16>
    %57 = vector.extract_strided_slice %46 {offsets = [0, 32], sizes = [16, 154], strides = [1, 1]} : vector<16x224xbf16> to vector<16x154xbf16>
    %58 = vector.extract_strided_slice %46 {offsets = [0, 33], sizes = [16, 154], strides = [1, 1]} : vector<16x224xbf16> to vector<16x154xbf16>
    %59 = vector.extract_strided_slice %46 {offsets = [0, 34], sizes = [16, 154], strides = [1, 1]} : vector<16x224xbf16> to vector<16x154xbf16>
    %60 = vector.extract_strided_slice %46 {offsets = [0, 35], sizes = [16, 154], strides = [1, 1]} : vector<16x224xbf16> to vector<16x154xbf16>
    %61 = vector.extract_strided_slice %46 {offsets = [0, 36], sizes = [16, 154], strides = [1, 1]} : vector<16x224xbf16> to vector<16x154xbf16>
    %62 = vector.extract_strided_slice %46 {offsets = [0, 48], sizes = [16, 154], strides = [1, 1]} : vector<16x224xbf16> to vector<16x154xbf16>
    %63 = vector.extract_strided_slice %46 {offsets = [0, 49], sizes = [16, 154], strides = [1, 1]} : vector<16x224xbf16> to vector<16x154xbf16>
    %64 = vector.extract_strided_slice %46 {offsets = [0, 50], sizes = [16, 154], strides = [1, 1]} : vector<16x224xbf16> to vector<16x154xbf16>
    %65 = vector.extract_strided_slice %46 {offsets = [0, 51], sizes = [16, 154], strides = [1, 1]} : vector<16x224xbf16> to vector<16x154xbf16>
    %66 = vector.extract_strided_slice %46 {offsets = [0, 52], sizes = [16, 154], strides = [1, 1]} : vector<16x224xbf16> to vector<16x154xbf16>
    %67 = vector.extract_strided_slice %46 {offsets = [0, 64], sizes = [16, 154], strides = [1, 1]} : vector<16x224xbf16> to vector<16x154xbf16>
    %68 = vector.extract_strided_slice %46 {offsets = [0, 65], sizes = [16, 154], strides = [1, 1]} : vector<16x224xbf16> to vector<16x154xbf16>
    %69 = vector.extract_strided_slice %46 {offsets = [0, 66], sizes = [16, 154], strides = [1, 1]} : vector<16x224xbf16> to vector<16x154xbf16>
    %70 = vector.extract_strided_slice %46 {offsets = [0, 67], sizes = [16, 154], strides = [1, 1]} : vector<16x224xbf16> to vector<16x154xbf16>
    %71 = vector.extract_strided_slice %46 {offsets = [0, 68], sizes = [16, 154], strides = [1, 1]} : vector<16x224xbf16> to vector<16x154xbf16>
    %72 = tpu.concatenate %47, %48, %49, %50, %51, %52, %53, %54, %55, %56, %57, %58, %59, %60, %61, %62 in 0 : vector<16x154xbf16>, vector<16x154xbf16>, vector<16x154xbf16>, vector<16x154xbf16>, vector<16x154xbf16>, vector<16x154xbf16>, vector<16x154xbf16>, vector<16x154xbf16>, vector<16x154xbf16>, vector<16x154xbf16>, vector<16x154xbf16>, vector<16x154xbf16>, vector<16x154xbf16>, vector<16x154xbf16>, vector<16x154xbf16>, vector<16x154xbf16> -> vector<256x154xbf16>
    %73 = tpu.concatenate %63, %64, %65, %66, %67, %68, %69, %70, %71 in 0 : vector<16x154xbf16>, vector<16x154xbf16>, vector<16x154xbf16>, vector<16x154xbf16>, vector<16x154xbf16>, vector<16x154xbf16>, vector<16x154xbf16>, vector<16x154xbf16>, vector<16x154xbf16> -> vector<144x154xbf16>
    %74 = tpu.concatenate %72, %73 in 0 : vector<256x154xbf16>, vector<144x154xbf16> -> vector<400x154xbf16>
    %cst_22 = arith.constant dense<0.000000e+00> : vector<16x154xf32>
    %75 = tpu.matmul %44, %74, %cst_22 {dimension_numbers = #tpu.dot_dimension_numbers<[1], [0], [0], [1], [0, 0, 1, 1], [], []>} : vector<16x400xbf16>, vector<400x154xbf16>, vector<16x154xf32> -> vector<16x154xf32>
    %76 = vector.broadcast %45 : vector<16x1xf32> to vector<16x154xf32>
    %77 = arith.addf %75, %76 : vector<16x154xf32>
    %cst_23 = arith.constant 0.000000e+00 : f32
    %78 = vector.broadcast %cst_23 : f32 to vector<16x154xf32>
    %79 = arith.maximumf %77, %78 : vector<16x154xf32>
    %80 = arith.truncf %79 : vector<16x154xf32> to vector<16x154xbf16>
    %c0_24 = arith.constant 0 : index
    %c0_25 = arith.constant 0 : index
    %81 = vector.load %arg11[%c0_24, %c0_25] : memref<16x154xbf16, #tpu.memory_space<vmem>>, vector<16x154xbf16>
    tpu.vector_store %arg11[%c0_24, %c0_25], %80 {strides = array<i32>} : memref<16x154xbf16, #tpu.memory_space<vmem>>, vector<16x154xbf16>,
    %c0_26 = arith.constant 0 : index
    %c0_27 = arith.constant 0 : index
    %82 = vector.load %arg11[%c0_26, %c0_27] : memref<16x154xbf16, #tpu.memory_space<vmem>>, vector<16x154xbf16>
    %c0_28 = arith.constant 0 : index
    %c0_29 = arith.constant 0 : index
    %83 = vector.load %arg7[%c0_28, %c0_29] : memref<154x32xbf16, #tpu.memory_space<vmem>>, vector<154x32xbf16>
    %cst_30 = arith.constant dense<0.000000e+00> : vector<16x32xf32>
    %84 = tpu.matmul %82, %83, %cst_30 {dimension_numbers = #tpu.dot_dimension_numbers<[1], [0], [0], [1], [0, 0, 1, 1], [], []>} : vector<16x154xbf16>, vector<154x32xbf16>, vector<16x32xf32> -> vector<16x32xf32>
    %c0_31 = arith.constant 0 : index
    %c0_32 = arith.constant 0 : index
    %85 = vector.load %arg8[%c0_31, %c0_32] : memref<16x32xf32, #tpu.memory_space<vmem>>, vector<16x32xf32>
    tpu.vector_store %arg8[%c0_31, %c0_32], %84 {strides = array<i32>} : memref<16x32xf32, #tpu.memory_space<vmem>>, vector<16x32xf32>,
    return
  }
  func.func @transform_0(%arg0: i32) -> (i32, i32, i32) {
    %c0_i32 = arith.constant 0 : i32
    %c0_i32_0 = arith.constant 0 : i32
    %c0_i32_1 = arith.constant 0 : i32
    return %arg0, %c0_i32, %c0_i32_0 : i32, i32, i32
  }
  func.func @transform_1(%arg0: i32) -> (i32, i32) {
    %c0_i32 = arith.constant 0 : i32
    %c0_i32_0 = arith.constant 0 : i32
    %c0_i32_1 = arith.constant 0 : i32
    return %c0_i32, %c0_i32_0 : i32, i32
  }
  func.func @transform_2(%arg0: i32) -> (i32, i32) {
    %c0_i32 = arith.constant 0 : i32
    %c0_i32_0 = arith.constant 0 : i32
    %c0_i32_1 = arith.constant 0 : i32
    return %c0_i32, %c0_i32_0 : i32, i32
  }
  func.func @transform_3(%arg0: i32) -> (i32, i32) {
    %c0_i32 = arith.constant 0 : i32
    %c0_i32_0 = arith.constant 0 : i32
    %c0_i32_1 = arith.constant 0 : i32
    return %c0_i32, %c0_i32_0 : i32, i32
  }
  func.func @transform_4(%arg0: i32) -> (i32, i32) {
    %c0_i32 = arith.constant 0 : i32
    %c0_i32_0 = arith.constant 0 : i32
    %c0_i32_1 = arith.constant 0 : i32
    return %c0_i32, %c0_i32_0 : i32, i32
  }
  func.func @transform_5(%arg0: i32) -> (i32, i32) {
    %c0_i32 = arith.constant 0 : i32
    %c0_i32_0 = arith.constant 0 : i32
    %c0_i32_1 = arith.constant 0 : i32
    return %c0_i32, %c0_i32_0 : i32, i32
  }
  func.func @transform_6(%arg0: i32) -> (i32, i32) {
    %c0_i32 = arith.constant 0 : i32
    %c0_i32_0 = arith.constant 0 : i32
    %c0_i32_1 = arith.constant 0 : i32
    return %c0_i32, %c0_i32_0 : i32, i32
  }
  func.func @transform_7(%arg0: i32) -> (i32, i32) {
    %c0_i32 = arith.constant 0 : i32
    %c0_i32_0 = arith.constant 0 : i32
    return %arg0, %c0_i32 : i32, i32
  }
}

module attributes {stable_mosaic.version = 11 : i64} {
  func.func @_fc_stack_kernel(%arg0: i32, %arg1: memref<2x512xf32, #tpu.memory_space<vmem>>, %arg2: memref<512x128xbf16, #tpu.memory_space<vmem>>, %arg3: memref<1x128xf32, #tpu.memory_space<vmem>>, %arg4: memref<128x128xbf16, #tpu.memory_space<vmem>>, %arg5: memref<1x128xf32, #tpu.memory_space<vmem>>, %arg6: memref<128x128xbf16, #tpu.memory_space<vmem>>, %arg7: memref<1x128xf32, #tpu.memory_space<vmem>>, %arg8: memref<2x128xf32, #tpu.memory_space<vmem>>) attributes {dimension_semantics = [#tpu.dimension_semantics<parallel>], iteration_bounds = array<i64: 1>, scalar_prefetch = 0 : i64, scratch_operands = 0 : i64, tpu.core_type = #tpu.core_type<tc>, window_params = [{transform_indices = @transform_0, window_bounds = array<i64: 2, 512>}, {pipeline_mode = #tpu.pipeline_mode<synchronous>, transform_indices = @transform_1, window_bounds = array<i64: 512, 128>}, {pipeline_mode = #tpu.pipeline_mode<synchronous>, transform_indices = @transform_2, window_bounds = array<i64: 1, 128>}, {pipeline_mode = #tpu.pipeline_mode<synchronous>, transform_indices = @transform_3, window_bounds = array<i64: 128, 128>}, {pipeline_mode = #tpu.pipeline_mode<synchronous>, transform_indices = @transform_4, window_bounds = array<i64: 1, 128>}, {pipeline_mode = #tpu.pipeline_mode<synchronous>, transform_indices = @transform_5, window_bounds = array<i64: 128, 128>}, {pipeline_mode = #tpu.pipeline_mode<synchronous>, transform_indices = @transform_6, window_bounds = array<i64: 1, 128>}, {transform_indices = @transform_7, window_bounds = array<i64: 2, 128>}]} {
    %c0 = arith.constant 0 : index
    %c0_0 = arith.constant 0 : index
    %0 = vector.load %arg1[%c0, %c0_0] : memref<2x512xf32, #tpu.memory_space<vmem>>, vector<2x512xf32>
    %1 = arith.truncf %0 : vector<2x512xf32> to vector<2x512xbf16>
    %c0_1 = arith.constant 0 : index
    %c0_2 = arith.constant 0 : index
    %2 = vector.load %arg2[%c0_1, %c0_2] : memref<512x128xbf16, #tpu.memory_space<vmem>>, vector<512x128xbf16>
    %cst = arith.constant dense<0.000000e+00> : vector<2x128xf32>
    %3 = tpu.matmul %1, %2, %cst {dimension_numbers = #tpu.dot_dimension_numbers<[1], [0], [0], [1], [0, 0, 1, 1], [], []>} : vector<2x512xbf16>, vector<512x128xbf16>, vector<2x128xf32> -> vector<2x128xf32>
    %c0_3 = arith.constant 0 : index
    %c0_4 = arith.constant 0 : index
    %4 = vector.load %arg3[%c0_3, %c0_4] : memref<1x128xf32, #tpu.memory_space<vmem>>, vector<1x128xf32>
    %5 = vector.broadcast %4 : vector<1x128xf32> to vector<2x128xf32>
    %6 = arith.addf %3, %5 : vector<2x128xf32>
    %cst_5 = arith.constant 0.000000e+00 : f32
    %7 = vector.broadcast %cst_5 : f32 to vector<2x128xf32>
    %8 = arith.maximumf %6, %7 : vector<2x128xf32>
    %9 = arith.truncf %8 : vector<2x128xf32> to vector<2x128xbf16>
    %c0_6 = arith.constant 0 : index
    %c0_7 = arith.constant 0 : index
    %10 = vector.load %arg4[%c0_6, %c0_7] : memref<128x128xbf16, #tpu.memory_space<vmem>>, vector<128x128xbf16>
    %cst_8 = arith.constant dense<0.000000e+00> : vector<2x128xf32>
    %11 = tpu.matmul %9, %10, %cst_8 {dimension_numbers = #tpu.dot_dimension_numbers<[1], [0], [0], [1], [0, 0, 1, 1], [], []>} : vector<2x128xbf16>, vector<128x128xbf16>, vector<2x128xf32> -> vector<2x128xf32>
    %c0_9 = arith.constant 0 : index
    %c0_10 = arith.constant 0 : index
    %12 = vector.load %arg5[%c0_9, %c0_10] : memref<1x128xf32, #tpu.memory_space<vmem>>, vector<1x128xf32>
    %13 = vector.broadcast %12 : vector<1x128xf32> to vector<2x128xf32>
    %14 = arith.addf %11, %13 : vector<2x128xf32>
    %cst_11 = arith.constant 0.000000e+00 : f32
    %15 = vector.broadcast %cst_11 : f32 to vector<2x128xf32>
    %16 = arith.maximumf %14, %15 : vector<2x128xf32>
    %17 = arith.truncf %16 : vector<2x128xf32> to vector<2x128xbf16>
    %c0_12 = arith.constant 0 : index
    %c0_13 = arith.constant 0 : index
    %18 = vector.load %arg6[%c0_12, %c0_13] : memref<128x128xbf16, #tpu.memory_space<vmem>>, vector<128x128xbf16>
    %cst_14 = arith.constant dense<0.000000e+00> : vector<2x128xf32>
    %19 = tpu.matmul %17, %18, %cst_14 {dimension_numbers = #tpu.dot_dimension_numbers<[1], [0], [0], [1], [0, 0, 1, 1], [], []>} : vector<2x128xbf16>, vector<128x128xbf16>, vector<2x128xf32> -> vector<2x128xf32>
    %c0_15 = arith.constant 0 : index
    %c0_16 = arith.constant 0 : index
    %20 = vector.load %arg7[%c0_15, %c0_16] : memref<1x128xf32, #tpu.memory_space<vmem>>, vector<1x128xf32>
    %21 = vector.broadcast %20 : vector<1x128xf32> to vector<2x128xf32>
    %22 = arith.addf %19, %21 : vector<2x128xf32>
    %c0_17 = arith.constant 0 : index
    %c0_18 = arith.constant 0 : index
    %23 = vector.load %arg8[%c0_17, %c0_18] : memref<2x128xf32, #tpu.memory_space<vmem>>, vector<2x128xf32>
    tpu.vector_store %arg8[%c0_17, %c0_18], %22 {strides = array<i32>} : memref<2x128xf32, #tpu.memory_space<vmem>>, vector<2x128xf32>,
    return
  }
  func.func @transform_0(%arg0: i32) -> (i32, i32) {
    %c0_i32 = arith.constant 0 : i32
    %c0_i32_0 = arith.constant 0 : i32
    return %arg0, %c0_i32 : i32, i32
  }
  func.func @transform_1(%arg0: i32) -> (i32, i32) {
    %c0_i32 = arith.constant 0 : i32
    %c0_i32_0 = arith.constant 0 : i32
    %c0_i32_1 = arith.constant 0 : i32
    return %c0_i32, %c0_i32_0 : i32, i32
  }
  func.func @transform_2(%arg0: i32) -> (i32, i32) {
    %c0_i32 = arith.constant 0 : i32
    %c0_i32_0 = arith.constant 0 : i32
    %c0_i32_1 = arith.constant 0 : i32
    return %c0_i32, %c0_i32_0 : i32, i32
  }
  func.func @transform_3(%arg0: i32) -> (i32, i32) {
    %c0_i32 = arith.constant 0 : i32
    %c0_i32_0 = arith.constant 0 : i32
    %c0_i32_1 = arith.constant 0 : i32
    return %c0_i32, %c0_i32_0 : i32, i32
  }
  func.func @transform_4(%arg0: i32) -> (i32, i32) {
    %c0_i32 = arith.constant 0 : i32
    %c0_i32_0 = arith.constant 0 : i32
    %c0_i32_1 = arith.constant 0 : i32
    return %c0_i32, %c0_i32_0 : i32, i32
  }
  func.func @transform_5(%arg0: i32) -> (i32, i32) {
    %c0_i32 = arith.constant 0 : i32
    %c0_i32_0 = arith.constant 0 : i32
    %c0_i32_1 = arith.constant 0 : i32
    return %c0_i32, %c0_i32_0 : i32, i32
  }
  func.func @transform_6(%arg0: i32) -> (i32, i32) {
    %c0_i32 = arith.constant 0 : i32
    %c0_i32_0 = arith.constant 0 : i32
    %c0_i32_1 = arith.constant 0 : i32
    return %c0_i32, %c0_i32_0 : i32, i32
  }
  func.func @transform_7(%arg0: i32) -> (i32, i32) {
    %c0_i32 = arith.constant 0 : i32
    %c0_i32_0 = arith.constant 0 : i32
    return %arg0, %c0_i32 : i32, i32
  }
}

</mosaic_0001>

<llo_original>
// kernel: lenet_forward.3
$region0: #{lenet_forward.3}
  #allocation0 [shape = 'u32[]', space=smem, size = 0x4, offset = 0x4, fixed_abs, tag = 'smem constant byte address 0x4 - core index']
  #allocation1 [shape = 'u32[144,128]{1,0:T(1,128)}', space=vmem, size = 0x12000, scoped, tag = 'internal scratch']
  %s0 = inlined_call_operand.vmem [shape: f32[2,512], index: 0, kind: input, shape index: {}]
  %s1 = inlined_call_operand.vmem [shape: bf16[512,128], index: 1, kind: input, shape index: {}]
  %s2 = inlined_call_operand.vmem [shape: f32[1,128], index: 2, kind: input, shape index: {}]
  %s3 = inlined_call_operand.vmem [shape: bf16[128,128], index: 3, kind: input, shape index: {}]
  %s4 = inlined_call_operand.vmem [shape: f32[1,128], index: 4, kind: input, shape index: {}]
  %s5 = inlined_call_operand.vmem [shape: bf16[128,128], index: 5, kind: input, shape index: {}]
  %s6 = inlined_call_operand.vmem [shape: f32[1,128], index: 6, kind: input, shape index: {}]
  %s7 = inlined_call_operand.hbm [shape: f32[2,128], index: 7, kind: output, shape index: {}]
  %s8 = sld [smem:[#allocation0]]
  $region38: #{lenet_forward.3} parent=0
    _
  %s10 = ssub.s32 1, %s8
  %s11 = scalar_select 0, %s10, %s8
  $region1: #{lenet_forward.3} parent=0
    #allocation2 [shape = 'u8[1024]{0}', space=vmem, size = 0x400, scoped, tag = 'output window, operand 0, single buffered']
    #allocation3 [shape = 's32[1]{0}', space=sflag, size = 0x4, scoped, tag = 'scoped memory for lenet_forward.3']
    %12 = vsyncpa [#allocation3], 0
    // Predicated region
    $region2: #{lenet_forward.3} parent=1 // pred_check
      _
    $region3: #{lenet_forward.3} parent=1 // pred_check_branch
      %14 = sbr.rel (0) target = $region5
    $region4: #{lenet_forward.3} parent=1 // pred_region
      _
    $region5: #{lenet_forward.3} parent=1 // pred_fallthru
      _
    // Predicated region
    $region6: #{lenet_forward.3} parent=1 // pred_check
      _
    $region7: #{lenet_forward.3} parent=1 // pred_check_branch
      %16 = sbr.rel (0) target = $region9
    $region8: #{lenet_forward.3} parent=1 // pred_region
      _
    $region9: #{lenet_forward.3} parent=1 // pred_fallthru
      _
    // Predicated region
    $region10: #{lenet_forward.3} parent=1 // pred_check
      _
    $region11: #{lenet_forward.3} parent=1 // pred_check_branch
      %18 = sbr.rel (0) target = $region13
    $region12: #{lenet_forward.3} parent=1 // pred_region
      _
    $region13: #{lenet_forward.3} parent=1 // pred_fallthru
      _
    // Predicated region
    $region14: #{lenet_forward.3} parent=1 // pred_check
      _
    $region15: #{lenet_forward.3} parent=1 // pred_check_branch
      %20 = sbr.rel (0) target = $region17
    $region16: #{lenet_forward.3} parent=1 // pred_region
      _
    $region17: #{lenet_forward.3} parent=1 // pred_fallthru
      _
    // Predicated region
    $region18: #{lenet_forward.3} parent=1 // pred_check
      _
    $region19: #{lenet_forward.3} parent=1 // pred_check_branch
      %22 = sbr.rel (0) target = $region21
    $region20: #{lenet_forward.3} parent=1 // pred_region
      _
    $region21: #{lenet_forward.3} parent=1 // pred_fallthru
      _
    // Predicated region
    $region22: #{lenet_forward.3} parent=1 // pred_check
      _
    $region23: #{lenet_forward.3} parent=1 // pred_check_branch
      %24 = sbr.rel (0) target = $region25
    $region24: #{lenet_forward.3} parent=1 // pred_region
      _
    $region25: #{lenet_forward.3} parent=1 // pred_fallthru
      _
    // Predicated region
    $region26: #{lenet_forward.3} parent=1 // pred_check
      _
    $region27: #{lenet_forward.3} parent=1 // pred_check_branch
      %26 = sbr.rel (0) target = $region29
    $region28: #{lenet_forward.3} parent=1 // pred_region
      _
    $region29: #{lenet_forward.3} parent=1 // pred_fallthru
      _
    %v28 = vld [vmem:[%s0] sm:$0xff]
    %v30 = vcombine.high %v28, %v28
    %v32 = vunpack.c.l.s4 1983009808
    %v33 = vunpack.c.0.s8 %v32
    %v34 = vlaneseq
    %v35 = vshrl.u32 %v34, 7
    %v36 = vsub.s32 %v33, %v35
    %v37 = vrot.slane %v28, %v36
    %v39 = vunpack.c.l.s4 1983009808
    %v40 = vunpack.c.0.s8 %v39
    %v41 = vlaneseq
    %v42 = vshrl.u32 %v41, 7
    %v43 = vsub.s32 %v40, %v42
    %v44 = vrot.slane %v30, %v43
    %v45 = vcombine.high %v37, %v37
    %v46 = vcombine.high %v44, %v44
    %v51 = vpack.c.bf16 %v37, %v37
    %v52 = vpack.c.bf16 %v45, %v45
    %v53 = vpack.c.bf16 %v44, %v44
    %v54 = vpack.c.bf16 %v46, %v46
    %v55 = vld [vmem:[%s1] sm:$0xf]
    %v56 = vld [vmem:[%s1 + $0x4] sm:$0xf]
    %v57 = vld [vmem:[%s1 + $0x8] sm:$0xf]
    %v58 = vld [vmem:[%s1 + $0xc] sm:$0xf]
    %v59 = vld [vmem:[%s1 + $0x10] sm:$0xf]
    %v60 = vld [vmem:[%s1 + $0x14] sm:$0xf]
    %v61 = vld [vmem:[%s1 + $0x18] sm:$0xf]
    %v62 = vld [vmem:[%s1 + $0x1c] sm:$0xf]
    %v63 = vld [vmem:[%s1 + $0x20] sm:$0xf]
    %v64 = vld [vmem:[%s1 + $0x24] sm:$0xf]
    %v65 = vld [vmem:[%s1 + $0x28] sm:$0xf]
    %v66 = vld [vmem:[%s1 + $0x2c] sm:$0xf]
    %v67 = vld [vmem:[%s1 + $0x30] sm:$0xf]
    %v68 = vld [vmem:[%s1 + $0x34] sm:$0xf]
    %v69 = vld [vmem:[%s1 + $0x38] sm:$0xf]
    %v70 = vld [vmem:[%s1 + $0x3c] sm:$0xf]
    %v71 = vld [vmem:[%s1 + $0x40] sm:$0xf]
    %v72 = vld [vmem:[%s1 + $0x44] sm:$0xf]
    %v73 = vld [vmem:[%s1 + $0x48] sm:$0xf]
    %v74 = vld [vmem:[%s1 + $0x4c] sm:$0xf]
    %v75 = vld [vmem:[%s1 + $0x50] sm:$0xf]
    %v76 = vld [vmem:[%s1 + $0x54] sm:$0xf]
    %v77 = vld [vmem:[%s1 + $0x58] sm:$0xf]
    %v78 = vld [vmem:[%s1 + $0x5c] sm:$0xf]
    %v79 = vld [vmem:[%s1 + $0x60] sm:$0xf]
    %v80 = vld [vmem:[%s1 + $0x64] sm:$0xf]
    %v81 = vld [vmem:[%s1 + $0x68] sm:$0xf]
    %v82 = vld [vmem:[%s1 + $0x6c] sm:$0xf]
    %v83 = vld [vmem:[%s1 + $0x70] sm:$0xf]
    %v84 = vld [vmem:[%s1 + $0x74] sm:$0xf]
    %v85 = vld [vmem:[%s1 + $0x78] sm:$0xf]
    %v86 = vld [vmem:[%s1 + $0x7c] sm:$0xf]
    %v87 = vld [vmem:[%s1 + $0x80] sm:$0xf]
    %v88 = vld [vmem:[%s1 + $0x84] sm:$0xf]
    %v89 = vld [vmem:[%s1 + $0x88] sm:$0xf]
    %v90 = vld [vmem:[%s1 + $0x8c] sm:$0xf]
    %v91 = vld [vmem:[%s1 + $0x90] sm:$0xf]
    %v92 = vld [vmem:[%s1 + $0x94] sm:$0xf]
    %v93 = vld [vmem:[%s1 + $0x98] sm:$0xf]
    %v94 = vld [vmem:[%s1 + $0x9c] sm:$0xf]
    %v95 = vld [vmem:[%s1 + $0xa0] sm:$0xf]
    %v96 = vld [vmem:[%s1 + $0xa4] sm:$0xf]
    %v97 = vld [vmem:[%s1 + $0xa8] sm:$0xf]
    %v98 = vld [vmem:[%s1 + $0xac] sm:$0xf]
    %v99 = vld [vmem:[%s1 + $0xb0] sm:$0xf]
    %v100 = vld [vmem:[%s1 + $0xb4] sm:$0xf]
    %v101 = vld [vmem:[%s1 + $0xb8] sm:$0xf]
    %v102 = vld [vmem:[%s1 + $0xbc] sm:$0xf]
    %v103 = vld [vmem:[%s1 + $0xc0] sm:$0xf]
    %v104 = vld [vmem:[%s1 + $0xc4] sm:$0xf]
    %v105 = vld [vmem:[%s1 + $0xc8] sm:$0xf]
    %v106 = vld [vmem:[%s1 + $0xcc] sm:$0xf]
    %v107 = vld [vmem:[%s1 + $0xd0] sm:$0xf]
    %v108 = vld [vmem:[%s1 + $0xd4] sm:$0xf]
    %v109 = vld [vmem:[%s1 + $0xd8] sm:$0xf]
    %v110 = vld [vmem:[%s1 + $0xdc] sm:$0xf]
    %v111 = vld [vmem:[%s1 + $0xe0] sm:$0xf]
    %v112 = vld [vmem:[%s1 + $0xe4] sm:$0xf]
    %v113 = vld [vmem:[%s1 + $0xe8] sm:$0xf]
    %v114 = vld [vmem:[%s1 + $0xec] sm:$0xf]
    %v115 = vld [vmem:[%s1 + $0xf0] sm:$0xf]
    %v116 = vld [vmem:[%s1 + $0xf4] sm:$0xf]
    %v117 = vld [vmem:[%s1 + $0xf8] sm:$0xf]
    %v118 = vld [vmem:[%s1 + $0xfc] sm:$0xf]
    %v119 = vld [vmem:[%s2] sm:$0x1]
    %v121 = vlaneseq
    %v122 = vshrl.u32 %v121, 7
    %v123 = vsub.s32 0, %v122
    %v124 = vrot.slane %v119, %v123
    %v190 = vunpack.c.l.b16 %v55
    %v191 = vunpack.c.l.b16 %v56
    %v192 = vunpack.c.l.b16 %v57
    %v193 = vunpack.c.l.b16 %v58
    %v194 = vunpack.c.l.b16 %v59
    %v195 = vunpack.c.l.b16 %v60
    %v196 = vunpack.c.l.b16 %v61
    %v197 = vunpack.c.l.b16 %v62
    %v198 = vunpack.c.l.b16 %v63
    %v199 = vunpack.c.l.b16 %v64
    %v200 = vunpack.c.l.b16 %v65
    %v201 = vunpack.c.l.b16 %v66
    %v202 = vunpack.c.l.b16 %v67
    %v203 = vunpack.c.l.b16 %v68
    %v204 = vunpack.c.l.b16 %v69
    %v205 = vunpack.c.l.b16 %v70
    %v206 = vunpack.c.l.b16 %v71
    %v207 = vunpack.c.l.b16 %v72
    %v208 = vunpack.c.l.b16 %v73
    %v209 = vunpack.c.l.b16 %v74
    %v210 = vunpack.c.l.b16 %v75
    %v211 = vunpack.c.l.b16 %v76
    %v212 = vunpack.c.l.b16 %v77
    %v213 = vunpack.c.l.b16 %v78
    %v214 = vunpack.c.l.b16 %v79
    %v215 = vunpack.c.l.b16 %v80
    %v216 = vunpack.c.l.b16 %v81
    %v217 = vunpack.c.l.b16 %v82
    %v218 = vunpack.c.l.b16 %v83
    %v219 = vunpack.c.l.b16 %v84
    %v220 = vunpack.c.l.b16 %v85
    %v221 = vunpack.c.l.b16 %v86
    %v222 = vunpack.c.l.b16 %v87
    %v223 = vunpack.c.l.b16 %v88
    %v224 = vunpack.c.l.b16 %v89
    %v225 = vunpack.c.l.b16 %v90
    %v226 = vunpack.c.l.b16 %v91
    %v227 = vunpack.c.l.b16 %v92
    %v228 = vunpack.c.l.b16 %v93
    %v229 = vunpack.c.l.b16 %v94
    %v230 = vunpack.c.l.b16 %v95
    %v231 = vunpack.c.l.b16 %v96
    %v232 = vunpack.c.l.b16 %v97
    %v233 = vunpack.c.l.b16 %v98
    %v234 = vunpack.c.l.b16 %v99
    %v235 = vunpack.c.l.b16 %v100
    %v236 = vunpack.c.l.b16 %v101
    %v237 = vunpack.c.l.b16 %v102
    %v238 = vunpack.c.l.b16 %v103
    %v239 = vunpack.c.l.b16 %v104
    %v240 = vunpack.c.l.b16 %v105
    %v241 = vunpack.c.l.b16 %v106
    %v242 = vunpack.c.l.b16 %v107
    %v243 = vunpack.c.l.b16 %v108
    %v244 = vunpack.c.l.b16 %v109
    %v245 = vunpack.c.l.b16 %v110
    %v246 = vunpack.c.l.b16 %v111
    %v247 = vunpack.c.l.b16 %v112
    %v248 = vunpack.c.l.b16 %v113
    %v249 = vunpack.c.l.b16 %v114
    %v250 = vunpack.c.l.b16 %v115
    %v251 = vunpack.c.l.b16 %v116
    %v252 = vunpack.c.l.b16 %v117
    %v253 = vunpack.c.l.b16 %v118
    %v254 = vpack.c.b16 %v191, %v190
    %v255 = vpack.c.b16 %v193, %v192
    %v256 = vpack.c.b16 %v195, %v194
    %v257 = vpack.c.b16 %v197, %v196
    %v258 = vpack.c.b16 %v199, %v198
    %v259 = vpack.c.b16 %v201, %v200
    %v260 = vpack.c.b16 %v203, %v202
    %v261 = vpack.c.b16 %v205, %v204
    %v262 = vpack.c.b16 %v207, %v206
    %v263 = vpack.c.b16 %v209, %v208
    %v264 = vpack.c.b16 %v211, %v210
    %v265 = vpack.c.b16 %v213, %v212
    %v266 = vpack.c.b16 %v215, %v214
    %v267 = vpack.c.b16 %v217, %v216
    %v268 = vpack.c.b16 %v219, %v218
    %v269 = vpack.c.b16 %v221, %v220
    %v270 = vpack.c.b16 %v223, %v222
    %v271 = vpack.c.b16 %v225, %v224
    %v272 = vpack.c.b16 %v227, %v226
    %v273 = vpack.c.b16 %v229, %v228
    %v274 = vpack.c.b16 %v231, %v230
    %v275 = vpack.c.b16 %v233, %v232
    %v276 = vpack.c.b16 %v235, %v234
    %v277 = vpack.c.b16 %v237, %v236
    %v278 = vpack.c.b16 %v239, %v238
    %v279 = vpack.c.b16 %v241, %v240
    %v280 = vpack.c.b16 %v243, %v242
    %v281 = vpack.c.b16 %v245, %v244
    %v282 = vpack.c.b16 %v247, %v246
    %v283 = vpack.c.b16 %v249, %v248
    %v284 = vpack.c.b16 %v251, %v250
    %v285 = vpack.c.b16 %v253, %v252
    %318 = vmatprep.subr.bf16.mxu0 0
    %319 = vmatpush1.bf16.msra.mxu0 %v254
    %320 = vmatprep.subr.bf16.mxu0 0
    %321 = vmatpush1.bf16.msra.mxu0 %v255
    %322 = vmatprep.subr.bf16.mxu0 0
    %323 = vmatpush1.bf16.msra.mxu0 %v256
    %324 = vmatprep.subr.bf16.mxu0 0
    %325 = vmatpush1.bf16.msra.mxu0 %v257
    %326 = vmatprep.subr.bf16.mxu0 0
    %327 = vmatpush1.bf16.msra.mxu0 %v258
    %328 = vmatprep.subr.bf16.mxu0 0
    %329 = vmatpush1.bf16.msra.mxu0 %v259
    %330 = vmatprep.subr.bf16.mxu0 0
    %331 = vmatpush1.bf16.msra.mxu0 %v260
    %332 = vmatprep.subr.bf16.mxu0 0
    %333 = vmatpush1.bf16.msra.mxu0 %v261
    %334 = vmatprep.subr.bf16.mxu0 0
    %335 = vmatpush1.bf16.msra.mxu0 %v262
    %336 = vmatprep.subr.bf16.mxu0 0
    %337 = vmatpush1.bf16.msra.mxu0 %v263
    %338 = vmatprep.subr.bf16.mxu0 0
    %339 = vmatpush1.bf16.msra.mxu0 %v264
    %340 = vmatprep.subr.bf16.mxu0 0
    %341 = vmatpush1.bf16.msra.mxu0 %v265
    %342 = vmatprep.subr.bf16.mxu0 0
    %343 = vmatpush1.bf16.msra.mxu0 %v266
    %344 = vmatprep.subr.bf16.mxu0 0
    %345 = vmatpush1.bf16.msra.mxu0 %v267
    %346 = vmatprep.subr.bf16.mxu0 0
    %347 = vmatpush1.bf16.msra.mxu0 %v268
    %348 = vmatprep.subr.bf16.mxu0 0
    %349 = vmatpush1.bf16.msra.mxu0 %v269
    %350 = vmatprep.mubr.bf16.mxu0 %v52
    %351 = vmatmul.mubr.bf16.gmra.mrb[0].mxu0 %v51
    %v352 = vpop.f32.mrb[0].mxu0
    %v353 = vadd.f32 %v124, %v352
    %v354 = vpop.f32.mrb[0].mxu0
    %v355 = vpop.f32.mrb[0].mxu0
    %v356 = vpop.f32.mrb[0].mxu0
    %357 = vdwg.mxu0
    %358 = vmatprep.subr.bf16.mxu0 0
    %359 = vmatpush1.bf16.msra.mxu0 %v270
    %360 = vmatprep.subr.bf16.mxu0 0
    %361 = vmatpush1.bf16.msra.mxu0 %v271
    %362 = vmatprep.subr.bf16.mxu0 0
    %363 = vmatpush1.bf16.msra.mxu0 %v272
    %364 = vmatprep.subr.bf16.mxu0 0
    %365 = vmatpush1.bf16.msra.mxu0 %v273
    %366 = vmatprep.subr.bf16.mxu0 0
    %367 = vmatpush1.bf16.msra.mxu0 %v274
    %368 = vmatprep.subr.bf16.mxu0 0
    %369 = vmatpush1.bf16.msra.mxu0 %v275
    %370 = vmatprep.subr.bf16.mxu0 0
    %371 = vmatpush1.bf16.msra.mxu0 %v276
    %372 = vmatprep.subr.bf16.mxu0 0
    %373 = vmatpush1.bf16.msra.mxu0 %v277
    %374 = vmatprep.subr.bf16.mxu0 0
    %375 = vmatpush1.bf16.msra.mxu0 %v278
    %376 = vmatprep.subr.bf16.mxu0 0
    %377 = vmatpush1.bf16.msra.mxu0 %v279
    %378 = vmatprep.subr.bf16.mxu0 0
    %379 = vmatpush1.bf16.msra.mxu0 %v280
    %380 = vmatprep.subr.bf16.mxu0 0
    %381 = vmatpush1.bf16.msra.mxu0 %v281
    %382 = vmatprep.subr.bf16.mxu0 0
    %383 = vmatpush1.bf16.msra.mxu0 %v282
    %384 = vmatprep.subr.bf16.mxu0 0
    %385 = vmatpush1.bf16.msra.mxu0 %v283
    %386 = vmatprep.subr.bf16.mxu0 0
    %387 = vmatpush1.bf16.msra.mxu0 %v284
    %388 = vmatprep.subr.bf16.mxu0 0
    %389 = vmatpush1.bf16.msra.mxu0 %v285
    %390 = vmatprep.mubr.bf16.mxu0 %v54
    %391 = vmatmul.mubr.bf16.gmra.mrb[0].mxu0 %v53
    %v392 = vpop.f32.mrb[0].mxu0
    %v393 = vadd.f32 %v353, %v392
    %v394 = vpop.f32.mrb[0].mxu0
    %v395 = vpop.f32.mrb[0].mxu0
    %v396 = vpop.f32.mrb[0].mxu0
    %397 = vdwg.mxu0
    %v398 = vmax.f32 %v393, 0.0
    %v399 = vpack.c.bf16 %v398, %v398
    %v400 = vld [vmem:[%s3] sm:$0xf]
    %v401 = vld [vmem:[%s3 + $0x4] sm:$0xf]
    %v402 = vld [vmem:[%s3 + $0x8] sm:$0xf]
    %v403 = vld [vmem:[%s3 + $0xc] sm:$0xf]
    %v404 = vld [vmem:[%s3 + $0x10] sm:$0xf]
    %v405 = vld [vmem:[%s3 + $0x14] sm:$0xf]
    %v406 = vld [vmem:[%s3 + $0x18] sm:$0xf]
    %v407 = vld [vmem:[%s3 + $0x1c] sm:$0xf]
    %v408 = vld [vmem:[%s3 + $0x20] sm:$0xf]
    %v409 = vld [vmem:[%s3 + $0x24] sm:$0xf]
    %v410 = vld [vmem:[%s3 + $0x28] sm:$0xf]
    %v411 = vld [vmem:[%s3 + $0x2c] sm:$0xf]
    %v412 = vld [vmem:[%s3 + $0x30] sm:$0xf]
    %v413 = vld [vmem:[%s3 + $0x34] sm:$0xf]
    %v414 = vld [vmem:[%s3 + $0x38] sm:$0xf]
    %v415 = vld [vmem:[%s3 + $0x3c] sm:$0xf]
    %v416 = vld [vmem:[%s4] sm:$0x1]
    %v418 = vlaneseq
    %v419 = vshrl.u32 %v418, 7
    %v420 = vsub.s32 0, %v419
    %v421 = vrot.slane %v416, %v420
    %v439 = vunpack.c.l.b16 %v400
    %v440 = vunpack.c.l.b16 %v401
    %v441 = vunpack.c.l.b16 %v402
    %v442 = vunpack.c.l.b16 %v403
    %v443 = vunpack.c.l.b16 %v404
    %v444 = vunpack.c.l.b16 %v405
    %v445 = vunpack.c.l.b16 %v406
    %v446 = vunpack.c.l.b16 %v407
    %v447 = vunpack.c.l.b16 %v408
    %v448 = vunpack.c.l.b16 %v409
    %v449 = vunpack.c.l.b16 %v410
    %v450 = vunpack.c.l.b16 %v411
    %v451 = vunpack.c.l.b16 %v412
    %v452 = vunpack.c.l.b16 %v413
    %v453 = vunpack.c.l.b16 %v414
    %v454 = vunpack.c.l.b16 %v415
    %v455 = vpack.c.b16 %v440, %v439
    %v456 = vpack.c.b16 %v442, %v441
    %v457 = vpack.c.b16 %v444, %v443
    %v458 = vpack.c.b16 %v446, %v445
    %v459 = vpack.c.b16 %v448, %v447
    %v460 = vpack.c.b16 %v450, %v449
    %v461 = vpack.c.b16 %v452, %v451
    %v462 = vpack.c.b16 %v454, %v453
    %471 = vmatprep.subr.bf16.mxu0 0
    %472 = vmatpush1.bf16.msra.mxu0 %v455
    %473 = vmatprep.subr.bf16.mxu0 0
    %474 = vmatpush1.bf16.msra.mxu0 %v456
    %475 = vmatprep.subr.bf16.mxu0 0
    %476 = vmatpush1.bf16.msra.mxu0 %v457
    %477 = vmatprep.subr.bf16.mxu0 0
    %478 = vmatpush1.bf16.msra.mxu0 %v458
    %479 = vmatprep.subr.bf16.mxu0 0
    %480 = vmatpush1.bf16.msra.mxu0 %v459
    %481 = vmatprep.subr.bf16.mxu0 0
    %482 = vmatpush1.bf16.msra.mxu0 %v460
    %483 = vmatprep.subr.bf16.mxu0 0
    %484 = vmatpush1.bf16.msra.mxu0 %v461
    %485 = vmatprep.subr.bf16.mxu0 0
    %486 = vmatpush1.bf16.msra.mxu0 %v462
    %487 = vmatprep.subr.bf16.mxu0 0
    %488 = vmatpush1.bf16.msra.mxu0 0
    %489 = vmatprep.subr.bf16.mxu0 0
    %490 = vmatpush1.bf16.msra.mxu0 0
    %491 = vmatprep.subr.bf16.mxu0 0
    %492 = vmatpush1.bf16.msra.mxu0 0
    %493 = vmatprep.subr.bf16.mxu0 0
    %494 = vmatpush1.bf16.msra.mxu0 0
    %495 = vmatprep.subr.bf16.mxu0 0
    %496 = vmatpush1.bf16.msra.mxu0 0
    %497 = vmatprep.subr.bf16.mxu0 0
    %498 = vmatpush1.bf16.msra.mxu0 0
    %499 = vmatprep.subr.bf16.mxu0 0
    %500 = vmatpush1.bf16.msra.mxu0 0
    %501 = vmatprep.subr.bf16.mxu0 0
    %502 = vmatpush1.bf16.msra.mxu0 0
    %503 = vmatprep.mubr.bf16.mxu0 0
    %504 = vmatmul.mubr.bf16.gmra.mrb[0].mxu0 %v399
    %v505 = vpop.f32.mrb[0].mxu0
    %v506 = vadd.f32 %v421, %v505
    %v507 = vpop.f32.mrb[0].mxu0
    %v508 = vpop.f32.mrb[0].mxu0
    %v509 = vpop.f32.mrb[0].mxu0
    %510 = vdwg.mxu0
    %v511 = vmax.f32 %v506, 0.0
    %v512 = vpack.c.bf16 %v511, %v511
    %v513 = vld [vmem:[%s5] sm:$0xf]
    %v514 = vld [vmem:[%s5 + $0x4] sm:$0xf]
    %v515 = vld [vmem:[%s5 + $0x8] sm:$0xf]
    %v516 = vld [vmem:[%s5 + $0xc] sm:$0xf]
    %v517 = vld [vmem:[%s5 + $0x10] sm:$0xf]
    %v518 = vld [vmem:[%s5 + $0x14] sm:$0xf]
    %v519 = vld [vmem:[%s5 + $0x18] sm:$0xf]
    %v520 = vld [vmem:[%s5 + $0x1c] sm:$0xf]
    %v521 = vld [vmem:[%s5 + $0x20] sm:$0xf]
    %v522 = vld [vmem:[%s5 + $0x24] sm:$0xf]
    %v523 = vld [vmem:[%s5 + $0x28] sm:$0xf]
    %v524 = vld [vmem:[%s5 + $0x2c] sm:$0xf]
    %v525 = vld [vmem:[%s5 + $0x30] sm:$0xf]
    %v526 = vld [vmem:[%s5 + $0x34] sm:$0xf]
    %v527 = vld [vmem:[%s5 + $0x38] sm:$0xf]
    %v528 = vld [vmem:[%s5 + $0x3c] sm:$0xf]
    %v529 = vld [vmem:[%s6] sm:$0x1]
    %v531 = vlaneseq
    %v532 = vshrl.u32 %v531, 7
    %v533 = vsub.s32 0, %v532
    %v534 = vrot.slane %v529, %v533
    %v552 = vunpack.c.l.b16 %v513
    %v553 = vunpack.c.l.b16 %v514
    %v554 = vunpack.c.l.b16 %v515
    %v555 = vunpack.c.l.b16 %v516
    %v556 = vunpack.c.l.b16 %v517
    %v557 = vunpack.c.l.b16 %v518
    %v558 = vunpack.c.l.b16 %v519
    %v559 = vunpack.c.l.b16 %v520
    %v560 = vunpack.c.l.b16 %v521
    %v561 = vunpack.c.l.b16 %v522
    %v562 = vunpack.c.l.b16 %v523
    %v563 = vunpack.c.l.b16 %v524
    %v564 = vunpack.c.l.b16 %v525
    %v565 = vunpack.c.l.b16 %v526
    %v566 = vunpack.c.l.b16 %v527
    %v567 = vunpack.c.l.b16 %v528
    %v568 = vpack.c.b16 %v553, %v552
    %v569 = vpack.c.b16 %v555, %v554
    %v570 = vpack.c.b16 %v557, %v556
    %v571 = vpack.c.b16 %v559, %v558
    %v572 = vpack.c.b16 %v561, %v560
    %v573 = vpack.c.b16 %v563, %v562
    %v574 = vpack.c.b16 %v565, %v564
    %v575 = vpack.c.b16 %v567, %v566
    %584 = vmatprep.subr.bf16.mxu0 0
    %585 = vmatpush1.bf16.msra.mxu0 %v568
    %586 = vmatprep.subr.bf16.mxu0 0
    %587 = vmatpush1.bf16.msra.mxu0 %v569
    %588 = vmatprep.subr.bf16.mxu0 0
    %589 = vmatpush1.bf16.msra.mxu0 %v570
    %590 = vmatprep.subr.bf16.mxu0 0
    %591 = vmatpush1.bf16.msra.mxu0 %v571
    %592 = vmatprep.subr.bf16.mxu0 0
    %593 = vmatpush1.bf16.msra.mxu0 %v572
    %594 = vmatprep.subr.bf16.mxu0 0
    %595 = vmatpush1.bf16.msra.mxu0 %v573
    %596 = vmatprep.subr.bf16.mxu0 0
    %597 = vmatpush1.bf16.msra.mxu0 %v574
    %598 = vmatprep.subr.bf16.mxu0 0
    %599 = vmatpush1.bf16.msra.mxu0 %v575
    %600 = vmatprep.subr.bf16.mxu0 0
    %601 = vmatpush1.bf16.msra.mxu0 0
    %602 = vmatprep.subr.bf16.mxu0 0
    %603 = vmatpush1.bf16.msra.mxu0 0
    %604 = vmatprep.subr.bf16.mxu0 0
    %605 = vmatpush1.bf16.msra.mxu0 0
    %606 = vmatprep.subr.bf16.mxu0 0
    %607 = vmatpush1.bf16.msra.mxu0 0
    %608 = vmatprep.subr.bf16.mxu0 0
    %609 = vmatpush1.bf16.msra.mxu0 0
    %610 = vmatprep.subr.bf16.mxu0 0
    %611 = vmatpush1.bf16.msra.mxu0 0
    %612 = vmatprep.subr.bf16.mxu0 0
    %613 = vmatpush1.bf16.msra.mxu0 0
    %614 = vmatprep.subr.bf16.mxu0 0
    %615 = vmatpush1.bf16.msra.mxu0 0
    %616 = vmatprep.mubr.bf16.mxu0 0
    %617 = vmatmul.mubr.bf16.gmra.mrb[0].mxu0 %v512
    %v618 = vpop.f32.mrb[0].mxu0
    %v619 = vadd.f32 %v534, %v618
    %v620 = vpop.f32.mrb[0].mxu0
    %v621 = vpop.f32.mrb[0].mxu0
    %v622 = vpop.f32.mrb[0].mxu0
    %623 = vdwg.mxu0
    %624 = vst [vmem:[#allocation2] sm:$0x3] %v619
    // Predicated region
    $region30: #{lenet_forward.3} parent=1 // pred_check
      _
    $region31: #{lenet_forward.3} parent=1 // pred_check_branch
      %626 = sbr.rel (0) target = $region33
    $region32: #{lenet_forward.3} parent=1 // pred_region
      %s628 = ssub.s32 32, 32
      %629 = vsyncadd [#allocation3], %s628
      %s631 = sshll.u32 [#allocation2], 4
      %s632 = int_to_ptr.vmem [resolvable:$true] %s631
      %634 = dma.vmem_to_hbm [thread:$0]  %s632, 32, %s7, [#allocation3]
    $region33: #{lenet_forward.3} parent=1 // pred_fallthru
      _
    // Predicated region
    $region34: #{lenet_forward.3} parent=1 // pred_check
      _
    $region35: #{lenet_forward.3} parent=1 // pred_check_branch
      %636 = sbr.rel (0) target = $region37
    $region36: #{lenet_forward.3} parent=1 // pred_region
      %637 = dma.done [#allocation3], 32
    $region37: #{lenet_forward.3} parent=1 // pred_fallthru
      _
    %638 = vsyncpa [#allocation3], 1

// kernel: lenet_forward.2
$region0: #{lenet_forward.2}
  #allocation0 [shape = 'u32[]', space=smem, size = 0x4, offset = 0x4, fixed_abs, tag = 'smem constant byte address 0x4 - core index']
  #allocation1 [shape = 'u32[144,128]{1,0:T(1,128)}', space=vmem, size = 0x12000, scoped, tag = 'internal scratch']
  #allocation2 [shape = 'bf16[16,892]{1,0:T(16,128)(2,1)}', space=vmem, size = 0x7000, scoped, tag = 'scratch operand']
  #allocation3 [shape = 'bf16[16,224]{1,0:T(16,128)(2,1)}', space=vmem, size = 0x2000, scoped, tag = 'scratch operand']
  #allocation4 [shape = 'bf16[16,154]{1,0:T(16,128)(2,1)}', space=vmem, size = 0x2000, scoped, tag = 'scratch operand']
  %s0 = inlined_call_operand.vmem [shape: bf16[2,16,1024], index: 0, kind: input, shape index: {}]
  %s1 = inlined_call_operand.vmem [shape: bf16[16,400], index: 1, kind: input, shape index: {}]
  %s2 = inlined_call_operand.vmem [shape: f32[16,1], index: 2, kind: input, shape index: {}]
  %s3 = inlined_call_operand.vmem [shape: bf16[16,400], index: 3, kind: input, shape index: {}]
  %s4 = inlined_call_operand.vmem [shape: f32[16,1], index: 4, kind: input, shape index: {}]
  %s5 = inlined_call_operand.vmem [shape: bf16[892,224], index: 5, kind: input, shape index: {}]
  %s6 = inlined_call_operand.vmem [shape: bf16[154,32], index: 6, kind: input, shape index: {}]
  %s7 = inlined_call_operand.vmem [shape: f32[32,32], index: 7, kind: output, shape index: {}]
  %s8 = sld [smem:[#allocation0]]
  $region61: #{lenet_forward.2} parent=0
    _
  %s10 = ssub.s32 1, %s8
  %s11 = scalar_select 0, %s10, %s8
  loop: start=0, step=1, limit=4
  $region2: #{lenet_forward.2} parent=0 // loop_pre_header
    _
  $region3: #{lenet_forward.2} parent=0 // loop_header
    %s13 = sphi 0, %s17
    %p14 = scmp.ge.s32.totalorder %s13, 4
    %s23 = sphi 0, %s25
    %s26 = sphi 0, %s23
    %s27 = sphi 0, %s26
    %s43 = sphi 0, %s27
    %s47 = sphi 0, %s47
    %s49 = sphi 0, %s47
    %s50 = sphi 0, %s49
    %s64 = sphi 0, %s50
    %s68 = sphi 0, %s68
    %s70 = sphi 0, %s68
    %s71 = sphi 0, %s70
    %s85 = sphi 0, %s71
    %s89 = sphi 0, %s89
    %s91 = sphi 0, %s89
    %s92 = sphi 0, %s91
    %s106 = sphi 0, %s92
    %s110 = sphi 0, %s110
    %s112 = sphi 0, %s110
    %s113 = sphi 0, %s112
    %s127 = sphi 0, %s113
    %s131 = sphi 0, %s131
    %s133 = sphi 0, %s131
    %s134 = sphi 0, %s133
    %s148 = sphi 0, %s134
    %s152 = sphi 0, %s152
    %s154 = sphi 0, %s152
    %s155 = sphi 0, %s154
    %s169 = sphi 0, %s155
    %s175 = sphi 0, %s177
    %s178 = sphi 0, %s175
    %s179 = sphi 0, %s178
    %s195 = sphi 0, %s179
  $region4: #{lenet_forward.2} parent=0 // loop_header_branch
    %16 = sbr.rel (%p14) target = $region8
  $region5: #{lenet_forward.2} parent=0 // loop_body
    %s18 = ssub.s32 %s13, 1
    %s19 = ssub.s32 %s13, 2
    %s20 = sadd.s32 %s13, 1
    %s21 = ssub.s32 %s13, %s20
    %p22 = scmp.eq.s32.totalorder %s21, 0
    %s24 = sadd.s32 %s23, 1
    %s25 = scalar_select %p22, %s23, %s24
    %p28 = pneg %p22
    %p29 = scmp.eq.s32.totalorder %s13, 1
    %p30 = por %p28, %p29
    %p31 = scmp.ne.s32.totalorder %s23, %s26
    %p32 = scmp.eq.s32.totalorder %s13, 0
    %p33 = por %p31, %p32
    %p34 = scmp.ne.s32.totalorder %s23, %s26
    %p35 = scmp.eq.s32.totalorder %s18, 1
    %p36 = por %p34, %p35
    %p37 = scmp.ne.s32.totalorder %s26, %s27
    %p38 = scmp.eq.s32.totalorder %s18, 0
    %p39 = por %p37, %p38
    %p40 = scmp.ne.s32.totalorder %s26, %s27
    %p41 = scmp.eq.s32.totalorder %s19, 1
    %p42 = por %p40, %p41
    %p44 = scmp.ne.s32.totalorder %s27, %s43
    %p45 = scmp.eq.s32.totalorder %s19, 0
    %p46 = por %p44, %p45
    %s48 = sadd.s32 %s47, 1
    %p51 = scmp.eq.s32.totalorder %s13, 1
    %p52 = scmp.ne.s32.totalorder %s47, %s49
    %p53 = scmp.eq.s32.totalorder %s13, 0
    %p54 = por %p52, %p53
    %p55 = scmp.ne.s32.totalorder %s47, %s49
    %p56 = scmp.eq.s32.totalorder %s18, 1
    %p57 = por %p55, %p56
    %p58 = scmp.ne.s32.totalorder %s49, %s50
    %p59 = scmp.eq.s32.totalorder %s18, 0
    %p60 = por %p58, %p59
    %p61 = scmp.ne.s32.totalorder %s49, %s50
    %p62 = scmp.eq.s32.totalorder %s19, 1
    %p63 = por %p61, %p62
    %p65 = scmp.ne.s32.totalorder %s50, %s64
    %p66 = scmp.eq.s32.totalorder %s19, 0
    %p67 = por %p65, %p66
    %s69 = sadd.s32 %s68, 1
    %p72 = scmp.eq.s32.totalorder %s13, 1
    %p73 = scmp.ne.s32.totalorder %s68, %s70
    %p74 = scmp.eq.s32.totalorder %s13, 0
    %p75 = por %p73, %p74
    %p76 = scmp.ne.s32.totalorder %s68, %s70
    %p77 = scmp.eq.s32.totalorder %s18, 1
    %p78 = por %p76, %p77
    %p79 = scmp.ne.s32.totalorder %s70, %s71
    %p80 = scmp.eq.s32.totalorder %s18, 0
    %p81 = por %p79, %p80
    %p82 = scmp.ne.s32.totalorder %s70, %s71
    %p83 = scmp.eq.s32.totalorder %s19, 1
    %p84 = por %p82, %p83
    %p86 = scmp.ne.s32.totalorder %s71, %s85
    %p87 = scmp.eq.s32.totalorder %s19, 0
    %p88 = por %p86, %p87
    %s90 = sadd.s32 %s89, 1
    %p93 = scmp.eq.s32.totalorder %s13, 1
    %p94 = scmp.ne.s32.totalorder %s89, %s91
    %p95 = scmp.eq.s32.totalorder %s13, 0
    %p96 = por %p94, %p95
    %p97 = scmp.ne.s32.totalorder %s89, %s91
    %p98 = scmp.eq.s32.totalorder %s18, 1
    %p99 = por %p97, %p98
    %p100 = scmp.ne.s32.totalorder %s91, %s92
    %p101 = scmp.eq.s32.totalorder %s18, 0
    %p102 = por %p100, %p101
    %p103 = scmp.ne.s32.totalorder %s91, %s92
    %p104 = scmp.eq.s32.totalorder %s19, 1
    %p105 = por %p103, %p104
    %p107 = scmp.ne.s32.totalorder %s92, %s106
    %p108 = scmp.eq.s32.totalorder %s19, 0
    %p109 = por %p107, %p108
    %s111 = sadd.s32 %s110, 1
    %p114 = scmp.eq.s32.totalorder %s13, 1
    %p115 = scmp.ne.s32.totalorder %s110, %s112
    %p116 = scmp.eq.s32.totalorder %s13, 0
    %p117 = por %p115, %p116
    %p118 = scmp.ne.s32.totalorder %s110, %s112
    %p119 = scmp.eq.s32.totalorder %s18, 1
    %p120 = por %p118, %p119
    %p121 = scmp.ne.s32.totalorder %s112, %s113
    %p122 = scmp.eq.s32.totalorder %s18, 0
    %p123 = por %p121, %p122
    %p124 = scmp.ne.s32.totalorder %s112, %s113
    %p125 = scmp.eq.s32.totalorder %s19, 1
    %p126 = por %p124, %p125
    %p128 = scmp.ne.s32.totalorder %s113, %s127
    %p129 = scmp.eq.s32.totalorder %s19, 0
    %p130 = por %p128, %p129
    %s132 = sadd.s32 %s131, 1
    %p135 = scmp.eq.s32.totalorder %s13, 1
    %p136 = scmp.ne.s32.totalorder %s131, %s133
    %p137 = scmp.eq.s32.totalorder %s13, 0
    %p138 = por %p136, %p137
    %p139 = scmp.ne.s32.totalorder %s131, %s133
    %p140 = scmp.eq.s32.totalorder %s18, 1
    %p141 = por %p139, %p140
    %p142 = scmp.ne.s32.totalorder %s133, %s134
    %p143 = scmp.eq.s32.totalorder %s18, 0
    %p144 = por %p142, %p143
    %p145 = scmp.ne.s32.totalorder %s133, %s134
    %p146 = scmp.eq.s32.totalorder %s19, 1
    %p147 = por %p145, %p146
    %p149 = scmp.ne.s32.totalorder %s134, %s148
    %p150 = scmp.eq.s32.totalorder %s19, 0
    %p151 = por %p149, %p150
    %s153 = sadd.s32 %s152, 1
    %p156 = scmp.eq.s32.totalorder %s13, 1
    %p157 = scmp.ne.s32.totalorder %s152, %s154
    %p158 = scmp.eq.s32.totalorder %s13, 0
    %p159 = por %p157, %p158
    %p160 = scmp.ne.s32.totalorder %s152, %s154
    %p161 = scmp.eq.s32.totalorder %s18, 1
    %p162 = por %p160, %p161
    %p163 = scmp.ne.s32.totalorder %s154, %s155
    %p164 = scmp.eq.s32.totalorder %s18, 0
    %p165 = por %p163, %p164
    %p166 = scmp.ne.s32.totalorder %s154, %s155
    %p167 = scmp.eq.s32.totalorder %s19, 1
    %p168 = por %p166, %p167
    %p170 = scmp.ne.s32.totalorder %s155, %s169
    %p171 = scmp.eq.s32.totalorder %s19, 0
    %p172 = por %p170, %p171
    %s173 = ssub.s32 %s13, %s20
    %p174 = scmp.eq.s32.totalorder %s173, 0
    %s176 = sadd.s32 %s175, 1
    %s177 = scalar_select %p174, %s175, %s176
    %p180 = pneg %p174
    %p181 = scmp.eq.s32.totalorder %s13, 1
    %p182 = por %p180, %p181
    %p183 = scmp.ne.s32.totalorder %s175, %s178
    %p184 = scmp.eq.s32.totalorder %s13, 0
    %p185 = por %p183, %p184
    %p186 = scmp.ne.s32.totalorder %s175, %s178
    %p187 = scmp.eq.s32.totalorder %s18, 1
    %p188 = por %p186, %p187
    %p189 = scmp.ne.s32.totalorder %s178, %s179
    %p190 = scmp.eq.s32.totalorder %s18, 0
    %p191 = por %p189, %p190
    %p192 = scmp.ne.s32.totalorder %s178, %s179
    %p193 = scmp.eq.s32.totalorder %s19, 1
    %p194 = por %p192, %p193
    %p196 = scmp.ne.s32.totalorder %s179, %s195
    %p197 = scmp.eq.s32.totalorder %s19, 0
    %p198 = por %p196, %p197
    %p199 = scmp.le.s32.totalorder 1, %s13
    %p200 = scmp.lt.s32.totalorder %s13, 3
    %p201 = pnand %p199, %p200
    %p202 = pneg %p201
    // Predicated region
    $region9: #{lenet_forward.2} parent=5 // pred_check
      _
    $region10: #{lenet_forward.2} parent=5 // pred_check_branch
      %204 = sbr.rel (%p201) target = $region12
    $region11: #{lenet_forward.2} parent=5 // pred_region
      %s205 = ssub.s32 %s13, 1
      // Predicated region
      $region13: #{lenet_forward.2} parent=11 // pred_check
        %p206 = pneg %p60
      $region14: #{lenet_forward.2} parent=11 // pred_check_branch
        %208 = sbr.rel (%p206) target = $region16
      $region15: #{lenet_forward.2} parent=11 // pred_region
        _
      $region16: #{lenet_forward.2} parent=11 // pred_fallthru
        _
      // Predicated region
      $region17: #{lenet_forward.2} parent=11 // pred_check
        %p209 = pneg %p81
      $region18: #{lenet_forward.2} parent=11 // pred_check_branch
        %211 = sbr.rel (%p209) target = $region20
      $region19: #{lenet_forward.2} parent=11 // pred_region
        _
      $region20: #{lenet_forward.2} parent=11 // pred_fallthru
        _
      // Predicated region
      $region21: #{lenet_forward.2} parent=11 // pred_check
        %p212 = pneg %p102
      $region22: #{lenet_forward.2} parent=11 // pred_check_branch
        %214 = sbr.rel (%p212) target = $region24
      $region23: #{lenet_forward.2} parent=11 // pred_region
        _
      $region24: #{lenet_forward.2} parent=11 // pred_fallthru
        _
      // Predicated region
      $region25: #{lenet_forward.2} parent=11 // pred_check
        %p215 = pneg %p123
      $region26: #{lenet_forward.2} parent=11 // pred_check_branch
        %217 = sbr.rel (%p215) target = $region28
      $region27: #{lenet_forward.2} parent=11 // pred_region
        _
      $region28: #{lenet_forward.2} parent=11 // pred_fallthru
        _
      // Predicated region
      $region29: #{lenet_forward.2} parent=11 // pred_check
        %p218 = pneg %p144
      $region30: #{lenet_forward.2} parent=11 // pred_check_branch
        %220 = sbr.rel (%p218) target = $region32
      $region31: #{lenet_forward.2} parent=11 // pred_region
        _
      $region32: #{lenet_forward.2} parent=11 // pred_fallthru
        _
      // Predicated region
      $region33: #{lenet_forward.2} parent=11 // pred_check
        %p221 = pneg %p165
      $region34: #{lenet_forward.2} parent=11 // pred_check_branch
        %223 = sbr.rel (%p221) target = $region36
      $region35: #{lenet_forward.2} parent=11 // pred_region
        _
      $region36: #{lenet_forward.2} parent=11 // pred_fallthru
        _
    $region12: #{lenet_forward.2} parent=5 // pred_fallthru
      _
    %p224 = scmp.lt.s32.totalorder %s13, 2
    // Predicated region
    $region37: #{lenet_forward.2} parent=5 // pred_check
      %p225 = pneg %p224
    $region38: #{lenet_forward.2} parent=5 // pred_check_branch
      %227 = sbr.rel (%p225) target = $region40
    $region39: #{lenet_forward.2} parent=5 // pred_region
      // Predicated region
      $region41: #{lenet_forward.2} parent=39 // pred_check
        %p228 = pneg %p33
      $region42: #{lenet_forward.2} parent=39 // pred_check_branch
        %230 = sbr.rel (%p228) target = $region44
      $region43: #{lenet_forward.2} parent=39 // pred_region
        %p231 = scmp.lt.s32.totalorder %s13, 1
        %s232 = scalar_select %p231, %s13, 1
        %s233 = smul.addr %s232, 16
        %s234 = smul.addr %s233, 4
        %s235 = scalar_lea.vmem %s0, %s234
      $region44: #{lenet_forward.2} parent=39 // pred_fallthru
        _
    $region40: #{lenet_forward.2} parent=5 // pred_fallthru
      _
    %p236 = scmp.le.s32.totalorder 1, %s13
    %p237 = scmp.lt.s32.totalorder %s13, 3
    %p238 = pnand %p236, %p237
    %p239 = pneg %p238
    // Predicated region
    $region45: #{lenet_forward.2} parent=5 // pred_check
      _
    $region46: #{lenet_forward.2} parent=5 // pred_check_branch
      %241 = sbr.rel (%p238) target = $region48
    $region47: #{lenet_forward.2} parent=5 // pred_region
      %s242 = ssub.s32 %s13, 1
      %p243 = scmp.lt.s32.totalorder %s18, 1
      %s244 = scalar_select %p243, %s18, 1
      %s245 = smul.addr %s244, 16
      %s246 = smul.addr %s245, 4
      %s247 = scalar_lea.vmem %s0, %s246
      %p248 = pneg %p39
      %p249 = pneg %p36
      %p250 = pneg %p60
      %p251 = pneg %p57
      %p252 = pneg %p81
      %p253 = pneg %p78
      %p254 = pneg %p102
      %p255 = pneg %p99
      %p256 = pneg %p123
      %p257 = pneg %p120
      %p258 = pneg %p144
      %p259 = pneg %p141
      %p260 = pneg %p165
      %p261 = pneg %p162
      %p262 = pneg %p191
      %p263 = pneg %p188
      %s264 = smul.u32 2, %s18
      %p265 = scmp.lt.s32.totalorder %s264, 3
      %s266 = scalar_select %p265, %s264, 3
      %s267 = smul.addr %s266, 8
      %s268 = scalar_lea.vmem %s7, %s267
      %p269 = scmp.lt.s32.totalorder %s18, 1
      %s270 = scalar_select %p269, %s18, 1
      %s271 = smul.addr %s270, 16
      %s272 = smul.addr %s271, 4
      %s273 = scalar_lea.vmem %s0, %s272
      %s274 = smul.u32 2, %s18
      %p275 = scmp.lt.s32.totalorder %s274, 3
      %s276 = scalar_select %p275, %s274, 3
      %s277 = smul.addr %s276, 8
      %s278 = scalar_lea.vmem %s7, %s277
      %s279 = smul.u32 2, %s18
      %v281 = vld [vmem:[%s1] sm:$0xff]
      %v282 = vld [vmem:[%s1 + $0x8] sm:$0xff]
      %v283 = vld [vmem:[%s1 + $0x10] sm:$0xff]
      %v284 = vld [vmem:[%s1 + $0x18] sm:$0xff]
      %v285 = vld [vmem:[%s2] sm:$0xff]
      %v286 = vld [vmem:[%s2 + $0x8] sm:$0xff]
      %v287 = vld [vmem:[%s273] sm:$0xff]
      %v288 = vld [vmem:[%s273 + $0x8] sm:$0xff]
      %v289 = vld [vmem:[%s273 + $0x10] sm:$0xff]
      %v290 = vld [vmem:[%s273 + $0x18] sm:$0xff]
      %v291 = vld [vmem:[%s273 + $0x20] sm:$0xff]
      %v292 = vld [vmem:[%s273 + $0x28] sm:$0xff]
      %v293 = vld [vmem:[%s273 + $0x30] sm:$0xff]
      %v294 = vld [vmem:[%s273 + $0x38] sm:$0xff]
      %v303 = vunpack.c.l.b16 %v287
      %v304 = vunpack.c.h.b16 %v287
      %v305 = vunpack.c.l.b16 %v288
      %v306 = vunpack.c.h.b16 %v288
      %v307 = vunpack.c.l.b16 %v289
      %v308 = vunpack.c.h.b16 %v289
      %v309 = vunpack.c.l.b16 %v290
      %v310 = vunpack.c.l.b16 %v291
      %v311 = vunpack.c.h.b16 %v291
      %v312 = vunpack.c.l.b16 %v292
      %v313 = vunpack.c.h.b16 %v292
      %v314 = vunpack.c.l.b16 %v293
      %v315 = vunpack.c.h.b16 %v293
      %v316 = vunpack.c.l.b16 %v294
      %v317 = vpack.c.b16 %v310, %v303
      %v318 = vpack.c.b16 %v311, %v304
      %v319 = vpack.c.b16 %v312, %v305
      %v320 = vpack.c.b16 %v313, %v306
      %v321 = vpack.c.b16 %v314, %v307
      %v322 = vpack.c.b16 %v315, %v308
      %v323 = vpack.c.b16 %v316, %v309
      %331 = vrot.lane.b32.xlu0 %v317, 127
      %v332 = vpop.permute.xlu0 %331
      %333 = vrot.lane.b32.xlu0 %v318, 127
      %v334 = vpop.permute.xlu0 %333
      %335 = vrot.lane.b32.xlu0 %v319, 127
      %v336 = vpop.permute.xlu0 %335
      %337 = vrot.lane.b32.xlu0 %v320, 127
      %v338 = vpop.permute.xlu0 %337
      %339 = vrot.lane.b32.xlu0 %v321, 127
      %v340 = vpop.permute.xlu0 %339
      %341 = vrot.lane.b32.xlu0 %v322, 127
      %v342 = vpop.permute.xlu0 %341
      %343 = vrot.lane.b32.xlu0 %v323, 127
      %v344 = vpop.permute.xlu0 %343
      %vm345 = vcmask 1039360
      %v346 = vsel %vm345, %v332, %v334
      %v347 = vsel %vm345, %v334, %v336
      %v348 = vsel %vm345, %v336, %v338
      %v349 = vsel %vm345, %v338, %v340
      %v350 = vsel %vm345, %v340, %v342
      %v351 = vsel %vm345, %v342, %v344
      %359 = vrot.lane.b32.xlu0 %v317, 126
      %v360 = vpop.permute.xlu0 %359
      %361 = vrot.lane.b32.xlu0 %v318, 126
      %v362 = vpop.permute.xlu0 %361
      %363 = vrot.lane.b32.xlu0 %v319, 126
      %v364 = vpop.permute.xlu0 %363
      %365 = vrot.lane.b32.xlu0 %v320, 126
      %v366 = vpop.permute.xlu0 %365
      %367 = vrot.lane.b32.xlu0 %v321, 126
      %v368 = vpop.permute.xlu0 %367
      %369 = vrot.lane.b32.xlu0 %v322, 126
      %v370 = vpop.permute.xlu0 %369
      %371 = vrot.lane.b32.xlu0 %v323, 126
      %v372 = vpop.permute.xlu0 %371
      %vm373 = vcmask 1031168
      %v374 = vsel %vm373, %v360, %v362
      %v375 = vsel %vm373, %v362, %v364
      %v376 = vsel %vm373, %v364, %v366
      %v377 = vsel %vm373, %v366, %v368
      %v378 = vsel %vm373, %v368, %v370
      %v379 = vsel %vm373, %v370, %v372
      %387 = vrot.lane.b32.xlu0 %v317, 125
      %v388 = vpop.permute.xlu0 %387
      %389 = vrot.lane.b32.xlu0 %v318, 125
      %v390 = vpop.permute.xlu0 %389
      %391 = vrot.lane.b32.xlu0 %v319, 125
      %v392 = vpop.permute.xlu0 %391
      %393 = vrot.lane.b32.xlu0 %v320, 125
      %v394 = vpop.permute.xlu0 %393
      %395 = vrot.lane.b32.xlu0 %v321, 125
      %v396 = vpop.permute.xlu0 %395
      %397 = vrot.lane.b32.xlu0 %v322, 125
      %v398 = vpop.permute.xlu0 %397
      %399 = vrot.lane.b32.xlu0 %v323, 125
      %v400 = vpop.permute.xlu0 %399
      %vm401 = vcmask 1022976
      %v402 = vsel %vm401, %v388, %v390
      %v403 = vsel %vm401, %v390, %v392
      %v404 = vsel %vm401, %v392, %v394
      %v405 = vsel %vm401, %v394, %v396
      %v406 = vsel %vm401, %v396, %v398
      %v407 = vsel %vm401, %v398, %v400
      %415 = vrot.lane.b32.xlu0 %v317, 124
      %v416 = vpop.permute.xlu0 %415
      %417 = vrot.lane.b32.xlu0 %v318, 124
      %v418 = vpop.permute.xlu0 %417
      %419 = vrot.lane.b32.xlu0 %v319, 124
      %v420 = vpop.permute.xlu0 %419
      %421 = vrot.lane.b32.xlu0 %v320, 124
      %v422 = vpop.permute.xlu0 %421
      %423 = vrot.lane.b32.xlu0 %v321, 124
      %v424 = vpop.permute.xlu0 %423
      %425 = vrot.lane.b32.xlu0 %v322, 124
      %v426 = vpop.permute.xlu0 %425
      %427 = vrot.lane.b32.xlu0 %v323, 124
      %v428 = vpop.permute.xlu0 %427
      %vm429 = vcmask 1014784
      %v430 = vsel %vm429, %v416, %v418
      %v431 = vsel %vm429, %v418, %v420
      %v432 = vsel %vm429, %v420, %v422
      %v433 = vsel %vm429, %v422, %v424
      %v434 = vsel %vm429, %v424, %v426
      %v435 = vsel %vm429, %v426, %v428
      %v443 = vunpack.c.h.b16 %v290
      %v444 = vunpack.c.h.b16 %v294
      %v445 = vpack.c.b16 %v444, %v443
      %446 = vrot.lane.b32.xlu0 %v317, 96
      %v447 = vpop.permute.xlu0 %446
      %448 = vrot.lane.b32.xlu0 %v318, 96
      %v449 = vpop.permute.xlu0 %448
      %450 = vrot.lane.b32.xlu0 %v319, 96
      %v451 = vpop.permute.xlu0 %450
      %452 = vrot.lane.b32.xlu0 %v320, 96
      %v453 = vpop.permute.xlu0 %452
      %454 = vrot.lane.b32.xlu0 %v321, 96
      %v455 = vpop.permute.xlu0 %454
      %456 = vrot.lane.b32.xlu0 %v322, 96
      %v457 = vpop.permute.xlu0 %456
      %458 = vrot.lane.b32.xlu0 %v323, 96
      %v459 = vpop.permute.xlu0 %458
      %460 = vrot.lane.b32.xlu0 %v445, 96
      %v461 = vpop.permute.xlu0 %460
      %vm462 = vcmask 785408
      %v463 = vsel %vm462, %v447, %v449
      %v464 = vsel %vm462, %v449, %v451
      %v465 = vsel %vm462, %v451, %v453
      %v466 = vsel %vm462, %v453, %v455
      %v467 = vsel %vm462, %v455, %v457
      %v468 = vsel %vm462, %v457, %v459
      %v469 = vsel %vm462, %v459, %v461
      %477 = vrot.lane.b32.xlu0 %v317, 95
      %v478 = vpop.permute.xlu0 %477
      %479 = vrot.lane.b32.xlu0 %v318, 95
      %v480 = vpop.permute.xlu0 %479
      %481 = vrot.lane.b32.xlu0 %v319, 95
      %v482 = vpop.permute.xlu0 %481
      %483 = vrot.lane.b32.xlu0 %v320, 95
      %v484 = vpop.permute.xlu0 %483
      %485 = vrot.lane.b32.xlu0 %v321, 95
      %v486 = vpop.permute.xlu0 %485
      %487 = vrot.lane.b32.xlu0 %v322, 95
      %v488 = vpop.permute.xlu0 %487
      %489 = vrot.lane.b32.xlu0 %v323, 95
      %v490 = vpop.permute.xlu0 %489
      %491 = vrot.lane.b32.xlu0 %v445, 95
      %v492 = vpop.permute.xlu0 %491
      %vm493 = vcmask 777216
      %v494 = vsel %vm493, %v478, %v480
      %v495 = vsel %vm493, %v480, %v482
      %v496 = vsel %vm493, %v482, %v484
      %v497 = vsel %vm493, %v484, %v486
      %v498 = vsel %vm493, %v486, %v488
      %v499 = vsel %vm493, %v488, %v490
      %v500 = vsel %vm493, %v490, %v492
      %508 = vrot.lane.b32.xlu0 %v317, 94
      %v509 = vpop.permute.xlu0 %508
      %510 = vrot.lane.b32.xlu0 %v318, 94
      %v511 = vpop.permute.xlu0 %510
      %512 = vrot.lane.b32.xlu0 %v319, 94
      %v513 = vpop.permute.xlu0 %512
      %514 = vrot.lane.b32.xlu0 %v320, 94
      %v515 = vpop.permute.xlu0 %514
      %516 = vrot.lane.b32.xlu0 %v321, 94
      %v517 = vpop.permute.xlu0 %516
      %518 = vrot.lane.b32.xlu0 %v322, 94
      %v519 = vpop.permute.xlu0 %518
      %520 = vrot.lane.b32.xlu0 %v323, 94
      %v521 = vpop.permute.xlu0 %520
      %522 = vrot.lane.b32.xlu0 %v445, 94
      %v523 = vpop.permute.xlu0 %522
      %vm524 = vcmask 769024
      %v525 = vsel %vm524, %v509, %v511
      %v526 = vsel %vm524, %v511, %v513
      %v527 = vsel %vm524, %v513, %v515
      %v528 = vsel %vm524, %v515, %v517
      %v529 = vsel %vm524, %v517, %v519
      %v530 = vsel %vm524, %v519, %v521
      %v531 = vsel %vm524, %v521, %v523
      %539 = vrot.lane.b32.xlu0 %v317, 93
      %v540 = vpop.permute.xlu0 %539
      %541 = vrot.lane.b32.xlu0 %v318, 93
      %v542 = vpop.permute.xlu0 %541
      %543 = vrot.lane.b32.xlu0 %v319, 93
      %v544 = vpop.permute.xlu0 %543
      %545 = vrot.lane.b32.xlu0 %v320, 93
      %v546 = vpop.permute.xlu0 %545
      %547 = vrot.lane.b32.xlu0 %v321, 93
      %v548 = vpop.permute.xlu0 %547
      %549 = vrot.lane.b32.xlu0 %v322, 93
      %v550 = vpop.permute.xlu0 %549
      %551 = vrot.lane.b32.xlu0 %v323, 93
      %v552 = vpop.permute.xlu0 %551
      %553 = vrot.lane.b32.xlu0 %v445, 93
      %v554 = vpop.permute.xlu0 %553
      %vm555 = vcmask 760832
      %v556 = vsel %vm555, %v540, %v542
      %v557 = vsel %vm555, %v542, %v544
      %v558 = vsel %vm555, %v544, %v546
      %v559 = vsel %vm555, %v546, %v548
      %v560 = vsel %vm555, %v548, %v550
      %v561 = vsel %vm555, %v550, %v552
      %v562 = vsel %vm555, %v552, %v554
      %570 = vrot.lane.b32.xlu0 %v317, 92
      %v571 = vpop.permute.xlu0 %570
      %572 = vrot.lane.b32.xlu0 %v318, 92
      %v573 = vpop.permute.xlu0 %572
      %574 = vrot.lane.b32.xlu0 %v319, 92
      %v575 = vpop.permute.xlu0 %574
      %576 = vrot.lane.b32.xlu0 %v320, 92
      %v577 = vpop.permute.xlu0 %576
      %578 = vrot.lane.b32.xlu0 %v321, 92
      %v579 = vpop.permute.xlu0 %578
      %580 = vrot.lane.b32.xlu0 %v322, 92
      %v581 = vpop.permute.xlu0 %580
      %582 = vrot.lane.b32.xlu0 %v323, 92
      %v583 = vpop.permute.xlu0 %582
      %584 = vrot.lane.b32.xlu0 %v445, 92
      %v585 = vpop.permute.xlu0 %584
      %vm586 = vcmask 752640
      %v587 = vsel %vm586, %v571, %v573
      %v588 = vsel %vm586, %v573, %v575
      %v589 = vsel %vm586, %v575, %v577
      %v590 = vsel %vm586, %v577, %v579
      %v591 = vsel %vm586, %v579, %v581
      %v592 = vsel %vm586, %v581, %v583
      %v593 = vsel %vm586, %v583, %v585
      %601 = vrot.lane.b32.xlu0 %v317, 64
      %v602 = vpop.permute.xlu0 %601
      %603 = vrot.lane.b32.xlu0 %v318, 64
      %v604 = vpop.permute.xlu0 %603
      %605 = vrot.lane.b32.xlu0 %v319, 64
      %v606 = vpop.permute.xlu0 %605
      %607 = vrot.lane.b32.xlu0 %v320, 64
      %v608 = vpop.permute.xlu0 %607
      %609 = vrot.lane.b32.xlu0 %v321, 64
      %v610 = vpop.permute.xlu0 %609
      %611 = vrot.lane.b32.xlu0 %v322, 64
      %v612 = vpop.permute.xlu0 %611
      %613 = vrot.lane.b32.xlu0 %v323, 64
      %v614 = vpop.permute.xlu0 %613
      %615 = vrot.lane.b32.xlu0 %v445, 64
      %v616 = vpop.permute.xlu0 %615
      %vm617 = vcmask 523264
      %v618 = vsel %vm617, %v602, %v604
      %v619 = vsel %vm617, %v604, %v606
      %v620 = vsel %vm617, %v606, %v608
      %v621 = vsel %vm617, %v608, %v610
      %v622 = vsel %vm617, %v610, %v612
      %v623 = vsel %vm617, %v612, %v614
      %v624 = vsel %vm617, %v614, %v616
      %632 = vrot.lane.b32.xlu0 %v317, 63
      %v633 = vpop.permute.xlu0 %632
      %634 = vrot.lane.b32.xlu0 %v318, 63
      %v635 = vpop.permute.xlu0 %634
      %636 = vrot.lane.b32.xlu0 %v319, 63
      %v637 = vpop.permute.xlu0 %636
      %638 = vrot.lane.b32.xlu0 %v320, 63
      %v639 = vpop.permute.xlu0 %638
      %640 = vrot.lane.b32.xlu0 %v321, 63
      %v641 = vpop.permute.xlu0 %640
      %642 = vrot.lane.b32.xlu0 %v322, 63
      %v643 = vpop.permute.xlu0 %642
      %644 = vrot.lane.b32.xlu0 %v323, 63
      %v645 = vpop.permute.xlu0 %644
      %646 = vrot.lane.b32.xlu0 %v445, 63
      %v647 = vpop.permute.xlu0 %646
      %vm648 = vcmask 515072
      %v649 = vsel %vm648, %v633, %v635
      %v650 = vsel %vm648, %v635, %v637
      %v651 = vsel %vm648, %v637, %v639
      %v652 = vsel %vm648, %v639, %v641
      %v653 = vsel %vm648, %v641, %v643
      %v654 = vsel %vm648, %v643, %v645
      %v655 = vsel %vm648, %v645, %v647
      %663 = vrot.lane.b32.xlu0 %v317, 62
      %v664 = vpop.permute.xlu0 %663
      %665 = vrot.lane.b32.xlu0 %v318, 62
      %v666 = vpop.permute.xlu0 %665
      %667 = vrot.lane.b32.xlu0 %v319, 62
      %v668 = vpop.permute.xlu0 %667
      %669 = vrot.lane.b32.xlu0 %v320, 62
      %v670 = vpop.permute.xlu0 %669
      %671 = vrot.lane.b32.xlu0 %v321, 62
      %v672 = vpop.permute.xlu0 %671
      %673 = vrot.lane.b32.xlu0 %v322, 62
      %v674 = vpop.permute.xlu0 %673
      %675 = vrot.lane.b32.xlu0 %v323, 62
      %v676 = vpop.permute.xlu0 %675
      %677 = vrot.lane.b32.xlu0 %v445, 62
      %v678 = vpop.permute.xlu0 %677
      %vm679 = vcmask 506880
      %v680 = vsel %vm679, %v664, %v666
      %v681 = vsel %vm679, %v666, %v668
      %v682 = vsel %vm679, %v668, %v670
      %v683 = vsel %vm679, %v670, %v672
      %v684 = vsel %vm679, %v672, %v674
      %v685 = vsel %vm679, %v674, %v676
      %v686 = vsel %vm679, %v676, %v678
      %694 = vrot.lane.b32.xlu0 %v317, 61
      %v695 = vpop.permute.xlu0 %694
      %696 = vrot.lane.b32.xlu0 %v318, 61
      %v697 = vpop.permute.xlu0 %696
      %698 = vrot.lane.b32.xlu0 %v319, 61
      %v699 = vpop.permute.xlu0 %698
      %700 = vrot.lane.b32.xlu0 %v320, 61
      %v701 = vpop.permute.xlu0 %700
      %702 = vrot.lane.b32.xlu0 %v321, 61
      %v703 = vpop.permute.xlu0 %702
      %704 = vrot.lane.b32.xlu0 %v322, 61
      %v705 = vpop.permute.xlu0 %704
      %706 = vrot.lane.b32.xlu0 %v323, 61
      %v707 = vpop.permute.xlu0 %706
      %708 = vrot.lane.b32.xlu0 %v445, 61
      %v709 = vpop.permute.xlu0 %708
      %vm710 = vcmask 498688
      %v711 = vsel %vm710, %v695, %v697
      %v712 = vsel %vm710, %v697, %v699
      %v713 = vsel %vm710, %v699, %v701
      %v714 = vsel %vm710, %v701, %v703
      %v715 = vsel %vm710, %v703, %v705
      %v716 = vsel %vm710, %v705, %v707
      %v717 = vsel %vm710, %v707, %v709
      %725 = vrot.lane.b32.xlu0 %v317, 60
      %v726 = vpop.permute.xlu0 %725
      %727 = vrot.lane.b32.xlu0 %v318, 60
      %v728 = vpop.permute.xlu0 %727
      %729 = vrot.lane.b32.xlu0 %v319, 60
      %v730 = vpop.permute.xlu0 %729
      %731 = vrot.lane.b32.xlu0 %v320, 60
      %v732 = vpop.permute.xlu0 %731
      %733 = vrot.lane.b32.xlu0 %v321, 60
      %v734 = vpop.permute.xlu0 %733
      %735 = vrot.lane.b32.xlu0 %v322, 60
      %v736 = vpop.permute.xlu0 %735
      %737 = vrot.lane.b32.xlu0 %v323, 60
      %v738 = vpop.permute.xlu0 %737
      %739 = vrot.lane.b32.xlu0 %v445, 60
      %v740 = vpop.permute.xlu0 %739
      %vm741 = vcmask 490496
      %v742 = vsel %vm741, %v726, %v728
      %v743 = vsel %vm741, %v728, %v730
      %v744 = vsel %vm741, %v730, %v732
      %v745 = vsel %vm741, %v732, %v734
      %v746 = vsel %vm741, %v734, %v736
      %v747 = vsel %vm741, %v736, %v738
      %v748 = vsel %vm741, %v738, %v740
      %756 = vrot.lane.b32.xlu0 %v317, 32
      %v757 = vpop.permute.xlu0 %756
      %758 = vrot.lane.b32.xlu0 %v318, 32
      %v759 = vpop.permute.xlu0 %758
      %760 = vrot.lane.b32.xlu0 %v319, 32
      %v761 = vpop.permute.xlu0 %760
      %762 = vrot.lane.b32.xlu0 %v320, 32
      %v763 = vpop.permute.xlu0 %762
      %764 = vrot.lane.b32.xlu0 %v321, 32
      %v765 = vpop.permute.xlu0 %764
      %766 = vrot.lane.b32.xlu0 %v322, 32
      %v767 = vpop.permute.xlu0 %766
      %768 = vrot.lane.b32.xlu0 %v323, 32
      %v769 = vpop.permute.xlu0 %768
      %770 = vrot.lane.b32.xlu0 %v445, 32
      %v771 = vpop.permute.xlu0 %770
      %vm772 = vcmask 261120
      %v773 = vsel %vm772, %v757, %v759
      %v774 = vsel %vm772, %v759, %v761
      %v775 = vsel %vm772, %v761, %v763
      %v776 = vsel %vm772, %v763, %v765
      %v777 = vsel %vm772, %v765, %v767
      %v778 = vsel %vm772, %v767, %v769
      %v779 = vsel %vm772, %v769, %v771
      %787 = vrot.lane.b32.xlu0 %v445, 127
      %v788 = vpop.permute.xlu0 %787
      %v789 = vsel %vm345, %v344, %v788
      %790 = vrot.lane.b32.xlu0 %v445, 126
      %v791 = vpop.permute.xlu0 %790
      %v792 = vsel %vm373, %v372, %v791
      %793 = vrot.lane.b32.xlu0 %v445, 125
      %v794 = vpop.permute.xlu0 %793
      %v795 = vsel %vm401, %v400, %v794
      %796 = vrot.lane.b32.xlu0 %v318, 97
      %v797 = vpop.permute.xlu0 %796
      %798 = vrot.lane.b32.xlu0 %v319, 97
      %v799 = vpop.permute.xlu0 %798
      %800 = vrot.lane.b32.xlu0 %v320, 97
      %v801 = vpop.permute.xlu0 %800
      %802 = vrot.lane.b32.xlu0 %v321, 97
      %v803 = vpop.permute.xlu0 %802
      %804 = vrot.lane.b32.xlu0 %v322, 97
      %v805 = vpop.permute.xlu0 %804
      %806 = vrot.lane.b32.xlu0 %v323, 97
      %v807 = vpop.permute.xlu0 %806
      %808 = vrot.lane.b32.xlu0 %v445, 97
      %v809 = vpop.permute.xlu0 %808
      %vm810 = vcmask 793600
      %v811 = vsel %vm810, %v797, %v799
      %v812 = vsel %vm810, %v799, %v801
      %v813 = vsel %vm810, %v801, %v803
      %v814 = vsel %vm810, %v803, %v805
      %v815 = vsel %vm810, %v805, %v807
      %v816 = vsel %vm810, %v807, %v809
      %817 = vrot.lane.b32.xlu0 %v317, 31
      %v818 = vpop.permute.xlu0 %817
      %819 = vrot.lane.b32.xlu0 %v318, 31
      %v820 = vpop.permute.xlu0 %819
      %821 = vrot.lane.b32.xlu0 %v319, 31
      %v822 = vpop.permute.xlu0 %821
      %823 = vrot.lane.b32.xlu0 %v320, 31
      %v824 = vpop.permute.xlu0 %823
      %825 = vrot.lane.b32.xlu0 %v321, 31
      %v826 = vpop.permute.xlu0 %825
      %827 = vrot.lane.b32.xlu0 %v322, 31
      %v828 = vpop.permute.xlu0 %827
      %829 = vrot.lane.b32.xlu0 %v323, 31
      %v830 = vpop.permute.xlu0 %829
      %831 = vrot.lane.b32.xlu0 %v445, 31
      %v832 = vpop.permute.xlu0 %831
      %833 = vrot.lane.b32.xlu0 %v346, 31
      %v834 = vpop.permute.xlu0 %833
      %835 = vrot.lane.b32.xlu0 %v347, 31
      %v836 = vpop.permute.xlu0 %835
      %837 = vrot.lane.b32.xlu0 %v348, 31
      %v838 = vpop.permute.xlu0 %837
      %839 = vrot.lane.b32.xlu0 %v349, 31
      %v840 = vpop.permute.xlu0 %839
      %841 = vrot.lane.b32.xlu0 %v350, 31
      %v842 = vpop.permute.xlu0 %841
      %843 = vrot.lane.b32.xlu0 %v351, 31
      %v844 = vpop.permute.xlu0 %843
      %845 = vrot.lane.b32.xlu0 %v789, 31
      %v846 = vpop.permute.xlu0 %845
      %847 = vrot.lane.b32.xlu0 %v788, 31
      %v848 = vpop.permute.xlu0 %847
      %849 = vrot.lane.b32.xlu0 %v374, 31
      %v850 = vpop.permute.xlu0 %849
      %851 = vrot.lane.b32.xlu0 %v375, 31
      %v852 = vpop.permute.xlu0 %851
      %853 = vrot.lane.b32.xlu0 %v376, 31
      %v854 = vpop.permute.xlu0 %853
      %855 = vrot.lane.b32.xlu0 %v377, 31
      %v856 = vpop.permute.xlu0 %855
      %857 = vrot.lane.b32.xlu0 %v378, 31
      %v858 = vpop.permute.xlu0 %857
      %859 = vrot.lane.b32.xlu0 %v379, 31
      %v860 = vpop.permute.xlu0 %859
      %861 = vrot.lane.b32.xlu0 %v792, 31
      %v862 = vpop.permute.xlu0 %861
      %863 = vrot.lane.b32.xlu0 %v791, 31
      %v864 = vpop.permute.xlu0 %863
      %865 = vrot.lane.b32.xlu0 %v402, 31
      %v866 = vpop.permute.xlu0 %865
      %867 = vrot.lane.b32.xlu0 %v403, 31
      %v868 = vpop.permute.xlu0 %867
      %869 = vrot.lane.b32.xlu0 %v404, 31
      %v870 = vpop.permute.xlu0 %869
      %871 = vrot.lane.b32.xlu0 %v405, 31
      %v872 = vpop.permute.xlu0 %871
      %873 = vrot.lane.b32.xlu0 %v406, 31
      %v874 = vpop.permute.xlu0 %873
      %875 = vrot.lane.b32.xlu0 %v407, 31
      %v876 = vpop.permute.xlu0 %875
      %877 = vrot.lane.b32.xlu0 %v795, 31
      %v878 = vpop.permute.xlu0 %877
      %879 = vrot.lane.b32.xlu0 %v794, 31
      %v880 = vpop.permute.xlu0 %879
      %881 = vrot.lane.b32.xlu0 %v797, 31
      %v882 = vpop.permute.xlu0 %881
      %883 = vrot.lane.b32.xlu0 %v811, 31
      %v884 = vpop.permute.xlu0 %883
      %885 = vrot.lane.b32.xlu0 %v812, 31
      %v886 = vpop.permute.xlu0 %885
      %887 = vrot.lane.b32.xlu0 %v813, 31
      %v888 = vpop.permute.xlu0 %887
      %889 = vrot.lane.b32.xlu0 %v814, 31
      %v890 = vpop.permute.xlu0 %889
      %891 = vrot.lane.b32.xlu0 %v815, 31
      %v892 = vpop.permute.xlu0 %891
      %893 = vrot.lane.b32.xlu0 %v816, 31
      %v894 = vpop.permute.xlu0 %893
      %895 = vrot.lane.b32.xlu0 %v809, 31
      %v896 = vpop.permute.xlu0 %895
      %897 = vrot.lane.b32.xlu0 %v449, 31
      %v898 = vpop.permute.xlu0 %897
      %899 = vrot.lane.b32.xlu0 %v464, 31
      %v900 = vpop.permute.xlu0 %899
      %901 = vrot.lane.b32.xlu0 %v465, 31
      %v902 = vpop.permute.xlu0 %901
      %903 = vrot.lane.b32.xlu0 %v466, 31
      %v904 = vpop.permute.xlu0 %903
      %905 = vrot.lane.b32.xlu0 %v467, 31
      %v906 = vpop.permute.xlu0 %905
      %907 = vrot.lane.b32.xlu0 %v468, 31
      %v908 = vpop.permute.xlu0 %907
      %909 = vrot.lane.b32.xlu0 %v469, 31
      %v910 = vpop.permute.xlu0 %909
      %911 = vrot.lane.b32.xlu0 %v461, 31
      %v912 = vpop.permute.xlu0 %911
      %913 = vrot.lane.b32.xlu0 %v480, 31
      %v914 = vpop.permute.xlu0 %913
      %915 = vrot.lane.b32.xlu0 %v495, 31
      %v916 = vpop.permute.xlu0 %915
      %917 = vrot.lane.b32.xlu0 %v496, 31
      %v918 = vpop.permute.xlu0 %917
      %919 = vrot.lane.b32.xlu0 %v497, 31
      %v920 = vpop.permute.xlu0 %919
      %921 = vrot.lane.b32.xlu0 %v498, 31
      %v922 = vpop.permute.xlu0 %921
      %923 = vrot.lane.b32.xlu0 %v499, 31
      %v924 = vpop.permute.xlu0 %923
      %925 = vrot.lane.b32.xlu0 %v500, 31
      %v926 = vpop.permute.xlu0 %925
      %927 = vrot.lane.b32.xlu0 %v492, 31
      %v928 = vpop.permute.xlu0 %927
      %929 = vrot.lane.b32.xlu0 %v511, 31
      %v930 = vpop.permute.xlu0 %929
      %931 = vrot.lane.b32.xlu0 %v526, 31
      %v932 = vpop.permute.xlu0 %931
      %933 = vrot.lane.b32.xlu0 %v527, 31
      %v934 = vpop.permute.xlu0 %933
      %935 = vrot.lane.b32.xlu0 %v528, 31
      %v936 = vpop.permute.xlu0 %935
      %937 = vrot.lane.b32.xlu0 %v529, 31
      %v938 = vpop.permute.xlu0 %937
      %939 = vrot.lane.b32.xlu0 %v530, 31
      %v940 = vpop.permute.xlu0 %939
      %941 = vrot.lane.b32.xlu0 %v531, 31
      %v942 = vpop.permute.xlu0 %941
      %943 = vrot.lane.b32.xlu0 %v523, 31
      %v944 = vpop.permute.xlu0 %943
      %945 = vrot.lane.b32.xlu0 %v542, 31
      %v946 = vpop.permute.xlu0 %945
      %947 = vrot.lane.b32.xlu0 %v557, 31
      %v948 = vpop.permute.xlu0 %947
      %949 = vrot.lane.b32.xlu0 %v558, 31
      %v950 = vpop.permute.xlu0 %949
      %951 = vrot.lane.b32.xlu0 %v559, 31
      %v952 = vpop.permute.xlu0 %951
      %953 = vrot.lane.b32.xlu0 %v560, 31
      %v954 = vpop.permute.xlu0 %953
      %955 = vrot.lane.b32.xlu0 %v561, 31
      %v956 = vpop.permute.xlu0 %955
      %957 = vrot.lane.b32.xlu0 %v562, 31
      %v958 = vpop.permute.xlu0 %957
      %959 = vrot.lane.b32.xlu0 %v554, 31
      %v960 = vpop.permute.xlu0 %959
      %vm961 = vcmask 252928
      %v962 = vsel %vm961, %v818, %v820
      %v963 = vsel %vm961, %v820, %v822
      %v964 = vsel %vm961, %v822, %v824
      %v965 = vsel %vm961, %v824, %v826
      %v966 = vsel %vm961, %v826, %v828
      %v967 = vsel %vm961, %v828, %v830
      %v968 = vsel %vm961, %v830, %v832
      %v969 = vsel %vm961, %v834, %v836
      %v970 = vsel %vm961, %v836, %v838
      %v971 = vsel %vm961, %v838, %v840
      %v972 = vsel %vm961, %v840, %v842
      %v973 = vsel %vm961, %v842, %v844
      %v974 = vsel %vm961, %v844, %v846
      %v975 = vsel %vm961, %v846, %v848
      %v976 = vsel %vm961, %v850, %v852
      %v977 = vsel %vm961, %v852, %v854
      %v978 = vsel %vm961, %v854, %v856
      %v979 = vsel %vm961, %v856, %v858
      %v980 = vsel %vm961, %v858, %v860
      %v981 = vsel %vm961, %v860, %v862
      %v982 = vsel %vm961, %v862, %v864
      %v983 = vsel %vm961, %v866, %v868
      %v984 = vsel %vm961, %v868, %v870
      %v985 = vsel %vm961, %v870, %v872
      %v986 = vsel %vm961, %v872, %v874
      %v987 = vsel %vm961, %v874, %v876
      %v988 = vsel %vm961, %v876, %v878
      %v989 = vsel %vm961, %v878, %v880
      %v990 = vsel %vm961, %v882, %v884
      %v991 = vsel %vm961, %v884, %v886
      %v992 = vsel %vm961, %v886, %v888
      %v993 = vsel %vm961, %v888, %v890
      %v994 = vsel %vm961, %v890, %v892
      %v995 = vsel %vm961, %v892, %v894
      %v996 = vsel %vm961, %v894, %v896
      %v997 = vsel %vm961, %v898, %v900
      %v998 = vsel %vm961, %v900, %v902
      %v999 = vsel %vm961, %v902, %v904
      %v1000 = vsel %vm961, %v904, %v906
      %v1001 = vsel %vm961, %v906, %v908
      %v1002 = vsel %vm961, %v908, %v910
      %v1003 = vsel %vm961, %v910, %v912
      %v1004 = vsel %vm961, %v914, %v916
      %v1005 = vsel %vm961, %v916, %v918
      %v1006 = vsel %vm961, %v918, %v920
      %v1007 = vsel %vm961, %v920, %v922
      %v1008 = vsel %vm961, %v922, %v924
      %v1009 = vsel %vm961, %v924, %v926
      %v1010 = vsel %vm961, %v926, %v928
      %v1011 = vsel %vm961, %v930, %v932
      %v1012 = vsel %vm961, %v932, %v934
      %v1013 = vsel %vm961, %v934, %v936
      %v1014 = vsel %vm961, %v936, %v938
      %v1015 = vsel %vm961, %v938, %v940
      %v1016 = vsel %vm961, %v940, %v942
      %v1017 = vsel %vm961, %v942, %v944
      %v1018 = vsel %vm961, %v946, %v948
      %v1019 = vsel %vm961, %v948, %v950
      %v1020 = vsel %vm961, %v950, %v952
      %v1021 = vsel %vm961, %v952, %v954
      %v1022 = vsel %vm961, %v954, %v956
      %v1023 = vsel %vm961, %v956, %v958
      %v1024 = vsel %vm961, %v958, %v960
      %1089 = vset.pattern.permute.xlu0 0
      %1090 = vperm.xlu0 %1089, %v285
      %v1091 = vpop.permute.xlu0 %1090
      %1094 = vset.pattern.permute.xlu0 0
      %1095 = vperm.xlu0 %1094, %v286
      %v1096 = vpop.permute.xlu0 %1095
      %v1102 = vunpack.c.l.b16 %v281
      %v1103 = vunpack.c.h.b16 %v281
      %v1104 = vunpack.c.l.b16 %v282
      %v1105 = vunpack.c.h.b16 %v282
      %v1106 = vunpack.c.l.b16 %v283
      %v1107 = vunpack.c.h.b16 %v283
      %v1108 = vunpack.c.l.b16 %v284
      %v1109 = vunpack.c.h.b16 %v284
      %v1110 = vpack.c.b16 %v1106, %v1102
      %v1111 = vpack.c.b16 %v1107, %v1103
      %v1112 = vpack.c.b16 %v1108, %v1104
      %v1113 = vpack.c.b16 %v1109, %v1105
      %vm1117 = vcmask 130048
      %v1119 = vsel %vm1117, %v1113, 0
      %1121 = vmatprep.subr.bf16.mxu0 %v318
      %1122 = vmatpush1.bf16.msra.mxu0 %v317
      %1123 = vmatprep.subr.bf16.mxu0 %v347
      %1124 = vmatpush1.bf16.msra.mxu0 %v346
      %1125 = vmatprep.subr.bf16.mxu0 %v375
      %1126 = vmatpush1.bf16.msra.mxu0 %v374
      %1127 = vmatprep.subr.bf16.mxu0 %v403
      %1128 = vmatpush1.bf16.msra.mxu0 %v402
      %1129 = vmatprep.subr.bf16.mxu0 %v431
      %1130 = vmatpush1.bf16.msra.mxu0 %v430
      %1131 = vmatprep.subr.bf16.mxu0 %v464
      %1132 = vmatpush1.bf16.msra.mxu0 %v463
      %1133 = vmatprep.subr.bf16.mxu0 %v495
      %1134 = vmatpush1.bf16.msra.mxu0 %v494
      %1135 = vmatprep.subr.bf16.mxu0 %v526
      %1136 = vmatpush1.bf16.msra.mxu0 %v525
      %1137 = vmatprep.subr.bf16.mxu0 %v557
      %1138 = vmatpush1.bf16.msra.mxu0 %v556
      %1139 = vmatprep.subr.bf16.mxu0 %v588
      %1140 = vmatpush1.bf16.msra.mxu0 %v587
      %1141 = vmatprep.subr.bf16.mxu0 %v619
      %1142 = vmatpush1.bf16.msra.mxu0 %v618
      %1143 = vmatprep.subr.bf16.mxu0 %v650
      %1144 = vmatpush1.bf16.msra.mxu0 %v649
      %1145 = vmatprep.subr.bf16.mxu0 %v681
      %1146 = vmatpush1.bf16.msra.mxu0 %v680
      %1147 = vmatprep.subr.bf16.mxu0 %v712
      %1148 = vmatpush1.bf16.msra.mxu0 %v711
      %1149 = vmatprep.subr.bf16.mxu0 %v743
      %1150 = vmatpush1.bf16.msra.mxu0 %v742
      %1151 = vmatprep.subr.bf16.mxu0 %v774
      %1152 = vmatpush1.bf16.msra.mxu0 %v773
      %1153 = vmatprep.mubr.bf16.mxu0 %v1111
      %1154 = vmatmul.mubr.bf16.gmra.mrb[0].mxu0 %v1110
      %v1155 = vpop.f32.mrb[0].mxu0
      %v1156 = vadd.f32 %v1091, %v1155
      %v1157 = vpop.f32.mrb[0].mxu0
      %v1158 = vadd.f32 %v1091, %v1157
      %v1159 = vpop.f32.mrb[0].mxu0
      %v1160 = vadd.f32 %v1096, %v1159
      %v1161 = vpop.f32.mrb[0].mxu0
      %v1162 = vadd.f32 %v1096, %v1161
      %1163 = vdwg.mxu0
      %1164 = vmatprep.subr.bf16.mxu0 %v963
      %1165 = vmatpush1.bf16.msra.mxu0 %v962
      %1166 = vmatprep.subr.bf16.mxu0 %v970
      %1167 = vmatpush1.bf16.msra.mxu0 %v969
      %1168 = vmatprep.subr.bf16.mxu0 %v977
      %1169 = vmatpush1.bf16.msra.mxu0 %v976
      %1170 = vmatprep.subr.bf16.mxu0 %v984
      %1171 = vmatpush1.bf16.msra.mxu0 %v983
      %1172 = vmatprep.subr.bf16.mxu0 %v991
      %1173 = vmatpush1.bf16.msra.mxu0 %v990
      %1174 = vmatprep.subr.bf16.mxu0 %v998
      %1175 = vmatpush1.bf16.msra.mxu0 %v997
      %1176 = vmatprep.subr.bf16.mxu0 %v1005
      %1177 = vmatpush1.bf16.msra.mxu0 %v1004
      %1178 = vmatprep.subr.bf16.mxu0 %v1012
      %1179 = vmatpush1.bf16.msra.mxu0 %v1011
      %1180 = vmatprep.subr.bf16.mxu0 %v1019
      %1181 = vmatpush1.bf16.msra.mxu0 %v1018
      %1182 = vmatprep.subr.bf16.mxu0 0
      %1183 = vmatpush1.bf16.msra.mxu0 0
      %1184 = vmatprep.subr.bf16.mxu0 0
      %1185 = vmatpush1.bf16.msra.mxu0 0
      %1186 = vmatprep.subr.bf16.mxu0 0
      %1187 = vmatpush1.bf16.msra.mxu0 0
      %1188 = vmatprep.subr.bf16.mxu0 0
      %1189 = vmatpush1.bf16.msra.mxu0 0
      %1190 = vmatprep.subr.bf16.mxu0 0
      %1191 = vmatpush1.bf16.msra.mxu0 0
      %1192 = vmatprep.subr.bf16.mxu0 0
      %1193 = vmatpush1.bf16.msra.mxu0 0
      %1194 = vmatprep.subr.bf16.mxu0 0
      %1195 = vmatpush1.bf16.msra.mxu0 0
      %1196 = vmatprep.mubr.bf16.mxu0 %v1119
      %1197 = vmatmul.mubr.bf16.gmra.mrb[0].mxu0 %v1112
      %v1198 = vpop.f32.mrb[0].mxu0
      %v1199 = vadd.f32 %v1156, %v1198
      %v1200 = vpop.f32.mrb[0].mxu0
      %v1201 = vadd.f32 %v1158, %v1200
      %v1202 = vpop.f32.mrb[0].mxu0
      %v1203 = vadd.f32 %v1160, %v1202
      %v1204 = vpop.f32.mrb[0].mxu0
      %v1205 = vadd.f32 %v1162, %v1204
      %1206 = vdwg.mxu0
      %1207 = vmatprep.subr.bf16.mxu0 %v320
      %1208 = vmatpush1.bf16.msra.mxu0 %v319
      %1209 = vmatprep.subr.bf16.mxu0 %v349
      %1210 = vmatpush1.bf16.msra.mxu0 %v348
      %1211 = vmatprep.subr.bf16.mxu0 %v377
      %1212 = vmatpush1.bf16.msra.mxu0 %v376
      %1213 = vmatprep.subr.bf16.mxu0 %v405
      %1214 = vmatpush1.bf16.msra.mxu0 %v404
      %1215 = vmatprep.subr.bf16.mxu0 %v433
      %1216 = vmatpush1.bf16.msra.mxu0 %v432
      %1217 = vmatprep.subr.bf16.mxu0 %v466
      %1218 = vmatpush1.bf16.msra.mxu0 %v465
      %1219 = vmatprep.subr.bf16.mxu0 %v497
      %1220 = vmatpush1.bf16.msra.mxu0 %v496
      %1221 = vmatprep.subr.bf16.mxu0 %v528
      %1222 = vmatpush1.bf16.msra.mxu0 %v527
      %1223 = vmatprep.subr.bf16.mxu0 %v559
      %1224 = vmatpush1.bf16.msra.mxu0 %v558
      %1225 = vmatprep.subr.bf16.mxu0 %v590
      %1226 = vmatpush1.bf16.msra.mxu0 %v589
      %1227 = vmatprep.subr.bf16.mxu0 %v621
      %1228 = vmatpush1.bf16.msra.mxu0 %v620
      %1229 = vmatprep.subr.bf16.mxu0 %v652
      %1230 = vmatpush1.bf16.msra.mxu0 %v651
      %1231 = vmatprep.subr.bf16.mxu0 %v683
      %1232 = vmatpush1.bf16.msra.mxu0 %v682
      %1233 = vmatprep.subr.bf16.mxu0 %v714
      %1234 = vmatpush1.bf16.msra.mxu0 %v713
      %1235 = vmatprep.subr.bf16.mxu0 %v745
      %1236 = vmatpush1.bf16.msra.mxu0 %v744
      %1237 = vmatprep.subr.bf16.mxu0 %v776
      %1238 = vmatpush1.bf16.msra.mxu0 %v775
      %1239 = vmatprep.mubr.bf16.mxu0 %v1111
      %1240 = vmatmul.mubr.bf16.gmra.mrb[0].mxu0 %v1110
      %v1241 = vpop.f32.mrb[0].mxu0
      %v1242 = vadd.f32 %v1091, %v1241
      %v1243 = vpop.f32.mrb[0].mxu0
      %v1244 = vadd.f32 %v1091, %v1243
      %v1245 = vpop.f32.mrb[0].mxu0
      %v1246 = vadd.f32 %v1096, %v1245
      %v1247 = vpop.f32.mrb[0].mxu0
      %v1248 = vadd.f32 %v1096, %v1247
      %1249 = vdwg.mxu0
      %1250 = vmatprep.subr.bf16.mxu0 %v965
      %1251 = vmatpush1.bf16.msra.mxu0 %v964
      %1252 = vmatprep.subr.bf16.mxu0 %v972
      %1253 = vmatpush1.bf16.msra.mxu0 %v971
      %1254 = vmatprep.subr.bf16.mxu0 %v979
      %1255 = vmatpush1.bf16.msra.mxu0 %v978
      %1256 = vmatprep.subr.bf16.mxu0 %v986
      %1257 = vmatpush1.bf16.msra.mxu0 %v985
      %1258 = vmatprep.subr.bf16.mxu0 %v993
      %1259 = vmatpush1.bf16.msra.mxu0 %v992
      %1260 = vmatprep.subr.bf16.mxu0 %v1000
      %1261 = vmatpush1.bf16.msra.mxu0 %v999
      %1262 = vmatprep.subr.bf16.mxu0 %v1007
      %1263 = vmatpush1.bf16.msra.mxu0 %v1006
      %1264 = vmatprep.subr.bf16.mxu0 %v1014
      %1265 = vmatpush1.bf16.msra.mxu0 %v1013
      %1266 = vmatprep.subr.bf16.mxu0 %v1021
      %1267 = vmatpush1.bf16.msra.mxu0 %v1020
      %1268 = vmatprep.subr.bf16.mxu0 0
      %1269 = vmatpush1.bf16.msra.mxu0 0
      %1270 = vmatprep.subr.bf16.mxu0 0
      %1271 = vmatpush1.bf16.msra.mxu0 0
      %1272 = vmatprep.subr.bf16.mxu0 0
      %1273 = vmatpush1.bf16.msra.mxu0 0
      %1274 = vmatprep.subr.bf16.mxu0 0
      %1275 = vmatpush1.bf16.msra.mxu0 0
      %1276 = vmatprep.subr.bf16.mxu0 0
      %1277 = vmatpush1.bf16.msra.mxu0 0
      %1278 = vmatprep.subr.bf16.mxu0 0
      %1279 = vmatpush1.bf16.msra.mxu0 0
      %1280 = vmatprep.subr.bf16.mxu0 0
      %1281 = vmatpush1.bf16.msra.mxu0 0
      %1282 = vmatprep.mubr.bf16.mxu0 %v1119
      %1283 = vmatmul.mubr.bf16.gmra.mrb[0].mxu0 %v1112
      %v1284 = vpop.f32.mrb[0].mxu0
      %v1285 = vadd.f32 %v1242, %v1284
      %v1286 = vpop.f32.mrb[0].mxu0
      %v1287 = vadd.f32 %v1244, %v1286
      %v1288 = vpop.f32.mrb[0].mxu0
      %v1289 = vadd.f32 %v1246, %v1288
      %v1290 = vpop.f32.mrb[0].mxu0
      %v1291 = vadd.f32 %v1248, %v1290
      %1292 = vdwg.mxu0
      %1293 = vmatprep.subr.bf16.mxu0 %v322
      %1294 = vmatpush1.bf16.msra.mxu0 %v321
      %1295 = vmatprep.subr.bf16.mxu0 %v351
      %1296 = vmatpush1.bf16.msra.mxu0 %v350
      %1297 = vmatprep.subr.bf16.mxu0 %v379
      %1298 = vmatpush1.bf16.msra.mxu0 %v378
      %1299 = vmatprep.subr.bf16.mxu0 %v407
      %1300 = vmatpush1.bf16.msra.mxu0 %v406
      %1301 = vmatprep.subr.bf16.mxu0 %v435
      %1302 = vmatpush1.bf16.msra.mxu0 %v434
      %1303 = vmatprep.subr.bf16.mxu0 %v468
      %1304 = vmatpush1.bf16.msra.mxu0 %v467
      %1305 = vmatprep.subr.bf16.mxu0 %v499
      %1306 = vmatpush1.bf16.msra.mxu0 %v498
      %1307 = vmatprep.subr.bf16.mxu0 %v530
      %1308 = vmatpush1.bf16.msra.mxu0 %v529
      %1309 = vmatprep.subr.bf16.mxu0 %v561
      %1310 = vmatpush1.bf16.msra.mxu0 %v560
      %1311 = vmatprep.subr.bf16.mxu0 %v592
      %1312 = vmatpush1.bf16.msra.mxu0 %v591
      %1313 = vmatprep.subr.bf16.mxu0 %v623
      %1314 = vmatpush1.bf16.msra.mxu0 %v622
      %1315 = vmatprep.subr.bf16.mxu0 %v654
      %1316 = vmatpush1.bf16.msra.mxu0 %v653
      %1317 = vmatprep.subr.bf16.mxu0 %v685
      %1318 = vmatpush1.bf16.msra.mxu0 %v684
      %1319 = vmatprep.subr.bf16.mxu0 %v716
      %1320 = vmatpush1.bf16.msra.mxu0 %v715
      %1321 = vmatprep.subr.bf16.mxu0 %v747
      %1322 = vmatpush1.bf16.msra.mxu0 %v746
      %1323 = vmatprep.subr.bf16.mxu0 %v778
      %1324 = vmatpush1.bf16.msra.mxu0 %v777
      %1325 = vmatprep.mubr.bf16.mxu0 %v1111
      %1326 = vmatmul.mubr.bf16.gmra.mrb[0].mxu0 %v1110
      %v1327 = vpop.f32.mrb[0].mxu0
      %v1328 = vadd.f32 %v1091, %v1327
      %v1329 = vpop.f32.mrb[0].mxu0
      %v1330 = vadd.f32 %v1091, %v1329
      %v1331 = vpop.f32.mrb[0].mxu0
      %v1332 = vadd.f32 %v1096, %v1331
      %v1333 = vpop.f32.mrb[0].mxu0
      %v1334 = vadd.f32 %v1096, %v1333
      %1335 = vdwg.mxu0
      %1336 = vmatprep.subr.bf16.mxu0 %v967
      %1337 = vmatpush1.bf16.msra.mxu0 %v966
      %1338 = vmatprep.subr.bf16.mxu0 %v974
      %1339 = vmatpush1.bf16.msra.mxu0 %v973
      %1340 = vmatprep.subr.bf16.mxu0 %v981
      %1341 = vmatpush1.bf16.msra.mxu0 %v980
      %1342 = vmatprep.subr.bf16.mxu0 %v988
      %1343 = vmatpush1.bf16.msra.mxu0 %v987
      %1344 = vmatprep.subr.bf16.mxu0 %v995
      %1345 = vmatpush1.bf16.msra.mxu0 %v994
      %1346 = vmatprep.subr.bf16.mxu0 %v1002
      %1347 = vmatpush1.bf16.msra.mxu0 %v1001
      %1348 = vmatprep.subr.bf16.mxu0 %v1009
      %1349 = vmatpush1.bf16.msra.mxu0 %v1008
      %1350 = vmatprep.subr.bf16.mxu0 %v1016
      %1351 = vmatpush1.bf16.msra.mxu0 %v1015
      %1352 = vmatprep.subr.bf16.mxu0 %v1023
      %1353 = vmatpush1.bf16.msra.mxu0 %v1022
      %1354 = vmatprep.subr.bf16.mxu0 0
      %1355 = vmatpush1.bf16.msra.mxu0 0
      %1356 = vmatprep.subr.bf16.mxu0 0
      %1357 = vmatpush1.bf16.msra.mxu0 0
      %1358 = vmatprep.subr.bf16.mxu0 0
      %1359 = vmatpush1.bf16.msra.mxu0 0
      %1360 = vmatprep.subr.bf16.mxu0 0
      %1361 = vmatpush1.bf16.msra.mxu0 0
      %1362 = vmatprep.subr.bf16.mxu0 0
      %1363 = vmatpush1.bf16.msra.mxu0 0
      %1364 = vmatprep.subr.bf16.mxu0 0
      %1365 = vmatpush1.bf16.msra.mxu0 0
      %1366 = vmatprep.subr.bf16.mxu0 0
      %1367 = vmatpush1.bf16.msra.mxu0 0
      %1368 = vmatprep.mubr.bf16.mxu0 %v1119
      %1369 = vmatmul.mubr.bf16.gmra.mrb[0].mxu0 %v1112
      %v1370 = vpop.f32.mrb[0].mxu0
      %v1371 = vadd.f32 %v1328, %v1370
      %v1372 = vpop.f32.mrb[0].mxu0
      %v1373 = vadd.f32 %v1330, %v1372
      %v1374 = vpop.f32.mrb[0].mxu0
      %v1375 = vadd.f32 %v1332, %v1374
      %v1376 = vpop.f32.mrb[0].mxu0
      %v1377 = vadd.f32 %v1334, %v1376
      %1378 = vdwg.mxu0
      %1379 = vmatprep.subr.bf16.mxu0 0
      %1380 = vmatpush1.bf16.msra.mxu0 %v323
      %1381 = vmatprep.subr.bf16.mxu0 0
      %1382 = vmatpush1.bf16.msra.mxu0 %v344
      %1383 = vmatprep.subr.bf16.mxu0 0
      %1384 = vmatpush1.bf16.msra.mxu0 %v372
      %1385 = vmatprep.subr.bf16.mxu0 0
      %1386 = vmatpush1.bf16.msra.mxu0 %v400
      %1387 = vmatprep.subr.bf16.mxu0 0
      %1388 = vmatpush1.bf16.msra.mxu0 %v428
      %1389 = vmatprep.subr.bf16.mxu0 0
      %1390 = vmatpush1.bf16.msra.mxu0 %v469
      %1391 = vmatprep.subr.bf16.mxu0 0
      %1392 = vmatpush1.bf16.msra.mxu0 %v500
      %1393 = vmatprep.subr.bf16.mxu0 0
      %1394 = vmatpush1.bf16.msra.mxu0 %v531
      %1395 = vmatprep.subr.bf16.mxu0 0
      %1396 = vmatpush1.bf16.msra.mxu0 %v562
      %1397 = vmatprep.subr.bf16.mxu0 0
      %1398 = vmatpush1.bf16.msra.mxu0 %v593
      %1399 = vmatprep.subr.bf16.mxu0 0
      %1400 = vmatpush1.bf16.msra.mxu0 %v624
      %1401 = vmatprep.subr.bf16.mxu0 0
      %1402 = vmatpush1.bf16.msra.mxu0 %v655
      %1403 = vmatprep.subr.bf16.mxu0 0
      %1404 = vmatpush1.bf16.msra.mxu0 %v686
      %1405 = vmatprep.subr.bf16.mxu0 0
      %1406 = vmatpush1.bf16.msra.mxu0 %v717
      %1407 = vmatprep.subr.bf16.mxu0 0
      %1408 = vmatpush1.bf16.msra.mxu0 %v748
      %1409 = vmatprep.subr.bf16.mxu0 0
      %1410 = vmatpush1.bf16.msra.mxu0 %v779
      %1411 = vmatprep.mubr.bf16.mxu0 %v1111
      %1412 = vmatmul.mubr.bf16.gmra.mrb[0].mxu0 %v1110
      %v1413 = vpop.f32.mrb[0].mxu0
      %v1414 = vadd.f32 %v1091, %v1413
      %v1415 = vpop.f32.mrb[0].mxu0
      %v1416 = vpop.f32.mrb[0].mxu0
      %v1417 = vadd.f32 %v1096, %v1416
      %v1418 = vpop.f32.mrb[0].mxu0
      %1419 = vdwg.mxu0
      %1420 = vmatprep.subr.bf16.mxu0 0
      %1421 = vmatpush1.bf16.msra.mxu0 %v968
      %1422 = vmatprep.subr.bf16.mxu0 0
      %1423 = vmatpush1.bf16.msra.mxu0 %v975
      %1424 = vmatprep.subr.bf16.mxu0 0
      %1425 = vmatpush1.bf16.msra.mxu0 %v982
      %1426 = vmatprep.subr.bf16.mxu0 0
      %1427 = vmatpush1.bf16.msra.mxu0 %v989
      %1428 = vmatprep.subr.bf16.mxu0 0
      %1429 = vmatpush1.bf16.msra.mxu0 %v996
      %1430 = vmatprep.subr.bf16.mxu0 0
      %1431 = vmatpush1.bf16.msra.mxu0 %v1003
      %1432 = vmatprep.subr.bf16.mxu0 0
      %1433 = vmatpush1.bf16.msra.mxu0 %v1010
      %1434 = vmatprep.subr.bf16.mxu0 0
      %1435 = vmatpush1.bf16.msra.mxu0 %v1017
      %1436 = vmatprep.subr.bf16.mxu0 0
      %1437 = vmatpush1.bf16.msra.mxu0 %v1024
      %1438 = vmatprep.subr.bf16.mxu0 0
      %1439 = vmatpush1.bf16.msra.mxu0 0
      %1440 = vmatprep.subr.bf16.mxu0 0
      %1441 = vmatpush1.bf16.msra.mxu0 0
      %1442 = vmatprep.subr.bf16.mxu0 0
      %1443 = vmatpush1.bf16.msra.mxu0 0
      %1444 = vmatprep.subr.bf16.mxu0 0
      %1445 = vmatpush1.bf16.msra.mxu0 0
      %1446 = vmatprep.subr.bf16.mxu0 0
      %1447 = vmatpush1.bf16.msra.mxu0 0
      %1448 = vmatprep.subr.bf16.mxu0 0
      %1449 = vmatpush1.bf16.msra.mxu0 0
      %1450 = vmatprep.subr.bf16.mxu0 0
      %1451 = vmatpush1.bf16.msra.mxu0 0
      %1452 = vmatprep.mubr.bf16.mxu0 %v1119
      %1453 = vmatmul.mubr.bf16.gmra.mrb[0].mxu0 %v1112
      %v1454 = vpop.f32.mrb[0].mxu0
      %v1455 = vadd.f32 %v1414, %v1454
      %v1456 = vpop.f32.mrb[0].mxu0
      %v1457 = vpop.f32.mrb[0].mxu0
      %v1458 = vadd.f32 %v1417, %v1457
      %v1459 = vpop.f32.mrb[0].mxu0
      %1460 = vdwg.mxu0
      %v1461 = vmax.f32 %v1199, 0.0
      %v1462 = vmax.f32 %v1201, 0.0
      %v1463 = vmax.f32 %v1285, 0.0
      %v1464 = vmax.f32 %v1287, 0.0
      %v1465 = vmax.f32 %v1371, 0.0
      %v1466 = vmax.f32 %v1373, 0.0
      %v1467 = vmax.f32 %v1455, 0.0
      %v1468 = vmax.f32 %v1203, 0.0
      %v1469 = vmax.f32 %v1205, 0.0
      %v1470 = vmax.f32 %v1289, 0.0
      %v1471 = vmax.f32 %v1291, 0.0
      %v1472 = vmax.f32 %v1375, 0.0
      %v1473 = vmax.f32 %v1377, 0.0
      %v1474 = vmax.f32 %v1458, 0.0
      %v1475 = vpack.c.bf16 %v1468, %v1461
      %v1476 = vpack.c.bf16 %v1469, %v1462
      %v1477 = vpack.c.bf16 %v1470, %v1463
      %v1478 = vpack.c.bf16 %v1471, %v1464
      %v1479 = vpack.c.bf16 %v1472, %v1465
      %v1480 = vpack.c.bf16 %v1473, %v1466
      %v1481 = vpack.c.bf16 %v1474, %v1467
      %1482 = vst [vmem:[#allocation2] sm:$0xff] %v1475
      %1483 = vst [vmem:[#allocation2 + $0x8] sm:$0xff] %v1476
      %1484 = vst [vmem:[#allocation2 + $0x10] sm:$0xff] %v1477
      %1485 = vst [vmem:[#allocation2 + $0x18] sm:$0xff] %v1478
      %1486 = vst [vmem:[#allocation2 + $0x20] sm:$0xff] %v1479
      %1487 = vst [vmem:[#allocation2 + $0x28] sm:$0xff] %v1480
      %vm1488 = vcmask 1014784
      %1489 = vst.msk [vmem:[#allocation2 + $0x30] sm:$0xff] %vm1488, %v1481
      %v1490 = vld [vmem:[#allocation2] sm:$0xff]
      %v1491 = vld [vmem:[#allocation2 + $0x8] sm:$0xff]
      %v1492 = vld [vmem:[#allocation2 + $0x10] sm:$0xff]
      %v1493 = vld [vmem:[#allocation2 + $0x18] sm:$0xff]
      %v1494 = vld [vmem:[#allocation2 + $0x20] sm:$0xff]
      %v1495 = vld [vmem:[#allocation2 + $0x28] sm:$0xff]
      %v1496 = vld [vmem:[#allocation2 + $0x30] sm:$0xff]
      %v1497 = vld [vmem:[%s5] sm:$0xff]
      %v1498 = vld [vmem:[%s5 + $0x8] sm:$0xff]
      %v1499 = vld [vmem:[%s5 + $0x10] sm:$0xff]
      %v1500 = vld [vmem:[%s5 + $0x18] sm:$0xff]
      %v1501 = vld [vmem:[%s5 + $0x20] sm:$0xff]
      %v1502 = vld [vmem:[%s5 + $0x28] sm:$0xff]
      %v1503 = vld [vmem:[%s5 + $0x30] sm:$0xff]
      %v1504 = vld [vmem:[%s5 + $0x38] sm:$0xff]
      %v1505 = vld [vmem:[%s5 + $0x40] sm:$0xff]
      %v1506 = vld [vmem:[%s5 + $0x48] sm:$0xff]
      %v1507 = vld [vmem:[%s5 + $0x50] sm:$0xff]
      %v1508 = vld [vmem:[%s5 + $0x58] sm:$0xff]
      %v1509 = vld [vmem:[%s5 + $0x60] sm:$0xff]
      %v1510 = vld [vmem:[%s5 + $0x68] sm:$0xff]
      %v1511 = vld [vmem:[%s5 + $0x70] sm:$0xff]
      %v1512 = vld [vmem:[%s5 + $0x78] sm:$0xff]
      %v1513 = vld [vmem:[%s5 + $0x80] sm:$0xff]
      %v1514 = vld [vmem:[%s5 + $0x88] sm:$0xff]
      %v1515 = vld [vmem:[%s5 + $0x90] sm:$0xff]
      %v1516 = vld [vmem:[%s5 + $0x98] sm:$0xff]
      %v1517 = vld [vmem:[%s5 + $0xa0] sm:$0xff]
      %v1518 = vld [vmem:[%s5 + $0xa8] sm:$0xff]
      %v1519 = vld [vmem:[%s5 + $0xb0] sm:$0xff]
      %v1520 = vld [vmem:[%s5 + $0xb8] sm:$0xff]
      %v1521 = vld [vmem:[%s5 + $0xc0] sm:$0xff]
      %v1522 = vld [vmem:[%s5 + $0xc8] sm:$0xff]
      %v1523 = vld [vmem:[%s5 + $0xd0] sm:$0xff]
      %v1524 = vld [vmem:[%s5 + $0xd8] sm:$0xff]
      %v1525 = vld [vmem:[%s5 + $0xe0] sm:$0xff]
      %v1526 = vld [vmem:[%s5 + $0xe8] sm:$0xff]
      %v1527 = vld [vmem:[%s5 + $0xf0] sm:$0xff]
      %v1528 = vld [vmem:[%s5 + $0xf8] sm:$0xff]
      %v1529 = vld [vmem:[%s5 + $0x100] sm:$0xff]
      %v1530 = vld [vmem:[%s5 + $0x108] sm:$0xff]
      %v1531 = vld [vmem:[%s5 + $0x110] sm:$0xff]
      %v1532 = vld [vmem:[%s5 + $0x118] sm:$0xff]
      %v1533 = vld [vmem:[%s5 + $0x120] sm:$0xff]
      %v1534 = vld [vmem:[%s5 + $0x128] sm:$0xff]
      %v1535 = vld [vmem:[%s5 + $0x130] sm:$0xff]
      %v1536 = vld [vmem:[%s5 + $0x138] sm:$0xff]
      %v1537 = vld [vmem:[%s5 + $0x140] sm:$0xff]
      %v1538 = vld [vmem:[%s5 + $0x148] sm:$0xff]
      %v1539 = vld [vmem:[%s5 + $0x150] sm:$0xff]
      %v1540 = vld [vmem:[%s5 + $0x158] sm:$0xff]
      %v1541 = vld [vmem:[%s5 + $0x160] sm:$0xff]
      %v1542 = vld [vmem:[%s5 + $0x168] sm:$0xff]
      %v1543 = vld [vmem:[%s5 + $0x170] sm:$0xff]
      %v1544 = vld [vmem:[%s5 + $0x178] sm:$0xff]
      %v1545 = vld [vmem:[%s5 + $0x180] sm:$0xff]
      %v1546 = vld [vmem:[%s5 + $0x188] sm:$0xff]
      %v1547 = vld [vmem:[%s5 + $0x190] sm:$0xff]
      %v1548 = vld [vmem:[%s5 + $0x198] sm:$0xff]
      %v1549 = vld [vmem:[%s5 + $0x1a0] sm:$0xff]
      %v1550 = vld [vmem:[%s5 + $0x1a8] sm:$0xff]
      %v1551 = vld [vmem:[%s5 + $0x1b0] sm:$0xff]
      %v1552 = vld [vmem:[%s5 + $0x1b8] sm:$0xff]
      %v1553 = vld [vmem:[%s5 + $0x1c0] sm:$0xff]
      %v1554 = vld [vmem:[%s5 + $0x1c8] sm:$0xff]
      %v1555 = vld [vmem:[%s5 + $0x1d0] sm:$0xff]
      %v1556 = vld [vmem:[%s5 + $0x1d8] sm:$0xff]
      %v1557 = vld [vmem:[%s5 + $0x1e0] sm:$0xff]
      %v1558 = vld [vmem:[%s5 + $0x1e8] sm:$0xff]
      %v1559 = vld [vmem:[%s5 + $0x1f0] sm:$0xff]
      %v1560 = vld [vmem:[%s5 + $0x1f8] sm:$0xff]
      %v1561 = vld [vmem:[%s5 + $0x200] sm:$0xff]
      %v1562 = vld [vmem:[%s5 + $0x208] sm:$0xff]
      %v1563 = vld [vmem:[%s5 + $0x210] sm:$0xff]
      %v1564 = vld [vmem:[%s5 + $0x218] sm:$0xff]
      %v1565 = vld [vmem:[%s5 + $0x220] sm:$0xff]
      %v1566 = vld [vmem:[%s5 + $0x228] sm:$0xff]
      %v1567 = vld [vmem:[%s5 + $0x230] sm:$0xff]
      %v1568 = vld [vmem:[%s5 + $0x238] sm:$0xff]
      %v1569 = vld [vmem:[%s5 + $0x240] sm:$0xff]
      %v1570 = vld [vmem:[%s5 + $0x248] sm:$0xff]
      %v1571 = vld [vmem:[%s5 + $0x250] sm:$0xff]
      %v1572 = vld [vmem:[%s5 + $0x258] sm:$0xff]
      %v1573 = vld [vmem:[%s5 + $0x260] sm:$0xff]
      %v1574 = vld [vmem:[%s5 + $0x268] sm:$0xff]
      %v1575 = vld [vmem:[%s5 + $0x270] sm:$0xff]
      %v1576 = vld [vmem:[%s5 + $0x278] sm:$0xff]
      %v1577 = vld [vmem:[%s5 + $0x280] sm:$0xff]
      %v1578 = vld [vmem:[%s5 + $0x288] sm:$0xff]
      %v1579 = vld [vmem:[%s5 + $0x290] sm:$0xff]
      %v1580 = vld [vmem:[%s5 + $0x298] sm:$0xff]
      %v1581 = vld [vmem:[%s5 + $0x2a0] sm:$0xff]
      %v1582 = vld [vmem:[%s5 + $0x2a8] sm:$0xff]
      %v1583 = vld [vmem:[%s5 + $0x2b0] sm:$0xff]
      %v1584 = vld [vmem:[%s5 + $0x2b8] sm:$0xff]
      %v1585 = vld [vmem:[%s5 + $0x2c0] sm:$0xff]
      %v1586 = vld [vmem:[%s5 + $0x2c8] sm:$0xff]
      %v1587 = vld [vmem:[%s5 + $0x2d0] sm:$0xff]
      %v1588 = vld [vmem:[%s5 + $0x2d8] sm:$0xff]
      %v1589 = vld [vmem:[%s5 + $0x2e0] sm:$0xff]
      %v1590 = vld [vmem:[%s5 + $0x2e8] sm:$0xff]
      %v1591 = vld [vmem:[%s5 + $0x2f0] sm:$0xff]
      %v1592 = vld [vmem:[%s5 + $0x2f8] sm:$0xff]
      %v1593 = vld [vmem:[%s5 + $0x300] sm:$0xff]
      %v1594 = vld [vmem:[%s5 + $0x308] sm:$0xff]
      %v1595 = vld [vmem:[%s5 + $0x310] sm:$0xff]
      %v1596 = vld [vmem:[%s5 + $0x318] sm:$0xff]
      %v1597 = vld [vmem:[%s5 + $0x320] sm:$0xff]
      %v1598 = vld [vmem:[%s5 + $0x328] sm:$0xff]
      %v1599 = vld [vmem:[%s5 + $0x330] sm:$0xff]
      %v1600 = vld [vmem:[%s5 + $0x338] sm:$0xff]
      %v1601 = vld [vmem:[%s5 + $0x340] sm:$0xff]
      %v1602 = vld [vmem:[%s5 + $0x348] sm:$0xff]
      %v1603 = vld [vmem:[%s5 + $0x350] sm:$0xff]
      %v1604 = vld [vmem:[%s5 + $0x358] sm:$0xff]
      %v1605 = vld [vmem:[%s5 + $0x360] sm:$0xff]
      %v1606 = vld [vmem:[%s5 + $0x368] sm:$0xff]
      %v1607 = vld [vmem:[%s5 + $0x370] sm:$0xff]
      %v1608 = vld [vmem:[%s5 + $0x378] sm:$0x33]
      %v1721 = vunpack.c.l.b16 %v1497
      %v1722 = vunpack.c.h.b16 %v1497
      %v1723 = vunpack.c.l.b16 %v1498
      %v1724 = vunpack.c.h.b16 %v1498
      %v1725 = vunpack.c.l.b16 %v1499
      %v1726 = vunpack.c.h.b16 %v1499
      %v1727 = vunpack.c.l.b16 %v1500
      %v1728 = vunpack.c.h.b16 %v1500
      %v1729 = vunpack.c.l.b16 %v1501
      %v1730 = vunpack.c.h.b16 %v1501
      %v1731 = vunpack.c.l.b16 %v1502
      %v1732 = vunpack.c.h.b16 %v1502
      %v1733 = vunpack.c.l.b16 %v1503
      %v1734 = vunpack.c.h.b16 %v1503
      %v1735 = vunpack.c.l.b16 %v1504
      %v1736 = vunpack.c.h.b16 %v1504
      %v1737 = vunpack.c.l.b16 %v1505
      %v1738 = vunpack.c.h.b16 %v1505
      %v1739 = vunpack.c.l.b16 %v1506
      %v1740 = vunpack.c.h.b16 %v1506
      %v1741 = vunpack.c.l.b16 %v1507
      %v1742 = vunpack.c.h.b16 %v1507
      %v1743 = vunpack.c.l.b16 %v1508
      %v1744 = vunpack.c.h.b16 %v1508
      %v1745 = vunpack.c.l.b16 %v1509
      %v1746 = vunpack.c.h.b16 %v1509
      %v1747 = vunpack.c.l.b16 %v1510
      %v1748 = vunpack.c.h.b16 %v1510
      %v1749 = vunpack.c.l.b16 %v1511
      %v1750 = vunpack.c.h.b16 %v1511
      %v1751 = vunpack.c.l.b16 %v1512
      %v1752 = vunpack.c.h.b16 %v1512
      %v1753 = vunpack.c.l.b16 %v1513
      %v1754 = vunpack.c.h.b16 %v1513
      %v1755 = vunpack.c.l.b16 %v1514
      %v1756 = vunpack.c.h.b16 %v1514
      %v1757 = vunpack.c.l.b16 %v1515
      %v1758 = vunpack.c.h.b16 %v1515
      %v1759 = vunpack.c.l.b16 %v1516
      %v1760 = vunpack.c.h.b16 %v1516
      %v1761 = vunpack.c.l.b16 %v1517
      %v1762 = vunpack.c.h.b16 %v1517
      %v1763 = vunpack.c.l.b16 %v1518
      %v1764 = vunpack.c.h.b16 %v1518
      %v1765 = vunpack.c.l.b16 %v1519
      %v1766 = vunpack.c.h.b16 %v1519
      %v1767 = vunpack.c.l.b16 %v1520
      %v1768 = vunpack.c.h.b16 %v1520
      %v1769 = vunpack.c.l.b16 %v1521
      %v1770 = vunpack.c.h.b16 %v1521
      %v1771 = vunpack.c.l.b16 %v1522
      %v1772 = vunpack.c.h.b16 %v1522
      %v1773 = vunpack.c.l.b16 %v1523
      %v1774 = vunpack.c.h.b16 %v1523
      %v1775 = vunpack.c.l.b16 %v1524
      %v1776 = vunpack.c.h.b16 %v1524
      %v1777 = vunpack.c.l.b16 %v1525
      %v1778 = vunpack.c.h.b16 %v1525
      %v1779 = vunpack.c.l.b16 %v1526
      %v1780 = vunpack.c.h.b16 %v1526
      %v1781 = vunpack.c.l.b16 %v1527
      %v1782 = vunpack.c.h.b16 %v1527
      %v1783 = vunpack.c.l.b16 %v1528
      %v1784 = vunpack.c.h.b16 %v1528
      %v1785 = vunpack.c.l.b16 %v1529
      %v1786 = vunpack.c.h.b16 %v1529
      %v1787 = vunpack.c.l.b16 %v1530
      %v1788 = vunpack.c.h.b16 %v1530
      %v1789 = vunpack.c.l.b16 %v1531
      %v1790 = vunpack.c.h.b16 %v1531
      %v1791 = vunpack.c.l.b16 %v1532
      %v1792 = vunpack.c.h.b16 %v1532
      %v1793 = vunpack.c.l.b16 %v1533
      %v1794 = vunpack.c.h.b16 %v1533
      %v1795 = vunpack.c.l.b16 %v1534
      %v1796 = vunpack.c.h.b16 %v1534
      %v1797 = vunpack.c.l.b16 %v1535
      %v1798 = vunpack.c.h.b16 %v1535
      %v1799 = vunpack.c.l.b16 %v1536
      %v1800 = vunpack.c.h.b16 %v1536
      %v1801 = vunpack.c.l.b16 %v1537
      %v1802 = vunpack.c.h.b16 %v1537
      %v1803 = vunpack.c.l.b16 %v1538
      %v1804 = vunpack.c.h.b16 %v1538
      %v1805 = vunpack.c.l.b16 %v1539
      %v1806 = vunpack.c.h.b16 %v1539
      %v1807 = vunpack.c.l.b16 %v1540
      %v1808 = vunpack.c.h.b16 %v1540
      %v1809 = vunpack.c.l.b16 %v1541
      %v1810 = vunpack.c.h.b16 %v1541
      %v1811 = vunpack.c.l.b16 %v1542
      %v1812 = vunpack.c.h.b16 %v1542
      %v1813 = vunpack.c.l.b16 %v1543
      %v1814 = vunpack.c.h.b16 %v1543
      %v1815 = vunpack.c.l.b16 %v1544
      %v1816 = vunpack.c.h.b16 %v1544
      %v1817 = vunpack.c.l.b16 %v1545
      %v1818 = vunpack.c.h.b16 %v1545
      %v1819 = vunpack.c.l.b16 %v1546
      %v1820 = vunpack.c.h.b16 %v1546
      %v1821 = vunpack.c.l.b16 %v1547
      %v1822 = vunpack.c.h.b16 %v1547
      %v1823 = vunpack.c.l.b16 %v1548
      %v1824 = vunpack.c.h.b16 %v1548
      %v1825 = vunpack.c.l.b16 %v1549
      %v1826 = vunpack.c.h.b16 %v1549
      %v1827 = vunpack.c.l.b16 %v1550
      %v1828 = vunpack.c.h.b16 %v1550
      %v1829 = vunpack.c.l.b16 %v1551
      %v1830 = vunpack.c.h.b16 %v1551
      %v1831 = vunpack.c.l.b16 %v1552
      %v1832 = vunpack.c.h.b16 %v1552
      %v1833 = vunpack.c.l.b16 %v1553
      %v1834 = vunpack.c.h.b16 %v1553
      %v1835 = vunpack.c.l.b16 %v1554
      %v1836 = vunpack.c.h.b16 %v1554
      %v1837 = vunpack.c.l.b16 %v1555
      %v1838 = vunpack.c.h.b16 %v1555
      %v1839 = vunpack.c.l.b16 %v1556
      %v1840 = vunpack.c.h.b16 %v1556
      %v1841 = vunpack.c.l.b16 %v1557
      %v1842 = vunpack.c.h.b16 %v1557
      %v1843 = vunpack.c.l.b16 %v1558
      %v1844 = vunpack.c.h.b16 %v1558
      %v1845 = vunpack.c.l.b16 %v1559
      %v1846 = vunpack.c.h.b16 %v1559
      %v1847 = vunpack.c.l.b16 %v1560
      %v1848 = vunpack.c.h.b16 %v1560
      %v1849 = vunpack.c.l.b16 %v1561
      %v1850 = vunpack.c.h.b16 %v1561
      %v1851 = vunpack.c.l.b16 %v1562
      %v1852 = vunpack.c.h.b16 %v1562
      %v1853 = vunpack.c.l.b16 %v1563
      %v1854 = vunpack.c.h.b16 %v1563
      %v1855 = vunpack.c.l.b16 %v1564
      %v1856 = vunpack.c.h.b16 %v1564
      %v1857 = vunpack.c.l.b16 %v1565
      %v1858 = vunpack.c.h.b16 %v1565
      %v1859 = vunpack.c.l.b16 %v1566
      %v1860 = vunpack.c.h.b16 %v1566
      %v1861 = vunpack.c.l.b16 %v1567
      %v1862 = vunpack.c.h.b16 %v1567
      %v1863 = vunpack.c.l.b16 %v1568
      %v1864 = vunpack.c.h.b16 %v1568
      %v1865 = vunpack.c.l.b16 %v1569
      %v1866 = vunpack.c.h.b16 %v1569
      %v1867 = vunpack.c.l.b16 %v1570
      %v1868 = vunpack.c.h.b16 %v1570
      %v1869 = vunpack.c.l.b16 %v1571
      %v1870 = vunpack.c.h.b16 %v1571
      %v1871 = vunpack.c.l.b16 %v1572
      %v1872 = vunpack.c.h.b16 %v1572
      %v1873 = vunpack.c.l.b16 %v1573
      %v1874 = vunpack.c.h.b16 %v1573
      %v1875 = vunpack.c.l.b16 %v1574
      %v1876 = vunpack.c.h.b16 %v1574
      %v1877 = vunpack.c.l.b16 %v1575
      %v1878 = vunpack.c.h.b16 %v1575
      %v1879 = vunpack.c.l.b16 %v1576
      %v1880 = vunpack.c.h.b16 %v1576
      %v1881 = vunpack.c.l.b16 %v1577
      %v1882 = vunpack.c.h.b16 %v1577
      %v1883 = vunpack.c.l.b16 %v1578
      %v1884 = vunpack.c.h.b16 %v1578
      %v1885 = vunpack.c.l.b16 %v1579
      %v1886 = vunpack.c.h.b16 %v1579
      %v1887 = vunpack.c.l.b16 %v1580
      %v1888 = vunpack.c.h.b16 %v1580
      %v1889 = vunpack.c.l.b16 %v1581
      %v1890 = vunpack.c.h.b16 %v1581
      %v1891 = vunpack.c.l.b16 %v1582
      %v1892 = vunpack.c.h.b16 %v1582
      %v1893 = vunpack.c.l.b16 %v1583
      %v1894 = vunpack.c.h.b16 %v1583
      %v1895 = vunpack.c.l.b16 %v1584
      %v1896 = vunpack.c.h.b16 %v1584
      %v1897 = vunpack.c.l.b16 %v1585
      %v1898 = vunpack.c.h.b16 %v1585
      %v1899 = vunpack.c.l.b16 %v1586
      %v1900 = vunpack.c.h.b16 %v1586
      %v1901 = vunpack.c.l.b16 %v1587
      %v1902 = vunpack.c.h.b16 %v1587
      %v1903 = vunpack.c.l.b16 %v1588
      %v1904 = vunpack.c.h.b16 %v1588
      %v1905 = vunpack.c.l.b16 %v1589
      %v1906 = vunpack.c.h.b16 %v1589
      %v1907 = vunpack.c.l.b16 %v1590
      %v1908 = vunpack.c.h.b16 %v1590
      %v1909 = vunpack.c.l.b16 %v1591
      %v1910 = vunpack.c.h.b16 %v1591
      %v1911 = vunpack.c.l.b16 %v1592
      %v1912 = vunpack.c.h.b16 %v1592
      %v1913 = vunpack.c.l.b16 %v1593
      %v1914 = vunpack.c.h.b16 %v1593
      %v1915 = vunpack.c.l.b16 %v1594
      %v1916 = vunpack.c.h.b16 %v1594
      %v1917 = vunpack.c.l.b16 %v1595
      %v1918 = vunpack.c.h.b16 %v1595
      %v1919 = vunpack.c.l.b16 %v1596
      %v1920 = vunpack.c.h.b16 %v1596
      %v1921 = vunpack.c.l.b16 %v1597
      %v1922 = vunpack.c.h.b16 %v1597
      %v1923 = vunpack.c.l.b16 %v1598
      %v1924 = vunpack.c.h.b16 %v1598
      %v1925 = vunpack.c.l.b16 %v1599
      %v1926 = vunpack.c.h.b16 %v1599
      %v1927 = vunpack.c.l.b16 %v1600
      %v1928 = vunpack.c.h.b16 %v1600
      %v1929 = vunpack.c.l.b16 %v1601
      %v1930 = vunpack.c.h.b16 %v1601
      %v1931 = vunpack.c.l.b16 %v1602
      %v1932 = vunpack.c.h.b16 %v1602
      %v1933 = vunpack.c.l.b16 %v1603
      %v1934 = vunpack.c.h.b16 %v1603
      %v1935 = vunpack.c.l.b16 %v1604
      %v1936 = vunpack.c.h.b16 %v1604
      %v1937 = vunpack.c.l.b16 %v1605
      %v1938 = vunpack.c.h.b16 %v1605
      %v1939 = vunpack.c.l.b16 %v1606
      %v1940 = vunpack.c.h.b16 %v1606
      %v1941 = vunpack.c.l.b16 %v1607
      %v1942 = vunpack.c.h.b16 %v1607
      %v1943 = vunpack.c.l.b16 %v1608
      %v1944 = vunpack.c.h.b16 %v1608
      %v1945 = vpack.c.b16 %v1723, %v1721
      %v1946 = vpack.c.b16 %v1724, %v1722
      %v1947 = vpack.c.b16 %v1727, %v1725
      %v1948 = vpack.c.b16 %v1728, %v1726
      %v1949 = vpack.c.b16 %v1731, %v1729
      %v1950 = vpack.c.b16 %v1732, %v1730
      %v1951 = vpack.c.b16 %v1735, %v1733
      %v1952 = vpack.c.b16 %v1736, %v1734
      %v1953 = vpack.c.b16 %v1739, %v1737
      %v1954 = vpack.c.b16 %v1740, %v1738
      %v1955 = vpack.c.b16 %v1743, %v1741
      %v1956 = vpack.c.b16 %v1744, %v1742
      %v1957 = vpack.c.b16 %v1747, %v1745
      %v1958 = vpack.c.b16 %v1748, %v1746
      %v1959 = vpack.c.b16 %v1751, %v1749
      %v1960 = vpack.c.b16 %v1752, %v1750
      %v1961 = vpack.c.b16 %v1755, %v1753
      %v1962 = vpack.c.b16 %v1756, %v1754
      %v1963 = vpack.c.b16 %v1759, %v1757
      %v1964 = vpack.c.b16 %v1760, %v1758
      %v1965 = vpack.c.b16 %v1763, %v1761
      %v1966 = vpack.c.b16 %v1764, %v1762
      %v1967 = vpack.c.b16 %v1767, %v1765
      %v1968 = vpack.c.b16 %v1768, %v1766
      %v1969 = vpack.c.b16 %v1771, %v1769
      %v1970 = vpack.c.b16 %v1772, %v1770
      %v1971 = vpack.c.b16 %v1775, %v1773
      %v1972 = vpack.c.b16 %v1776, %v1774
      %v1973 = vpack.c.b16 %v1779, %v1777
      %v1974 = vpack.c.b16 %v1780, %v1778
      %v1975 = vpack.c.b16 %v1783, %v1781
      %v1976 = vpack.c.b16 %v1784, %v1782
      %v1977 = vpack.c.b16 %v1787, %v1785
      %v1978 = vpack.c.b16 %v1788, %v1786
      %v1979 = vpack.c.b16 %v1791, %v1789
      %v1980 = vpack.c.b16 %v1792, %v1790
      %v1981 = vpack.c.b16 %v1795, %v1793
      %v1982 = vpack.c.b16 %v1796, %v1794
      %v1983 = vpack.c.b16 %v1799, %v1797
      %v1984 = vpack.c.b16 %v1800, %v1798
      %v1985 = vpack.c.b16 %v1803, %v1801
      %v1986 = vpack.c.b16 %v1804, %v1802
      %v1987 = vpack.c.b16 %v1807, %v1805
      %v1988 = vpack.c.b16 %v1808, %v1806
      %v1989 = vpack.c.b16 %v1811, %v1809
      %v1990 = vpack.c.b16 %v1812, %v1810
      %v1991 = vpack.c.b16 %v1815, %v1813
      %v1992 = vpack.c.b16 %v1816, %v1814
      %v1993 = vpack.c.b16 %v1819, %v1817
      %v1994 = vpack.c.b16 %v1820, %v1818
      %v1995 = vpack.c.b16 %v1823, %v1821
      %v1996 = vpack.c.b16 %v1824, %v1822
      %v1997 = vpack.c.b16 %v1827, %v1825
      %v1998 = vpack.c.b16 %v1828, %v1826
      %v1999 = vpack.c.b16 %v1831, %v1829
      %v2000 = vpack.c.b16 %v1832, %v1830
      %v2001 = vpack.c.b16 %v1835, %v1833
      %v2002 = vpack.c.b16 %v1836, %v1834
      %v2003 = vpack.c.b16 %v1839, %v1837
      %v2004 = vpack.c.b16 %v1840, %v1838
      %v2005 = vpack.c.b16 %v1843, %v1841
      %v2006 = vpack.c.b16 %v1844, %v1842
      %v2007 = vpack.c.b16 %v1847, %v1845
      %v2008 = vpack.c.b16 %v1848, %v1846
      %v2009 = vpack.c.b16 %v1851, %v1849
      %v2010 = vpack.c.b16 %v1852, %v1850
      %v2011 = vpack.c.b16 %v1855, %v1853
      %v2012 = vpack.c.b16 %v1856, %v1854
      %v2013 = vpack.c.b16 %v1859, %v1857
      %v2014 = vpack.c.b16 %v1860, %v1858
      %v2015 = vpack.c.b16 %v1863, %v1861
      %v2016 = vpack.c.b16 %v1864, %v1862
      %v2017 = vpack.c.b16 %v1867, %v1865
      %v2018 = vpack.c.b16 %v1868, %v1866
      %v2019 = vpack.c.b16 %v1871, %v1869
      %v2020 = vpack.c.b16 %v1872, %v1870
      %v2021 = vpack.c.b16 %v1875, %v1873
      %v2022 = vpack.c.b16 %v1876, %v1874
      %v2023 = vpack.c.b16 %v1879, %v1877
      %v2024 = vpack.c.b16 %v1880, %v1878
      %v2025 = vpack.c.b16 %v1883, %v1881
      %v2026 = vpack.c.b16 %v1884, %v1882
      %v2027 = vpack.c.b16 %v1887, %v1885
      %v2028 = vpack.c.b16 %v1888, %v1886
      %v2029 = vpack.c.b16 %v1891, %v1889
      %v2030 = vpack.c.b16 %v1892, %v1890
      %v2031 = vpack.c.b16 %v1895, %v1893
      %v2032 = vpack.c.b16 %v1896, %v1894
      %v2033 = vpack.c.b16 %v1899, %v1897
      %v2034 = vpack.c.b16 %v1900, %v1898
      %v2035 = vpack.c.b16 %v1903, %v1901
      %v2036 = vpack.c.b16 %v1904, %v1902
      %v2037 = vpack.c.b16 %v1907, %v1905
      %v2038 = vpack.c.b16 %v1908, %v1906
      %v2039 = vpack.c.b16 %v1911, %v1909
      %v2040 = vpack.c.b16 %v1912, %v1910
      %v2041 = vpack.c.b16 %v1915, %v1913
      %v2042 = vpack.c.b16 %v1916, %v1914
      %v2043 = vpack.c.b16 %v1919, %v1917
      %v2044 = vpack.c.b16 %v1920, %v1918
      %v2045 = vpack.c.b16 %v1923, %v1921
      %v2046 = vpack.c.b16 %v1924, %v1922
      %v2047 = vpack.c.b16 %v1927, %v1925
      %v2048 = vpack.c.b16 %v1928, %v1926
      %v2049 = vpack.c.b16 %v1931, %v1929
      %v2050 = vpack.c.b16 %v1932, %v1930
      %v2051 = vpack.c.b16 %v1935, %v1933
      %v2052 = vpack.c.b16 %v1936, %v1934
      %v2053 = vpack.c.b16 %v1939, %v1937
      %v2054 = vpack.c.b16 %v1940, %v1938
      %v2055 = vpack.c.b16 %v1943, %v1941
      %v2056 = vpack.c.b16 %v1944, %v1942
      %v2168 = vsel %vm1488, %v1496, 0
      %vm2170 = vcmask 1045504
      %v2172 = vsel %vm2170, %v2055, 0
      %v2175 = vsel %vm2170, %v2056, 0
      %2177 = vmatprep.subr.bf16.mxu0 %v1946
      %2178 = vmatpush1.bf16.msra.mxu0 %v1945
      %2179 = vmatprep.subr.bf16.mxu0 %v1948
      %2180 = vmatpush1.bf16.msra.mxu0 %v1947
      %2181 = vmatprep.subr.bf16.mxu0 %v1950
      %2182 = vmatpush1.bf16.msra.mxu0 %v1949
      %2183 = vmatprep.subr.bf16.mxu0 %v1952
      %2184 = vmatpush1.bf16.msra.mxu0 %v1951
      %2185 = vmatprep.subr.bf16.mxu0 %v1954
      %2186 = vmatpush1.bf16.msra.mxu0 %v1953
      %2187 = vmatprep.subr.bf16.mxu0 %v1956
      %2188 = vmatpush1.bf16.msra.mxu0 %v1955
      %2189 = vmatprep.subr.bf16.mxu0 %v1958
      %2190 = vmatpush1.bf16.msra.mxu0 %v1957
      %2191 = vmatprep.subr.bf16.mxu0 %v1960
      %2192 = vmatpush1.bf16.msra.mxu0 %v1959
      %2193 = vmatprep.subr.bf16.mxu0 %v1962
      %2194 = vmatpush1.bf16.msra.mxu0 %v1961
      %2195 = vmatprep.subr.bf16.mxu0 %v1964
      %2196 = vmatpush1.bf16.msra.mxu0 %v1963
      %2197 = vmatprep.subr.bf16.mxu0 %v1966
      %2198 = vmatpush1.bf16.msra.mxu0 %v1965
      %2199 = vmatprep.subr.bf16.mxu0 %v1968
      %2200 = vmatpush1.bf16.msra.mxu0 %v1967
      %2201 = vmatprep.subr.bf16.mxu0 %v1970
      %2202 = vmatpush1.bf16.msra.mxu0 %v1969
      %2203 = vmatprep.subr.bf16.mxu0 %v1972
      %2204 = vmatpush1.bf16.msra.mxu0 %v1971
      %2205 = vmatprep.subr.bf16.mxu0 %v1974
      %2206 = vmatpush1.bf16.msra.mxu0 %v1973
      %2207 = vmatprep.subr.bf16.mxu0 %v1976
      %2208 = vmatpush1.bf16.msra.mxu0 %v1975
      %2209 = vmatprep.mubr.bf16.mxu0 %v1491
      %2210 = vmatmul.mubr.bf16.gmra.mrb[0].mxu0 %v1490
      %v2211 = vpop.f32.mrb[0].mxu0
      %v2212 = vadd.f32 0.0, %v2211
      %v2213 = vpop.f32.mrb[0].mxu0
      %v2214 = vadd.f32 0.0, %v2213
      %v2215 = vpop.f32.mrb[0].mxu0
      %v2216 = vadd.f32 0.0, %v2215
      %v2217 = vpop.f32.mrb[0].mxu0
      %v2218 = vadd.f32 0.0, %v2217
      %2219 = vdwg.mxu0
      %2220 = vmatprep.subr.bf16.mxu0 %v1978
      %2221 = vmatpush1.bf16.msra.mxu0 %v1977
      %2222 = vmatprep.subr.bf16.mxu0 %v1980
      %2223 = vmatpush1.bf16.msra.mxu0 %v1979
      %2224 = vmatprep.subr.bf16.mxu0 %v1982
      %2225 = vmatpush1.bf16.msra.mxu0 %v1981
      %2226 = vmatprep.subr.bf16.mxu0 %v1984
      %2227 = vmatpush1.bf16.msra.mxu0 %v1983
      %2228 = vmatprep.subr.bf16.mxu0 %v1986
      %2229 = vmatpush1.bf16.msra.mxu0 %v1985
      %2230 = vmatprep.subr.bf16.mxu0 %v1988
      %2231 = vmatpush1.bf16.msra.mxu0 %v1987
      %2232 = vmatprep.subr.bf16.mxu0 %v1990
      %2233 = vmatpush1.bf16.msra.mxu0 %v1989
      %2234 = vmatprep.subr.bf16.mxu0 %v1992
      %2235 = vmatpush1.bf16.msra.mxu0 %v1991
      %2236 = vmatprep.subr.bf16.mxu0 %v1994
      %2237 = vmatpush1.bf16.msra.mxu0 %v1993
      %2238 = vmatprep.subr.bf16.mxu0 %v1996
      %2239 = vmatpush1.bf16.msra.mxu0 %v1995
      %2240 = vmatprep.subr.bf16.mxu0 %v1998
      %2241 = vmatpush1.bf16.msra.mxu0 %v1997
      %2242 = vmatprep.subr.bf16.mxu0 %v2000
      %2243 = vmatpush1.bf16.msra.mxu0 %v1999
      %2244 = vmatprep.subr.bf16.mxu0 %v2002
      %2245 = vmatpush1.bf16.msra.mxu0 %v2001
      %2246 = vmatprep.subr.bf16.mxu0 %v2004
      %2247 = vmatpush1.bf16.msra.mxu0 %v2003
      %2248 = vmatprep.subr.bf16.mxu0 %v2006
      %2249 = vmatpush1.bf16.msra.mxu0 %v2005
      %2250 = vmatprep.subr.bf16.mxu0 %v2008
      %2251 = vmatpush1.bf16.msra.mxu0 %v2007
      %2252 = vmatprep.mubr.bf16.mxu0 %v1493
      %2253 = vmatmul.mubr.bf16.gmra.mrb[0].mxu0 %v1492
      %v2254 = vpop.f32.mrb[0].mxu0
      %v2255 = vadd.f32 %v2212, %v2254
      %v2256 = vpop.f32.mrb[0].mxu0
      %v2257 = vadd.f32 %v2214, %v2256
      %v2258 = vpop.f32.mrb[0].mxu0
      %v2259 = vadd.f32 %v2216, %v2258
      %v2260 = vpop.f32.mrb[0].mxu0
      %v2261 = vadd.f32 %v2218, %v2260
      %2262 = vdwg.mxu0
      %2263 = vmatprep.subr.bf16.mxu0 %v2010
      %2264 = vmatpush1.bf16.msra.mxu0 %v2009
      %2265 = vmatprep.subr.bf16.mxu0 %v2012
      %2266 = vmatpush1.bf16.msra.mxu0 %v2011
      %2267 = vmatprep.subr.bf16.mxu0 %v2014
      %2268 = vmatpush1.bf16.msra.mxu0 %v2013
      %2269 = vmatprep.subr.bf16.mxu0 %v2016
      %2270 = vmatpush1.bf16.msra.mxu0 %v2015
      %2271 = vmatprep.subr.bf16.mxu0 %v2018
      %2272 = vmatpush1.bf16.msra.mxu0 %v2017
      %2273 = vmatprep.subr.bf16.mxu0 %v2020
      %2274 = vmatpush1.bf16.msra.mxu0 %v2019
      %2275 = vmatprep.subr.bf16.mxu0 %v2022
      %2276 = vmatpush1.bf16.msra.mxu0 %v2021
      %2277 = vmatprep.subr.bf16.mxu0 %v2024
      %2278 = vmatpush1.bf16.msra.mxu0 %v2023
      %2279 = vmatprep.subr.bf16.mxu0 %v2026
      %2280 = vmatpush1.bf16.msra.mxu0 %v2025
      %2281 = vmatprep.subr.bf16.mxu0 %v2028
      %2282 = vmatpush1.bf16.msra.mxu0 %v2027
      %2283 = vmatprep.subr.bf16.mxu0 %v2030
      %2284 = vmatpush1.bf16.msra.mxu0 %v2029
      %2285 = vmatprep.subr.bf16.mxu0 %v2032
      %2286 = vmatpush1.bf16.msra.mxu0 %v2031
      %2287 = vmatprep.subr.bf16.mxu0 %v2034
      %2288 = vmatpush1.bf16.msra.mxu0 %v2033
      %2289 = vmatprep.subr.bf16.mxu0 %v2036
      %2290 = vmatpush1.bf16.msra.mxu0 %v2035
      %2291 = vmatprep.subr.bf16.mxu0 %v2038
      %2292 = vmatpush1.bf16.msra.mxu0 %v2037
      %2293 = vmatprep.subr.bf16.mxu0 %v2040
      %2294 = vmatpush1.bf16.msra.mxu0 %v2039
      %2295 = vmatprep.mubr.bf16.mxu0 %v1495
      %2296 = vmatmul.mubr.bf16.gmra.mrb[0].mxu0 %v1494
      %v2297 = vpop.f32.mrb[0].mxu0
      %v2298 = vadd.f32 %v2255, %v2297
      %v2299 = vpop.f32.mrb[0].mxu0
      %v2300 = vadd.f32 %v2257, %v2299
      %v2301 = vpop.f32.mrb[0].mxu0
      %v2302 = vadd.f32 %v2259, %v2301
      %v2303 = vpop.f32.mrb[0].mxu0
      %v2304 = vadd.f32 %v2261, %v2303
      %2305 = vdwg.mxu0
      %2306 = vmatprep.subr.bf16.mxu0 %v2042
      %2307 = vmatpush1.bf16.msra.mxu0 %v2041
      %2308 = vmatprep.subr.bf16.mxu0 %v2044
      %2309 = vmatpush1.bf16.msra.mxu0 %v2043
      %2310 = vmatprep.subr.bf16.mxu0 %v2046
      %2311 = vmatpush1.bf16.msra.mxu0 %v2045
      %2312 = vmatprep.subr.bf16.mxu0 %v2048
      %2313 = vmatpush1.bf16.msra.mxu0 %v2047
      %2314 = vmatprep.subr.bf16.mxu0 %v2050
      %2315 = vmatpush1.bf16.msra.mxu0 %v2049
      %2316 = vmatprep.subr.bf16.mxu0 %v2052
      %2317 = vmatpush1.bf16.msra.mxu0 %v2051
      %2318 = vmatprep.subr.bf16.mxu0 %v2054
      %2319 = vmatpush1.bf16.msra.mxu0 %v2053
      %2320 = vmatprep.subr.bf16.mxu0 %v2175
      %2321 = vmatpush1.bf16.msra.mxu0 %v2172
      %2322 = vmatprep.subr.bf16.mxu0 0
      %2323 = vmatpush1.bf16.msra.mxu0 0
      %2324 = vmatprep.subr.bf16.mxu0 0
      %2325 = vmatpush1.bf16.msra.mxu0 0
      %2326 = vmatprep.subr.bf16.mxu0 0
      %2327 = vmatpush1.bf16.msra.mxu0 0
      %2328 = vmatprep.subr.bf16.mxu0 0
      %2329 = vmatpush1.bf16.msra.mxu0 0
      %2330 = vmatprep.subr.bf16.mxu0 0
      %2331 = vmatpush1.bf16.msra.mxu0 0
      %2332 = vmatprep.subr.bf16.mxu0 0
      %2333 = vmatpush1.bf16.msra.mxu0 0
      %2334 = vmatprep.subr.bf16.mxu0 0
      %2335 = vmatpush1.bf16.msra.mxu0 0
      %2336 = vmatprep.subr.bf16.mxu0 0
      %2337 = vmatpush1.bf16.msra.mxu0 0
      %2338 = vmatprep.mubr.bf16.mxu0 0
      %2339 = vmatmul.mubr.bf16.gmra.mrb[0].mxu0 %v2168
      %v2340 = vpop.f32.mrb[0].mxu0
      %v2341 = vadd.f32 %v2298, %v2340
      %v2342 = vpop.f32.mrb[0].mxu0
      %v2343 = vadd.f32 %v2300, %v2342
      %v2344 = vpop.f32.mrb[0].mxu0
      %v2345 = vadd.f32 %v2302, %v2344
      %v2346 = vpop.f32.mrb[0].mxu0
      %v2347 = vadd.f32 %v2304, %v2346
      %2348 = vdwg.mxu0
      %v2349 = vpack.c.bf16 %v2345, %v2341
      %v2350 = vpack.c.bf16 %v2347, %v2343
      %2351 = vst [vmem:[#allocation3] sm:$0xff] %v2349
      %vm2352 = vcmask 785408
      %2353 = vst.msk [vmem:[#allocation3 + $0x8] sm:$0xff] %vm2352, %v2350
      %v2354 = vld [vmem:[%s3] sm:$0xff]
      %v2355 = vld [vmem:[%s3 + $0x8] sm:$0xff]
      %v2356 = vld [vmem:[%s3 + $0x10] sm:$0xff]
      %v2357 = vld [vmem:[%s3 + $0x18] sm:$0xff]
      %v2358 = vld [vmem:[%s4] sm:$0xff]
      %v2359 = vld [vmem:[%s4 + $0x8] sm:$0xff]
      %v2360 = vld [vmem:[#allocation3] sm:$0xff]
      %v2361 = vld [vmem:[#allocation3 + $0x8] sm:$0xff]
      %2364 = vrot.lane.b32.xlu0 %v2360, 127
      %v2365 = vpop.permute.xlu0 %2364
      %2366 = vrot.lane.b32.xlu0 %v2361, 127
      %v2367 = vpop.permute.xlu0 %2366
      %v2368 = vsel %vm345, %v2365, %v2367
      %2371 = vrot.lane.b32.xlu0 %v2360, 126
      %v2372 = vpop.permute.xlu0 %2371
      %2373 = vrot.lane.b32.xlu0 %v2361, 126
      %v2374 = vpop.permute.xlu0 %2373
      %v2375 = vsel %vm373, %v2372, %v2374
      %2378 = vrot.lane.b32.xlu0 %v2360, 125
      %v2379 = vpop.permute.xlu0 %2378
      %2380 = vrot.lane.b32.xlu0 %v2361, 125
      %v2381 = vpop.permute.xlu0 %2380
      %v2382 = vsel %vm401, %v2379, %v2381
      %2385 = vrot.lane.b32.xlu0 %v2360, 124
      %v2386 = vpop.permute.xlu0 %2385
      %2387 = vrot.lane.b32.xlu0 %v2361, 124
      %v2388 = vpop.permute.xlu0 %2387
      %v2389 = vsel %vm429, %v2386, %v2388
      %2392 = vrot.lane.b32.xlu0 %v2360, 112
      %v2393 = vpop.permute.xlu0 %2392
      %2394 = vrot.lane.b32.xlu0 %v2361, 112
      %v2395 = vpop.permute.xlu0 %2394
      %vm2396 = vcmask 916480
      %v2397 = vsel %vm2396, %v2393, %v2395
      %2400 = vrot.lane.b32.xlu0 %v2360, 111
      %v2401 = vpop.permute.xlu0 %2400
      %2402 = vrot.lane.b32.xlu0 %v2361, 111
      %v2403 = vpop.permute.xlu0 %2402
      %vm2404 = vcmask 908288
      %v2405 = vsel %vm2404, %v2401, %v2403
      %2408 = vrot.lane.b32.xlu0 %v2360, 110
      %v2409 = vpop.permute.xlu0 %2408
      %2410 = vrot.lane.b32.xlu0 %v2361, 110
      %v2411 = vpop.permute.xlu0 %2410
      %vm2412 = vcmask 900096
      %v2413 = vsel %vm2412, %v2409, %v2411
      %2416 = vrot.lane.b32.xlu0 %v2360, 109
      %v2417 = vpop.permute.xlu0 %2416
      %2418 = vrot.lane.b32.xlu0 %v2361, 109
      %v2419 = vpop.permute.xlu0 %2418
      %vm2420 = vcmask 891904
      %v2421 = vsel %vm2420, %v2417, %v2419
      %2424 = vrot.lane.b32.xlu0 %v2360, 108
      %v2425 = vpop.permute.xlu0 %2424
      %2426 = vrot.lane.b32.xlu0 %v2361, 108
      %v2427 = vpop.permute.xlu0 %2426
      %vm2428 = vcmask 883712
      %v2429 = vsel %vm2428, %v2425, %v2427
      %2432 = vrot.lane.b32.xlu0 %v2360, 96
      %v2433 = vpop.permute.xlu0 %2432
      %2434 = vrot.lane.b32.xlu0 %v2361, 96
      %v2435 = vpop.permute.xlu0 %2434
      %v2436 = vsel %vm462, %v2433, %v2435
      %2439 = vrot.lane.b32.xlu0 %v2360, 95
      %v2440 = vpop.permute.xlu0 %2439
      %2441 = vrot.lane.b32.xlu0 %v2361, 95
      %v2442 = vpop.permute.xlu0 %2441
      %v2443 = vsel %vm493, %v2440, %v2442
      %2446 = vrot.lane.b32.xlu0 %v2360, 94
      %v2447 = vpop.permute.xlu0 %2446
      %2448 = vrot.lane.b32.xlu0 %v2361, 94
      %v2449 = vpop.permute.xlu0 %2448
      %v2450 = vsel %vm524, %v2447, %v2449
      %2453 = vrot.lane.b32.xlu0 %v2360, 93
      %v2454 = vpop.permute.xlu0 %2453
      %2455 = vrot.lane.b32.xlu0 %v2361, 93
      %v2456 = vpop.permute.xlu0 %2455
      %v2457 = vsel %vm555, %v2454, %v2456
      %2460 = vrot.lane.b32.xlu0 %v2360, 92
      %v2461 = vpop.permute.xlu0 %2460
      %2462 = vrot.lane.b32.xlu0 %v2361, 92
      %v2463 = vpop.permute.xlu0 %2462
      %v2464 = vsel %vm586, %v2461, %v2463
      %2467 = vrot.lane.b32.xlu0 %v2360, 80
      %v2468 = vpop.permute.xlu0 %2467
      %2469 = vrot.lane.b32.xlu0 %v2361, 80
      %v2470 = vpop.permute.xlu0 %2469
      %vm2471 = vcmask 654336
      %v2472 = vsel %vm2471, %v2468, %v2470
      %2475 = vrot.lane.b32.xlu0 %v2360, 113
      %v2476 = vpop.permute.xlu0 %2475
      %2477 = vrot.lane.b32.xlu0 %v2361, 113
      %v2478 = vpop.permute.xlu0 %2477
      %vm2479 = vcmask 924672
      %v2480 = vsel %vm2479, %v2476, %v2478
      %2481 = vrot.lane.b32.xlu0 %v2360, 79
      %v2482 = vpop.permute.xlu0 %2481
      %2483 = vrot.lane.b32.xlu0 %v2361, 79
      %v2484 = vpop.permute.xlu0 %2483
      %2485 = vrot.lane.b32.xlu0 %v2368, 79
      %v2486 = vpop.permute.xlu0 %2485
      %2487 = vrot.lane.b32.xlu0 %v2367, 79
      %v2488 = vpop.permute.xlu0 %2487
      %2489 = vrot.lane.b32.xlu0 %v2375, 79
      %v2490 = vpop.permute.xlu0 %2489
      %2491 = vrot.lane.b32.xlu0 %v2374, 79
      %v2492 = vpop.permute.xlu0 %2491
      %2493 = vrot.lane.b32.xlu0 %v2382, 79
      %v2494 = vpop.permute.xlu0 %2493
      %2495 = vrot.lane.b32.xlu0 %v2381, 79
      %v2496 = vpop.permute.xlu0 %2495
      %2497 = vrot.lane.b32.xlu0 %v2480, 79
      %v2498 = vpop.permute.xlu0 %2497
      %2499 = vrot.lane.b32.xlu0 %v2478, 79
      %v2500 = vpop.permute.xlu0 %2499
      %2501 = vrot.lane.b32.xlu0 %v2397, 79
      %v2502 = vpop.permute.xlu0 %2501
      %2503 = vrot.lane.b32.xlu0 %v2395, 79
      %v2504 = vpop.permute.xlu0 %2503
      %2505 = vrot.lane.b32.xlu0 %v2405, 79
      %v2506 = vpop.permute.xlu0 %2505
      %2507 = vrot.lane.b32.xlu0 %v2403, 79
      %v2508 = vpop.permute.xlu0 %2507
      %2509 = vrot.lane.b32.xlu0 %v2413, 79
      %v2510 = vpop.permute.xlu0 %2509
      %2511 = vrot.lane.b32.xlu0 %v2411, 79
      %v2512 = vpop.permute.xlu0 %2511
      %2513 = vrot.lane.b32.xlu0 %v2421, 79
      %v2514 = vpop.permute.xlu0 %2513
      %2515 = vrot.lane.b32.xlu0 %v2419, 79
      %v2516 = vpop.permute.xlu0 %2515
      %vm2517 = vcmask 646144
      %v2518 = vsel %vm2517, %v2482, %v2484
      %v2519 = vsel %vm2517, %v2486, %v2488
      %v2520 = vsel %vm2517, %v2490, %v2492
      %v2521 = vsel %vm2517, %v2494, %v2496
      %v2522 = vsel %vm2517, %v2498, %v2500
      %v2523 = vsel %vm2517, %v2502, %v2504
      %v2524 = vsel %vm2517, %v2506, %v2508
      %v2525 = vsel %vm2517, %v2510, %v2512
      %v2526 = vsel %vm2517, %v2514, %v2516
      %2546 = vset.pattern.permute.xlu0 0
      %2547 = vperm.xlu0 %2546, %v2358
      %v2548 = vpop.permute.xlu0 %2547
      %2551 = vset.pattern.permute.xlu0 0
      %2552 = vperm.xlu0 %2551, %v2359
      %v2553 = vpop.permute.xlu0 %2552
      %v2559 = vunpack.c.l.b16 %v2354
      %v2560 = vunpack.c.h.b16 %v2354
      %v2561 = vunpack.c.l.b16 %v2355
      %v2562 = vunpack.c.h.b16 %v2355
      %v2563 = vunpack.c.l.b16 %v2356
      %v2564 = vunpack.c.h.b16 %v2356
      %v2565 = vunpack.c.l.b16 %v2357
      %v2566 = vunpack.c.h.b16 %v2357
      %v2567 = vpack.c.b16 %v2563, %v2559
      %v2568 = vpack.c.b16 %v2564, %v2560
      %v2569 = vpack.c.b16 %v2565, %v2561
      %v2570 = vpack.c.b16 %v2566, %v2562
      %v2575 = vsel %vm1117, %v2570, 0
      %2577 = vmatprep.subr.bf16.mxu0 %v2361
      %2578 = vmatpush1.bf16.msra.mxu0 %v2360
      %2579 = vmatprep.subr.bf16.mxu0 %v2367
      %2580 = vmatpush1.bf16.msra.mxu0 %v2368
      %2581 = vmatprep.subr.bf16.mxu0 %v2374
      %2582 = vmatpush1.bf16.msra.mxu0 %v2375
      %2583 = vmatprep.subr.bf16.mxu0 %v2381
      %2584 = vmatpush1.bf16.msra.mxu0 %v2382
      %2585 = vmatprep.subr.bf16.mxu0 %v2388
      %2586 = vmatpush1.bf16.msra.mxu0 %v2389
      %2587 = vmatprep.subr.bf16.mxu0 %v2395
      %2588 = vmatpush1.bf16.msra.mxu0 %v2397
      %2589 = vmatprep.subr.bf16.mxu0 %v2403
      %2590 = vmatpush1.bf16.msra.mxu0 %v2405
      %2591 = vmatprep.subr.bf16.mxu0 %v2411
      %2592 = vmatpush1.bf16.msra.mxu0 %v2413
      %2593 = vmatprep.subr.bf16.mxu0 %v2419
      %2594 = vmatpush1.bf16.msra.mxu0 %v2421
      %2595 = vmatprep.subr.bf16.mxu0 %v2427
      %2596 = vmatpush1.bf16.msra.mxu0 %v2429
      %2597 = vmatprep.subr.bf16.mxu0 %v2435
      %2598 = vmatpush1.bf16.msra.mxu0 %v2436
      %2599 = vmatprep.subr.bf16.mxu0 %v2442
      %2600 = vmatpush1.bf16.msra.mxu0 %v2443
      %2601 = vmatprep.subr.bf16.mxu0 %v2449
      %2602 = vmatpush1.bf16.msra.mxu0 %v2450
      %2603 = vmatprep.subr.bf16.mxu0 %v2456
      %2604 = vmatpush1.bf16.msra.mxu0 %v2457
      %2605 = vmatprep.subr.bf16.mxu0 %v2463
      %2606 = vmatpush1.bf16.msra.mxu0 %v2464
      %2607 = vmatprep.subr.bf16.mxu0 %v2470
      %2608 = vmatpush1.bf16.msra.mxu0 %v2472
      %2609 = vmatprep.mubr.bf16.mxu0 %v2568
      %2610 = vmatmul.mubr.bf16.gmra.mrb[0].mxu0 %v2567
      %v2611 = vpop.f32.mrb[0].mxu0
      %v2612 = vadd.f32 %v2548, %v2611
      %v2613 = vpop.f32.mrb[0].mxu0
      %v2614 = vadd.f32 %v2548, %v2613
      %v2615 = vpop.f32.mrb[0].mxu0
      %v2616 = vadd.f32 %v2553, %v2615
      %v2617 = vpop.f32.mrb[0].mxu0
      %v2618 = vadd.f32 %v2553, %v2617
      %2619 = vdwg.mxu0
      %2620 = vmatprep.subr.bf16.mxu0 %v2484
      %2621 = vmatpush1.bf16.msra.mxu0 %v2518
      %2622 = vmatprep.subr.bf16.mxu0 %v2488
      %2623 = vmatpush1.bf16.msra.mxu0 %v2519
      %2624 = vmatprep.subr.bf16.mxu0 %v2492
      %2625 = vmatpush1.bf16.msra.mxu0 %v2520
      %2626 = vmatprep.subr.bf16.mxu0 %v2496
      %2627 = vmatpush1.bf16.msra.mxu0 %v2521
      %2628 = vmatprep.subr.bf16.mxu0 %v2500
      %2629 = vmatpush1.bf16.msra.mxu0 %v2522
      %2630 = vmatprep.subr.bf16.mxu0 %v2504
      %2631 = vmatpush1.bf16.msra.mxu0 %v2523
      %2632 = vmatprep.subr.bf16.mxu0 %v2508
      %2633 = vmatpush1.bf16.msra.mxu0 %v2524
      %2634 = vmatprep.subr.bf16.mxu0 %v2512
      %2635 = vmatpush1.bf16.msra.mxu0 %v2525
      %2636 = vmatprep.subr.bf16.mxu0 %v2516
      %2637 = vmatpush1.bf16.msra.mxu0 %v2526
      %2638 = vmatprep.subr.bf16.mxu0 0
      %2639 = vmatpush1.bf16.msra.mxu0 0
      %2640 = vmatprep.subr.bf16.mxu0 0
      %2641 = vmatpush1.bf16.msra.mxu0 0
      %2642 = vmatprep.subr.bf16.mxu0 0
      %2643 = vmatpush1.bf16.msra.mxu0 0
      %2644 = vmatprep.subr.bf16.mxu0 0
      %2645 = vmatpush1.bf16.msra.mxu0 0
      %2646 = vmatprep.subr.bf16.mxu0 0
      %2647 = vmatpush1.bf16.msra.mxu0 0
      %2648 = vmatprep.subr.bf16.mxu0 0
      %2649 = vmatpush1.bf16.msra.mxu0 0
      %2650 = vmatprep.subr.bf16.mxu0 0
      %2651 = vmatpush1.bf16.msra.mxu0 0
      %2652 = vmatprep.mubr.bf16.mxu0 %v2575
      %2653 = vmatmul.mubr.bf16.gmra.mrb[0].mxu0 %v2569
      %v2654 = vpop.f32.mrb[0].mxu0
      %v2655 = vadd.f32 %v2612, %v2654
      %v2656 = vpop.f32.mrb[0].mxu0
      %v2657 = vadd.f32 %v2614, %v2656
      %v2658 = vpop.f32.mrb[0].mxu0
      %v2659 = vadd.f32 %v2616, %v2658
      %v2660 = vpop.f32.mrb[0].mxu0
      %v2661 = vadd.f32 %v2618, %v2660
      %2662 = vdwg.mxu0
      %v2663 = vmax.f32 %v2655, 0.0
      %v2664 = vmax.f32 %v2657, 0.0
      %v2665 = vmax.f32 %v2659, 0.0
      %v2666 = vmax.f32 %v2661, 0.0
      %v2667 = vpack.c.bf16 %v2665, %v2663
      %v2668 = vpack.c.bf16 %v2666, %v2664
      %2669 = vst [vmem:[#allocation4] sm:$0xff] %v2667
      %vm2670 = vcmask 211968
      %2671 = vst.msk [vmem:[#allocation4 + $0x8] sm:$0xff] %vm2670, %v2668
      %v2672 = vld [vmem:[#allocation4] sm:$0xff]
      %v2673 = vld [vmem:[#allocation4 + $0x8] sm:$0xff]
      %v2674 = vld [vmem:[%s6] sm:$0xf]
      %v2675 = vld [vmem:[%s6 + $0x4] sm:$0xf]
      %v2676 = vld [vmem:[%s6 + $0x8] sm:$0xf]
      %v2677 = vld [vmem:[%s6 + $0xc] sm:$0xf]
      %v2678 = vld [vmem:[%s6 + $0x10] sm:$0xf]
      %v2679 = vld [vmem:[%s6 + $0x14] sm:$0xf]
      %v2680 = vld [vmem:[%s6 + $0x18] sm:$0xf]
      %v2681 = vld [vmem:[%s6 + $0x1c] sm:$0xf]
      %v2682 = vld [vmem:[%s6 + $0x20] sm:$0xf]
      %v2683 = vld [vmem:[%s6 + $0x24] sm:$0xf]
      %v2684 = vld [vmem:[%s6 + $0x28] sm:$0xf]
      %v2685 = vld [vmem:[%s6 + $0x2c] sm:$0xf]
      %v2686 = vld [vmem:[%s6 + $0x30] sm:$0xf]
      %v2687 = vld [vmem:[%s6 + $0x34] sm:$0xf]
      %v2688 = vld [vmem:[%s6 + $0x38] sm:$0xf]
      %v2689 = vld [vmem:[%s6 + $0x3c] sm:$0xf]
      %v2690 = vld [vmem:[%s6 + $0x40] sm:$0xf]
      %v2691 = vld [vmem:[%s6 + $0x44] sm:$0xf]
      %v2692 = vld [vmem:[%s6 + $0x48] sm:$0xf]
      %v2693 = vld [vmem:[%s6 + $0x4c] sm:$0x1]
      %v2714 = vunpack.c.l.b16 %v2674
      %v2715 = vunpack.c.l.b16 %v2675
      %v2716 = vunpack.c.l.b16 %v2676
      %v2717 = vunpack.c.l.b16 %v2677
      %v2718 = vunpack.c.l.b16 %v2678
      %v2719 = vunpack.c.l.b16 %v2679
      %v2720 = vunpack.c.l.b16 %v2680
      %v2721 = vunpack.c.l.b16 %v2681
      %v2722 = vunpack.c.l.b16 %v2682
      %v2723 = vunpack.c.l.b16 %v2683
      %v2724 = vunpack.c.l.b16 %v2684
      %v2725 = vunpack.c.l.b16 %v2685
      %v2726 = vunpack.c.l.b16 %v2686
      %v2727 = vunpack.c.l.b16 %v2687
      %v2728 = vunpack.c.l.b16 %v2688
      %v2729 = vunpack.c.l.b16 %v2689
      %v2730 = vunpack.c.l.b16 %v2690
      %v2731 = vunpack.c.l.b16 %v2691
      %v2732 = vunpack.c.l.b16 %v2692
      %v2733 = vunpack.c.l.b16 %v2693
      %v2734 = vpack.c.b16 %v2715, %v2714
      %v2735 = vpack.c.b16 %v2717, %v2716
      %v2736 = vpack.c.b16 %v2719, %v2718
      %v2737 = vpack.c.b16 %v2721, %v2720
      %v2738 = vpack.c.b16 %v2723, %v2722
      %v2739 = vpack.c.b16 %v2725, %v2724
      %v2740 = vpack.c.b16 %v2727, %v2726
      %v2741 = vpack.c.b16 %v2729, %v2728
      %v2742 = vpack.c.b16 %v2731, %v2730
      %v2743 = vpack.c.b16 %v2733, %v2732
      %v2754 = vsel %vm2670, %v2673, 0
      %vm2756 = vcmask 1044480
      %v2758 = vsel %vm2756, %v2743, 0
      %2760 = vmatprep.subr.bf16.mxu0 0
      %2761 = vmatpush1.bf16.msra.mxu0 %v2734
      %2762 = vmatprep.subr.bf16.mxu0 0
      %2763 = vmatpush1.bf16.msra.mxu0 %v2735
      %2764 = vmatprep.subr.bf16.mxu0 0
      %2765 = vmatpush1.bf16.msra.mxu0 %v2736
      %2766 = vmatprep.subr.bf16.mxu0 0
      %2767 = vmatpush1.bf16.msra.mxu0 %v2737
      %2768 = vmatprep.subr.bf16.mxu0 0
      %2769 = vmatpush1.bf16.msra.mxu0 %v2738
      %2770 = vmatprep.subr.bf16.mxu0 0
      %2771 = vmatpush1.bf16.msra.mxu0 %v2739
      %2772 = vmatprep.subr.bf16.mxu0 0
      %2773 = vmatpush1.bf16.msra.mxu0 %v2740
      %2774 = vmatprep.subr.bf16.mxu0 0
      %2775 = vmatpush1.bf16.msra.mxu0 %v2741
      %2776 = vmatprep.subr.bf16.mxu0 0
      %2777 = vmatpush1.bf16.msra.mxu0 %v2742
      %2778 = vmatprep.subr.bf16.mxu0 0
      %2779 = vmatpush1.bf16.msra.mxu0 %v2758
      %2780 = vmatprep.subr.bf16.mxu0 0
      %2781 = vmatpush1.bf16.msra.mxu0 0
      %2782 = vmatprep.subr.bf16.mxu0 0
      %2783 = vmatpush1.bf16.msra.mxu0 0
      %2784 = vmatprep.subr.bf16.mxu0 0
      %2785 = vmatpush1.bf16.msra.mxu0 0
      %2786 = vmatprep.subr.bf16.mxu0 0
      %2787 = vmatpush1.bf16.msra.mxu0 0
      %2788 = vmatprep.subr.bf16.mxu0 0
      %2789 = vmatpush1.bf16.msra.mxu0 0
      %2790 = vmatprep.subr.bf16.mxu0 0
      %2791 = vmatpush1.bf16.msra.mxu0 0
      %2792 = vmatprep.mubr.bf16.mxu0 %v2754
      %2793 = vmatmul.mubr.bf16.gmra.mrb[0].mxu0 %v2672
      %v2794 = vpop.f32.mrb[0].mxu0
      %v2795 = vadd.f32 0.0, %v2794
      %v2796 = vpop.f32.mrb[0].mxu0
      %v2797 = vpop.f32.mrb[0].mxu0
      %v2798 = vadd.f32 0.0, %v2797
      %v2799 = vpop.f32.mrb[0].mxu0
      %2800 = vdwg.mxu0
      %vm2801 = vcmask 261120
      %2802 = vst.msk [vmem:[%s278] sm:$0xff] %vm2801, %v2795
      %2803 = vst.msk [vmem:[%s278 + $0x8] sm:$0xff] %vm2801, %v2798
      %s2804 = smul.u32 2, %s18
      %p2805 = scmp.lt.s32.totalorder %s2804, 3
      %s2806 = scalar_select %p2805, %s2804, 3
      %s2807 = smul.addr %s2806, 8
      %s2808 = scalar_lea.vmem %s7, %s2807
      // Predicated region
      $region49: #{lenet_forward.2} parent=47 // pred_check
        %p2809 = pneg %p188
      $region50: #{lenet_forward.2} parent=47 // pred_check_branch
        %2811 = sbr.rel (%p2809) target = $region52
      $region51: #{lenet_forward.2} parent=47 // pred_region
        %s2812 = smul.u32 2, %s18
      $region52: #{lenet_forward.2} parent=47 // pred_fallthru
        _
    $region48: #{lenet_forward.2} parent=5 // pred_fallthru
      _
    %p2813 = scmp.le.s32.totalorder 2, %s13
    // Predicated region
    $region53: #{lenet_forward.2} parent=5 // pred_check
      %p2814 = pneg %p2813
    $region54: #{lenet_forward.2} parent=5 // pred_check_branch
      %2816 = sbr.rel (%p2814) target = $region56
    $region55: #{lenet_forward.2} parent=5 // pred_region
      %s2817 = ssub.s32 %s13, 2
      // Predicated region
      $region57: #{lenet_forward.2} parent=55 // pred_check
        %p2818 = pneg %p194
      $region58: #{lenet_forward.2} parent=55 // pred_check_branch
        %2820 = sbr.rel (%p2818) target = $region60
      $region59: #{lenet_forward.2} parent=55 // pred_region
        %s2821 = smul.u32 2, %s19
        %p2822 = scmp.lt.s32.totalorder %s2821, 3
        %s2823 = scalar_select %p2822, %s2821, 3
        %s2824 = smul.addr %s2823, 8
        %s2825 = scalar_lea.vmem %s7, %s2824
      $region60: #{lenet_forward.2} parent=55 // pred_fallthru
        _
    $region56: #{lenet_forward.2} parent=5 // pred_fallthru
      _
  $region6: #{lenet_forward.2} parent=0 // loop_footer
    %s17 = sadd.s32 1, %s13
  $region7: #{lenet_forward.2} parent=0 // loop_footer_branch
    %12 = sbr.rel target = $region3
  $region8: #{lenet_forward.2} parent=0 // loop_exit
    _

</llo_original>
